<compile_context>
chip_gen: v6e
topology: v6e:2x2x1
jax: 0.10.0
libtpu: 0.0.40
codegen_flags: <defaults>
</compile_context>

<pallas_src>
from functools import partial

import jax
import jax.numpy as jnp
from jax.experimental import pallas as pl
from jax.experimental.pallas import tpu as pltpu


_CONV_PAD = 8  # zero-pad rows in the conv scratch; aligned (multiple of 8) and >= d_conv-1


def _full_spec(a):
    """Whole-array block that stays resident across grid steps."""
    nd = a.ndim
    return pl.BlockSpec(a.shape, lambda *_: (0,) * nd)


def _row_tile(n, cap=512):
    """Largest multiple-of-8 row tile dividing n; prefers >=2 tiles (megacore)."""
    assert n % 8 == 0, "row count must be a multiple of 8"
    tm = min(n, cap)
    if n > 8:
        tm = min(tm, max(8, (n // 2 // 8) * 8))
    while n % tm != 0:
        tm -= 8
    return tm


# --------------------------------------------------------------------------
# Generic row-tiled dense kernel (used only for the use_viewdirs=False head)
# --------------------------------------------------------------------------
def _linear_kernel(x_ref, w_ref, b_ref, o_ref, *, activation):
    y = jnp.dot(x_ref[...], w_ref[...], preferred_element_type=jnp.float32) + b_ref[...]
    if activation == "relu":
        y = jnp.maximum(y, 0.0)
    o_ref[...] = y.astype(o_ref.dtype)


def linear_rows(x, w, b, activation=None):
    n, k = x.shape
    m = w.shape[1]
    tm = _row_tile(n)
    return pl.pallas_call(
        partial(_linear_kernel, activation=activation),
        out_shape=jax.ShapeDtypeStruct((n, m), jnp.float32),
        grid=(n // tm,),
        in_specs=[pl.BlockSpec((tm, k), lambda i: (i, 0)), _full_spec(w), _full_spec(b)],
        out_specs=pl.BlockSpec((tm, m), lambda i: (i, 0)),
        compiler_params=pltpu.CompilerParams(dimension_semantics=("parallel",)),
    )(x, w, b)


# --------------------------------------------------------------------------
# Fused (optional input Linear) + Mamba block.  One grid step per sequence.
# --------------------------------------------------------------------------
def _mamba_fused_kernel(*refs, d_inner, d_state, d_conv, apply_input_linear):
    if apply_input_linear:
        (x_ref, inlin_w, inlin_b, inproj_w, conv_w, conv_b,
         xdt_w, xB_w, xC_w, dt_w, dt_b, A_T_ref, D_ref, out_w,
         o_ref, conv_buf) = refs
    else:
        (x_ref, inproj_w, conv_w, conv_b,
         xdt_w, xB_w, xC_w, dt_w, dt_b, A_T_ref, D_ref, out_w,
         o_ref, conv_buf) = refs
        inlin_w = inlin_b = None

    f32 = jnp.float32
    L = x_ref.shape[0]

    xin = x_ref[...].astype(f32)                                       # [L, Cin]
    if apply_input_linear:
        h = jnp.dot(xin, inlin_w[...], preferred_element_type=f32) + inlin_b[...]
    else:
        h = xin                                                        # [L, d_model]

    # Mamba in_proj (bias=False): xz = h @ Wi, split into x | z (lane-aligned split).
    xz = jnp.dot(h, inproj_w[...], preferred_element_type=f32)         # [L, 2*d_inner]
    x = xz[:, :d_inner]
    z = xz[:, d_inner:]

    # Depthwise causal conv1d (kernel d_conv, left zero-pad d_conv-1) along time,
    # via static sublane-offset slices of a zero-padded VMEM scratch, then SiLU.
    conv_buf[pl.ds(0, _CONV_PAD), :] = jnp.zeros((_CONV_PAD, d_inner), f32)
    conv_buf[pl.ds(_CONV_PAD, L), :] = x
    cw = conv_w[...]                                                   # [d_conv, d_inner]
    acc = jnp.zeros((L, d_inner), f32)
    for k in range(d_conv):
        shift = d_conv - 1 - k                       # tap k multiplies x[t - shift]
        x_s = conv_buf[pl.ds(_CONV_PAD - shift, L), :]
        acc = acc + cw[k:k + 1, :] * x_s
    xc = acc + conv_b[...]
    xc = xc * jax.nn.sigmoid(xc)                                       # SiLU

    # x_proj (dt / B / C) and dt_proj + softplus -- natural [L, d_inner] x [d_inner, .]
    # MXU matmuls (no sublane-axis contractions, no transposes).
    dt_pre = jnp.dot(xc, xdt_w[...], preferred_element_type=f32)       # [L, dt_rank]
    Bm = jnp.dot(xc, xB_w[...], preferred_element_type=f32)            # [L, d_state]
    Cm = jnp.dot(xc, xC_w[...], preferred_element_type=f32)            # [L, d_state]
    dt = jax.nn.softplus(
        jnp.dot(dt_pre, dt_w[...], preferred_element_type=f32) + dt_b[...])  # [L, d_inner]

    # Selective scan, lane-dense: state is [d_state, d_inner] with d_inner on lanes.
    # exp(dt*A) and dt*x*B are precomputed so the serial chain is only VPU mul/add.
    A_T = A_T_ref[...]                                                 # [d_state, d_inner]
    dA = jnp.exp(dt[:, None, :] * A_T[None, :, :])                     # [L, d_state, d_inner]
    dBx = Bm[:, :, None] * (dt * xc)[:, None, :]                       # [L, d_state, d_inner]

    hstate = jnp.zeros((d_state, d_inner), f32)
    hs = []
    for t in range(L):                               # L is small & static -> unrolled
        hstate = dA[t] * hstate + dBx[t]
        hs.append(hstate)
    hs = jnp.stack(hs, axis=0)                                         # [L, d_state, d_inner]

    y = jnp.sum(hs * Cm[:, :, None], axis=1)                           # [L, d_inner]
    y = y + D_ref[...] * xc                                            # D skip connection
    y = y * (z * jax.nn.sigmoid(z))                                    # gate with SiLU(z)

    # out_proj (bias=False); single lane-dense store of the whole output block.
    o_ref[...] = jnp.dot(y, out_w[...], preferred_element_type=f32).astype(o_ref.dtype)


def mamba_block(x3, mp, in_linear=None):
    """x3: [8, L, Cin] -> [8, L, d_model]; optionally fuses a leading nn.Linear."""
    bsz, L, cin = x3.shape
    d_state, d_inner = mp["A_T"].shape
    d_conv = mp["conv_w"].shape[0]
    d_model = mp["out_proj_w"].shape[1]
    assert d_conv - 1 <= _CONV_PAD

    weights = []
    if in_linear is not None:
        weights += [in_linear[0], in_linear[1]]
    weights += [mp["in_proj_w"], mp["conv_w"], mp["conv_b"],
                mp["xproj_dt_w"], mp["xproj_B_w"], mp["xproj_C_w"],
                mp["dt_w"], mp["dt_b"], mp["A_T"], mp["D"], mp["out_proj_w"]]

    kernel = partial(_mamba_fused_kernel, d_inner=d_inner, d_state=d_state,
                     d_conv=d_conv, apply_input_linear=in_linear is not None)
    return pl.pallas_call(
        kernel,
        out_shape=jax.ShapeDtypeStruct((bsz, L, d_model), jnp.float32),
        grid=(bsz,),
        in_specs=([pl.BlockSpec((None, L, cin), lambda b: (b, 0, 0))]
                  + [_full_spec(w) for w in weights]),
        out_specs=pl.BlockSpec((None, L, d_model), lambda b: (b, 0, 0)),
        scratch_shapes=[pltpu.VMEM((_CONV_PAD + L, d_inner), jnp.float32)],
        compiler_params=pltpu.CompilerParams(dimension_semantics=("parallel",)),
    )(x3, *weights)


# --------------------------------------------------------------------------
# Fused view-dependent head: alpha + feature + views(+ReLU) + rgb + concat.
# --------------------------------------------------------------------------
def _head_kernel(h_ref, v_ref, fw_ref, fb_ref, aw_ref, ab_ref,
                 vwf_ref, vwv_ref, vb_ref, rw_ref, rb_ref, o_ref):
    f32 = jnp.float32
    h = h_ref[...]
    feat = jnp.dot(h, fw_ref[...], preferred_element_type=f32) + fb_ref[...]      # feature_linear
    # views_linears[0] on concat([feature, input_views]) == split-weight matmuls, then ReLU
    hv = (jnp.dot(feat, vwf_ref[...], preferred_element_type=f32)
          + jnp.dot(v_ref[...], vwv_ref[...], preferred_element_type=f32)
          + vb_ref[...])
    hv = jnp.maximum(hv, 0.0)
    # rgb_linear / alpha_linear packed into disjoint columns of one [., 4] slab:
    # out[:, :3] = rgb, out[:, 3:4] = alpha  ==  concat([rgb, alpha], -1)
    out = (jnp.dot(hv, rw_ref[...], preferred_element_type=f32) + rb_ref[...]
           + jnp.dot(h, aw_ref[...], preferred_element_type=f32) + ab_ref[...])
    o_ref[...] = out.astype(o_ref.dtype)


def head_viewdirs(h, views, params):
    n, w_dim = h.shape
    cv = views.shape[1]
    tm = _row_tile(n)
    weights = [params["feature_w"], params["feature_b"],
               params["alpha_w4"], params["alpha_b4"],
               params["views_w_f"], params["views_w_v"], params["views_b"],
               params["rgb_w4"], params["rgb_b4"]]
    return pl.pallas_call(
        _head_kernel,
        out_shape=jax.ShapeDtypeStruct((n, 4), jnp.float32),
        grid=(n // tm,),
        in_specs=([pl.BlockSpec((tm, w_dim), lambda i: (i, 0)),
                   pl.BlockSpec((tm, cv), lambda i: (i, 0))]
                  + [_full_spec(wt) for wt in weights]),
        out_specs=pl.BlockSpec((tm, 4), lambda i: (i, 0)),
        compiler_params=pltpu.CompilerParams(dimension_semantics=("parallel",)),
    )(h, views, *weights)


# --------------------------------------------------------------------------
# NeRF forward (matches the PyTorch module's forward)
# --------------------------------------------------------------------------
def nerf_forward(x, params, *, input_ch=3, input_ch_views=3, W=256,
                 use_viewdirs=True, mamba_blocks=1):
    N = x.shape[0]
    assert W == 256 and N % 8 == 0, "forward hard-codes h.reshape((8, -1, 256))"
    input_pts = x[..., :input_ch]
    input_views = x[..., input_ch:input_ch + input_ch_views]

    bsz = 8
    L = N // bsz
    mp = params["mamba"]
    # pts_linears[0] (Linear(input_ch, W)) fused into the first Mamba block call.
    h3 = mamba_block(input_pts.reshape(bsz, L, input_ch), mp,
                     in_linear=(params["pts0_w"], params["pts0_b"]))
    # pts_linears[1] (the single Mamba module) is reused for any additional blocks.
    for _ in range(mamba_blocks - 1):
        h3 = mamba_block(h3, mp)
    h = h3.reshape(N, W)

    if use_viewdirs:
        return head_viewdirs(h, input_views, params)
    return linear_rows(h, params["output_w"], params["output_b"])


# --------------------------------------------------------------------------
# Deterministic synthetic parameters (shapes follow NeRF.__init__ with W=256)
# --------------------------------------------------------------------------
def init_params(key, *, input_ch=3, input_ch_views=3, W=256, output_ch=4,
                d_state=16, d_conv=4, expand=2):
    d_inner = expand * W
    dt_rank = -(-W // 16)  # ceil(W / 16)

    def nk():
        nonlocal key
        key, sub = jax.random.split(key)
        return sub

    def dense(i, o, scale=0.05):
        return jax.random.normal(nk(), (i, o), jnp.float32) * scale

    rgb_w = dense(W // 2, 3)
    alpha_w = dense(W, 1)
    params = {
        "pts0_w": dense(input_ch, W),
        "pts0_b": jnp.zeros((1, W), jnp.float32),
        "feature_w": dense(W, W),
        "feature_b": jnp.zeros((1, W), jnp.float32),
        # views_linears[0] weight split so concat([feature, views]) becomes two matmuls
        "views_w_f": dense(W, W // 2),
        "views_w_v": dense(input_ch_views, W // 2),
        "views_b": jnp.zeros((1, W // 2), jnp.float32),
        # rgb occupies cols 0..2, alpha col 3 of the fused 4-wide head output slab
        "rgb_w4": jnp.pad(rgb_w, ((0, 0), (0, 1))),
        "rgb_b4": jnp.zeros((1, 4), jnp.float32),
        "alpha_w4": jnp.pad(alpha_w, ((0, 0), (3, 0))),
        "alpha_b4": jnp.zeros((1, 4), jnp.float32),
        "output_w": dense(W, output_ch),
        "output_b": jnp.zeros((1, output_ch), jnp.float32),
    }
    # A = -exp(A_log) with A_log[c, s] = log(s + 1); stored transposed [d_state, d_inner]
    A_T = -jnp.tile(jnp.arange(1, d_state + 1, dtype=jnp.float32)[:, None], (1, d_inner))
    params["mamba"] = {
        "in_proj_w": dense(W, 2 * d_inner),                 # bias=False
        "conv_w": dense(d_conv, d_inner, scale=0.2),        # depthwise conv taps [d_conv, d_inner]
        "conv_b": jnp.zeros((1, d_inner), jnp.float32),
        "xproj_dt_w": dense(d_inner, dt_rank),
        "xproj_B_w": dense(d_inner, d_state),
        "xproj_C_w": dense(d_inner, d_state),
        "dt_w": dense(dt_rank, d_inner, scale=0.1),
        "dt_b": jnp.full((1, d_inner), -2.0, jnp.float32),
        "A_T": A_T,
        "D": jnp.ones((1, d_inner), jnp.float32),
        "out_proj_w": dense(d_inner, W),                    # bias=False
    }
    return params


if __name__ == "__main__":
    key = jax.random.PRNGKey(0)
    pkey, xkey = jax.random.split(key)
    params = init_params(pkey)

    # The PyTorch forward hard-codes h.reshape((8, -1, 256)), so N must be divisible by 8.
    N = 64
    x = jax.random.normal(xkey, (N, 6), jnp.float32)   # [pts(3) | views(3)]

    out = nerf_forward(x, params, use_viewdirs=True, mamba_blocks=1)
    out = jax.block_until_ready(out)
    assert out.shape == (N, 4) and out.dtype == jnp.float32
    assert bool(jnp.all(jnp.isfinite(out)))

    # also exercise the use_viewdirs=False head (single row-tiled linear)
    out2 = jax.block_until_ready(nerf_forward(x, params, use_viewdirs=False))
    assert out2.shape == (N, 4) and bool(jnp.all(jnp.isfinite(out2)))

    print("KERNEL_OK")
</pallas_src>

<mosaic_0001>
module attributes {stable_mosaic.version = 11 : i64} {
  func.func @_mamba_fused_kernel(%arg0: i32, %arg1: memref<1x8x3xf32, #tpu.memory_space<vmem>>, %arg2: memref<3x256xf32, #tpu.memory_space<vmem>>, %arg3: memref<1x256xf32, #tpu.memory_space<vmem>>, %arg4: memref<256x1024xf32, #tpu.memory_space<vmem>>, %arg5: memref<4x512xf32, #tpu.memory_space<vmem>>, %arg6: memref<1x512xf32, #tpu.memory_space<vmem>>, %arg7: memref<512x16xf32, #tpu.memory_space<vmem>>, %arg8: memref<512x16xf32, #tpu.memory_space<vmem>>, %arg9: memref<512x16xf32, #tpu.memory_space<vmem>>, %arg10: memref<16x512xf32, #tpu.memory_space<vmem>>, %arg11: memref<1x512xf32, #tpu.memory_space<vmem>>, %arg12: memref<16x512xf32, #tpu.memory_space<vmem>>, %arg13: memref<1x512xf32, #tpu.memory_space<vmem>>, %arg14: memref<512x256xf32, #tpu.memory_space<vmem>>, %arg15: memref<1x8x256xf32, #tpu.memory_space<vmem>>, %arg16: memref<16x512xf32, #tpu.memory_space<vmem>>) attributes {dimension_semantics = [#tpu.dimension_semantics<parallel>], iteration_bounds = array<i64: 8>, scalar_prefetch = 0 : i64, scratch_operands = 1 : i64, tpu.core_type = #tpu.core_type<tc>, window_params = [{transform_indices = @transform_0, window_bounds = array<i64: 1, 8, 3>}, {pipeline_mode = #tpu.pipeline_mode<synchronous>, transform_indices = @transform_1, window_bounds = array<i64: 3, 256>}, {pipeline_mode = #tpu.pipeline_mode<synchronous>, transform_indices = @transform_2, window_bounds = array<i64: 1, 256>}, {pipeline_mode = #tpu.pipeline_mode<synchronous>, transform_indices = @transform_3, window_bounds = array<i64: 256, 1024>}, {pipeline_mode = #tpu.pipeline_mode<synchronous>, transform_indices = @transform_4, window_bounds = array<i64: 4, 512>}, {pipeline_mode = #tpu.pipeline_mode<synchronous>, transform_indices = @transform_5, window_bounds = array<i64: 1, 512>}, {pipeline_mode = #tpu.pipeline_mode<synchronous>, transform_indices = @transform_6, window_bounds = array<i64: 512, 16>}, {pipeline_mode = #tpu.pipeline_mode<synchronous>, transform_indices = @transform_7, window_bounds = array<i64: 512, 16>}, {pipeline_mode = #tpu.pipeline_mode<synchronous>, transform_indices = @transform_8, window_bounds = array<i64: 512, 16>}, {pipeline_mode = #tpu.pipeline_mode<synchronous>, transform_indices = @transform_9, window_bounds = array<i64: 16, 512>}, {pipeline_mode = #tpu.pipeline_mode<synchronous>, transform_indices = @transform_10, window_bounds = array<i64: 1, 512>}, {pipeline_mode = #tpu.pipeline_mode<synchronous>, transform_indices = @transform_11, window_bounds = array<i64: 16, 512>}, {pipeline_mode = #tpu.pipeline_mode<synchronous>, transform_indices = @transform_12, window_bounds = array<i64: 1, 512>}, {pipeline_mode = #tpu.pipeline_mode<synchronous>, transform_indices = @transform_13, window_bounds = array<i64: 512, 256>}, {transform_indices = @transform_14, window_bounds = array<i64: 1, 8, 256>}]} {
    %c0 = arith.constant 0 : index
    %c0_0 = arith.constant 0 : index
    %c0_1 = arith.constant 0 : index
    %0 = vector.load %arg1[%c0, %c0_0, %c0_1] : memref<1x8x3xf32, #tpu.memory_space<vmem>>, vector<1x8x3xf32>
    %1 = vector.shape_cast %0 : vector<1x8x3xf32> to vector<8x3xf32>
    %c0_2 = arith.constant 0 : index
    %c0_3 = arith.constant 0 : index
    %2 = vector.load %arg2[%c0_2, %c0_3] : memref<3x256xf32, #tpu.memory_space<vmem>>, vector<3x256xf32>
    %cst = arith.constant dense<0.000000e+00> : vector<8x256xf32>
    %3 = tpu.matmul %1, %2, %cst {dimension_numbers = #tpu.dot_dimension_numbers<[1], [0], [0], [1], [0, 0, 1, 1], [], []>} : vector<8x3xf32>, vector<3x256xf32>, vector<8x256xf32> -> vector<8x256xf32>
    %c0_4 = arith.constant 0 : index
    %c0_5 = arith.constant 0 : index
    %4 = vector.load %arg3[%c0_4, %c0_5] : memref<1x256xf32, #tpu.memory_space<vmem>>, vector<1x256xf32>
    %5 = vector.broadcast %4 : vector<1x256xf32> to vector<8x256xf32>
    %6 = arith.addf %3, %5 : vector<8x256xf32>
    %c0_6 = arith.constant 0 : index
    %c0_7 = arith.constant 0 : index
    %7 = vector.load %arg4[%c0_6, %c0_7] : memref<256x1024xf32, #tpu.memory_space<vmem>>, vector<256x1024xf32>
    %cst_8 = arith.constant dense<0.000000e+00> : vector<8x1024xf32>
    %8 = tpu.matmul %6, %7, %cst_8 {dimension_numbers = #tpu.dot_dimension_numbers<[1], [0], [0], [1], [0, 0, 1, 1], [], []>} : vector<8x256xf32>, vector<256x1024xf32>, vector<8x1024xf32> -> vector<8x1024xf32>
    %9 = vector.extract_strided_slice %8 {offsets = [0, 0], sizes = [8, 512], strides = [1, 1]} : vector<8x1024xf32> to vector<8x512xf32>
    %10 = vector.extract_strided_slice %8 {offsets = [0, 512], sizes = [8, 512], strides = [1, 1]} : vector<8x1024xf32> to vector<8x512xf32>
    %cst_9 = arith.constant 0.000000e+00 : f32
    %11 = vector.broadcast %cst_9 : f32 to vector<8x512xf32>
    %c0_10 = arith.constant 0 : index
    %c0_11 = arith.constant 0 : index
    %12 = vector.load %arg16[%c0_10, %c0_11] : memref<16x512xf32, #tpu.memory_space<vmem>>, vector<8x512xf32>
    tpu.vector_store %arg16[%c0_10, %c0_11], %11 {strides = array<i32>} : memref<16x512xf32, #tpu.memory_space<vmem>>, vector<8x512xf32>,
    %c8 = arith.constant 8 : index
    %c0_12 = arith.constant 0 : index
    %13 = vector.load %arg16[%c8, %c0_12] : memref<16x512xf32, #tpu.memory_space<vmem>>, vector<8x512xf32>
    tpu.vector_store %arg16[%c8, %c0_12], %9 {strides = array<i32>} : memref<16x512xf32, #tpu.memory_space<vmem>>, vector<8x512xf32>,
    %c0_13 = arith.constant 0 : index
    %c0_14 = arith.constant 0 : index
    %14 = vector.load %arg5[%c0_13, %c0_14] : memref<4x512xf32, #tpu.memory_space<vmem>>, vector<4x512xf32>
    %cst_15 = arith.constant 0.000000e+00 : f32
    %15 = vector.broadcast %cst_15 : f32 to vector<8x512xf32>
    %c5 = arith.constant 5 : index
    %c0_16 = arith.constant 0 : index
    %16 = vector.load %arg16[%c5, %c0_16] : memref<16x512xf32, #tpu.memory_space<vmem>>, vector<8x512xf32>
    %17 = vector.extract_strided_slice %14 {offsets = [0, 0], sizes = [1, 512], strides = [1, 1]} : vector<4x512xf32> to vector<1x512xf32>
    %18 = vector.broadcast %17 : vector<1x512xf32> to vector<8x512xf32>
    %19 = arith.mulf %18, %16 : vector<8x512xf32>
    %20 = arith.addf %15, %19 : vector<8x512xf32>
    %c6 = arith.constant 6 : index
    %c0_17 = arith.constant 0 : index
    %21 = vector.load %arg16[%c6, %c0_17] : memref<16x512xf32, #tpu.memory_space<vmem>>, vector<8x512xf32>
    %22 = vector.extract_strided_slice %14 {offsets = [1, 0], sizes = [1, 512], strides = [1, 1]} : vector<4x512xf32> to vector<1x512xf32>
    %23 = vector.broadcast %22 : vector<1x512xf32> to vector<8x512xf32>
    %24 = arith.mulf %23, %21 : vector<8x512xf32>
    %25 = arith.addf %20, %24 : vector<8x512xf32>
    %c7 = arith.constant 7 : index
    %c0_18 = arith.constant 0 : index
    %26 = vector.load %arg16[%c7, %c0_18] : memref<16x512xf32, #tpu.memory_space<vmem>>, vector<8x512xf32>
    %27 = vector.extract_strided_slice %14 {offsets = [2, 0], sizes = [1, 512], strides = [1, 1]} : vector<4x512xf32> to vector<1x512xf32>
    %28 = vector.broadcast %27 : vector<1x512xf32> to vector<8x512xf32>
    %29 = arith.mulf %28, %26 : vector<8x512xf32>
    %30 = arith.addf %25, %29 : vector<8x512xf32>
    %c8_19 = arith.constant 8 : index
    %c0_20 = arith.constant 0 : index
    %31 = vector.load %arg16[%c8_19, %c0_20] : memref<16x512xf32, #tpu.memory_space<vmem>>, vector<8x512xf32>
    %32 = vector.extract_strided_slice %14 {offsets = [3, 0], sizes = [1, 512], strides = [1, 1]} : vector<4x512xf32> to vector<1x512xf32>
    %33 = vector.broadcast %32 : vector<1x512xf32> to vector<8x512xf32>
    %34 = arith.mulf %33, %31 : vector<8x512xf32>
    %35 = arith.addf %30, %34 : vector<8x512xf32>
    %c0_21 = arith.constant 0 : index
    %c0_22 = arith.constant 0 : index
    %36 = vector.load %arg6[%c0_21, %c0_22] : memref<1x512xf32, #tpu.memory_space<vmem>>, vector<1x512xf32>
    %37 = vector.broadcast %36 : vector<1x512xf32> to vector<8x512xf32>
    %38 = arith.addf %35, %37 : vector<8x512xf32>
    %39 = arith.negf %38 : vector<8x512xf32>
    %40 = math.exp %39 : vector<8x512xf32>
    %cst_23 = arith.constant 1.000000e+00 : f32
    %41 = vector.broadcast %cst_23 : f32 to vector<8x512xf32>
    %42 = arith.addf %41, %40 : vector<8x512xf32>
    %43 = arith.divf %41, %42 : vector<8x512xf32>
    %44 = arith.mulf %38, %43 : vector<8x512xf32>
    %c0_24 = arith.constant 0 : index
    %c0_25 = arith.constant 0 : index
    %45 = vector.load %arg7[%c0_24, %c0_25] : memref<512x16xf32, #tpu.memory_space<vmem>>, vector<512x16xf32>
    %cst_26 = arith.constant dense<0.000000e+00> : vector<8x16xf32>
    %46 = tpu.matmul %44, %45, %cst_26 {dimension_numbers = #tpu.dot_dimension_numbers<[1], [0], [0], [1], [0, 0, 1, 1], [], []>} : vector<8x512xf32>, vector<512x16xf32>, vector<8x16xf32> -> vector<8x16xf32>
    %c0_27 = arith.constant 0 : index
    %c0_28 = arith.constant 0 : index
    %47 = vector.load %arg8[%c0_27, %c0_28] : memref<512x16xf32, #tpu.memory_space<vmem>>, vector<512x16xf32>
    %cst_29 = arith.constant dense<0.000000e+00> : vector<8x16xf32>
    %48 = tpu.matmul %44, %47, %cst_29 {dimension_numbers = #tpu.dot_dimension_numbers<[1], [0], [0], [1], [0, 0, 1, 1], [], []>} : vector<8x512xf32>, vector<512x16xf32>, vector<8x16xf32> -> vector<8x16xf32>
    %c0_30 = arith.constant 0 : index
    %c0_31 = arith.constant 0 : index
    %49 = vector.load %arg9[%c0_30, %c0_31] : memref<512x16xf32, #tpu.memory_space<vmem>>, vector<512x16xf32>
    %cst_32 = arith.constant dense<0.000000e+00> : vector<8x16xf32>
    %50 = tpu.matmul %44, %49, %cst_32 {dimension_numbers = #tpu.dot_dimension_numbers<[1], [0], [0], [1], [0, 0, 1, 1], [], []>} : vector<8x512xf32>, vector<512x16xf32>, vector<8x16xf32> -> vector<8x16xf32>
    %c0_33 = arith.constant 0 : index
    %c0_34 = arith.constant 0 : index
    %51 = vector.load %arg10[%c0_33, %c0_34] : memref<16x512xf32, #tpu.memory_space<vmem>>, vector<16x512xf32>
    %cst_35 = arith.constant dense<0.000000e+00> : vector<8x512xf32>
    %52 = tpu.matmul %46, %51, %cst_35 {dimension_numbers = #tpu.dot_dimension_numbers<[1], [0], [0], [1], [0, 0, 1, 1], [], []>} : vector<8x16xf32>, vector<16x512xf32>, vector<8x512xf32> -> vector<8x512xf32>
    %c0_36 = arith.constant 0 : index
    %c0_37 = arith.constant 0 : index
    %53 = vector.load %arg11[%c0_36, %c0_37] : memref<1x512xf32, #tpu.memory_space<vmem>>, vector<1x512xf32>
    %54 = vector.broadcast %53 : vector<1x512xf32> to vector<8x512xf32>
    %55 = arith.addf %52, %54 : vector<8x512xf32>
    %cst_38 = arith.constant 0.000000e+00 : f32
    %56 = vector.broadcast %cst_38 : f32 to vector<8x512xf32>
    %57 = arith.maximumf %55, %56 : vector<8x512xf32>
    %58 = vector.broadcast %cst_38 : f32 to vector<8x512xf32>
    %59 = arith.subf %55, %58 : vector<8x512xf32>
    %60 = arith.cmpf one, %59, %59 : vector<8x512xf32>
    %61 = vector.broadcast %cst_38 : f32 to vector<8x512xf32>
    %62 = arith.addf %55, %61 : vector<8x512xf32>
    %63 = math.absf %59 : vector<8x512xf32>
    %cst_39 = arith.constant 0.000000e+00 : f32
    %64 = vector.broadcast %cst_39 : f32 to vector<8x512xf32>
    %65 = arith.subf %64, %63 : vector<8x512xf32>
    %66 = math.exp %65 : vector<8x512xf32>
    %67 = math.log1p %66 : vector<8x512xf32>
    %68 = arith.addf %57, %67 : vector<8x512xf32>
    %69 = arith.select %60, %62, %68 : vector<8x512xi1>, vector<8x512xf32>
    %c0_40 = arith.constant 0 : index
    %c0_41 = arith.constant 0 : index
    %70 = vector.load %arg12[%c0_40, %c0_41] : memref<16x512xf32, #tpu.memory_space<vmem>>, vector<16x512xf32>
    %71 = vector.shape_cast %69 : vector<8x512xf32> to vector<8x1x512xf32>
    %72 = vector.shape_cast %70 : vector<16x512xf32> to vector<1x16x512xf32>
    %73 = vector.broadcast %71 : vector<8x1x512xf32> to vector<8x16x512xf32>
    %74 = vector.broadcast %72 : vector<1x16x512xf32> to vector<8x16x512xf32>
    %75 = arith.mulf %73, %74 : vector<8x16x512xf32>
    %76 = math.exp %75 : vector<8x16x512xf32>
    %77 = vector.shape_cast %48 : vector<8x16xf32> to vector<8x16x1xf32>
    %78 = arith.mulf %69, %44 : vector<8x512xf32>
    %79 = vector.shape_cast %78 : vector<8x512xf32> to vector<8x1x512xf32>
    %80 = vector.broadcast %77 : vector<8x16x1xf32> to vector<8x16x512xf32>
    %81 = vector.broadcast %79 : vector<8x1x512xf32> to vector<8x16x512xf32>
    %82 = arith.mulf %80, %81 : vector<8x16x512xf32>
    %cst_42 = arith.constant 0.000000e+00 : f32
    %83 = vector.broadcast %cst_42 : f32 to vector<16x512xf32>
    %84 = vector.extract_strided_slice %76 {offsets = [0, 0, 0], sizes = [1, 16, 512], strides = [1, 1, 1]} : vector<8x16x512xf32> to vector<1x16x512xf32>
    %85 = vector.shape_cast %84 : vector<1x16x512xf32> to vector<16x512xf32>
    %86 = arith.mulf %85, %83 : vector<16x512xf32>
    %87 = vector.extract_strided_slice %82 {offsets = [0, 0, 0], sizes = [1, 16, 512], strides = [1, 1, 1]} : vector<8x16x512xf32> to vector<1x16x512xf32>
    %88 = vector.shape_cast %87 : vector<1x16x512xf32> to vector<16x512xf32>
    %89 = arith.addf %86, %88 : vector<16x512xf32>
    %90 = vector.extract_strided_slice %76 {offsets = [1, 0, 0], sizes = [1, 16, 512], strides = [1, 1, 1]} : vector<8x16x512xf32> to vector<1x16x512xf32>
    %91 = vector.shape_cast %90 : vector<1x16x512xf32> to vector<16x512xf32>
    %92 = arith.mulf %91, %89 : vector<16x512xf32>
    %93 = vector.extract_strided_slice %82 {offsets = [1, 0, 0], sizes = [1, 16, 512], strides = [1, 1, 1]} : vector<8x16x512xf32> to vector<1x16x512xf32>
    %94 = vector.shape_cast %93 : vector<1x16x512xf32> to vector<16x512xf32>
    %95 = arith.addf %92, %94 : vector<16x512xf32>
    %96 = vector.extract_strided_slice %76 {offsets = [2, 0, 0], sizes = [1, 16, 512], strides = [1, 1, 1]} : vector<8x16x512xf32> to vector<1x16x512xf32>
    %97 = vector.shape_cast %96 : vector<1x16x512xf32> to vector<16x512xf32>
    %98 = arith.mulf %97, %95 : vector<16x512xf32>
    %99 = vector.extract_strided_slice %82 {offsets = [2, 0, 0], sizes = [1, 16, 512], strides = [1, 1, 1]} : vector<8x16x512xf32> to vector<1x16x512xf32>
    %100 = vector.shape_cast %99 : vector<1x16x512xf32> to vector<16x512xf32>
    %101 = arith.addf %98, %100 : vector<16x512xf32>
    %102 = vector.extract_strided_slice %76 {offsets = [3, 0, 0], sizes = [1, 16, 512], strides = [1, 1, 1]} : vector<8x16x512xf32> to vector<1x16x512xf32>
    %103 = vector.shape_cast %102 : vector<1x16x512xf32> to vector<16x512xf32>
    %104 = arith.mulf %103, %101 : vector<16x512xf32>
    %105 = vector.extract_strided_slice %82 {offsets = [3, 0, 0], sizes = [1, 16, 512], strides = [1, 1, 1]} : vector<8x16x512xf32> to vector<1x16x512xf32>
    %106 = vector.shape_cast %105 : vector<1x16x512xf32> to vector<16x512xf32>
    %107 = arith.addf %104, %106 : vector<16x512xf32>
    %108 = vector.extract_strided_slice %76 {offsets = [4, 0, 0], sizes = [1, 16, 512], strides = [1, 1, 1]} : vector<8x16x512xf32> to vector<1x16x512xf32>
    %109 = vector.shape_cast %108 : vector<1x16x512xf32> to vector<16x512xf32>
    %110 = arith.mulf %109, %107 : vector<16x512xf32>
    %111 = vector.extract_strided_slice %82 {offsets = [4, 0, 0], sizes = [1, 16, 512], strides = [1, 1, 1]} : vector<8x16x512xf32> to vector<1x16x512xf32>
    %112 = vector.shape_cast %111 : vector<1x16x512xf32> to vector<16x512xf32>
    %113 = arith.addf %110, %112 : vector<16x512xf32>
    %114 = vector.extract_strided_slice %76 {offsets = [5, 0, 0], sizes = [1, 16, 512], strides = [1, 1, 1]} : vector<8x16x512xf32> to vector<1x16x512xf32>
    %115 = vector.shape_cast %114 : vector<1x16x512xf32> to vector<16x512xf32>
    %116 = arith.mulf %115, %113 : vector<16x512xf32>
    %117 = vector.extract_strided_slice %82 {offsets = [5, 0, 0], sizes = [1, 16, 512], strides = [1, 1, 1]} : vector<8x16x512xf32> to vector<1x16x512xf32>
    %118 = vector.shape_cast %117 : vector<1x16x512xf32> to vector<16x512xf32>
    %119 = arith.addf %116, %118 : vector<16x512xf32>
    %120 = vector.extract_strided_slice %76 {offsets = [6, 0, 0], sizes = [1, 16, 512], strides = [1, 1, 1]} : vector<8x16x512xf32> to vector<1x16x512xf32>
    %121 = vector.shape_cast %120 : vector<1x16x512xf32> to vector<16x512xf32>
    %122 = arith.mulf %121, %119 : vector<16x512xf32>
    %123 = vector.extract_strided_slice %82 {offsets = [6, 0, 0], sizes = [1, 16, 512], strides = [1, 1, 1]} : vector<8x16x512xf32> to vector<1x16x512xf32>
    %124 = vector.shape_cast %123 : vector<1x16x512xf32> to vector<16x512xf32>
    %125 = arith.addf %122, %124 : vector<16x512xf32>
    %126 = vector.extract_strided_slice %76 {offsets = [7, 0, 0], sizes = [1, 16, 512], strides = [1, 1, 1]} : vector<8x16x512xf32> to vector<1x16x512xf32>
    %127 = vector.shape_cast %126 : vector<1x16x512xf32> to vector<16x512xf32>
    %128 = arith.mulf %127, %125 : vector<16x512xf32>
    %129 = vector.extract_strided_slice %82 {offsets = [7, 0, 0], sizes = [1, 16, 512], strides = [1, 1, 1]} : vector<8x16x512xf32> to vector<1x16x512xf32>
    %130 = vector.shape_cast %129 : vector<1x16x512xf32> to vector<16x512xf32>
    %131 = arith.addf %128, %130 : vector<16x512xf32>
    %132 = vector.shape_cast %89 : vector<16x512xf32> to vector<1x16x512xf32>
    %133 = vector.shape_cast %95 : vector<16x512xf32> to vector<1x16x512xf32>
    %134 = vector.shape_cast %101 : vector<16x512xf32> to vector<1x16x512xf32>
    %135 = vector.shape_cast %107 : vector<16x512xf32> to vector<1x16x512xf32>
    %136 = vector.shape_cast %113 : vector<16x512xf32> to vector<1x16x512xf32>
    %137 = vector.shape_cast %119 : vector<16x512xf32> to vector<1x16x512xf32>
    %138 = vector.shape_cast %125 : vector<16x512xf32> to vector<1x16x512xf32>
    %139 = vector.shape_cast %131 : vector<16x512xf32> to vector<1x16x512xf32>
    %140 = tpu.concatenate %132, %133, %134, %135, %136, %137, %138, %139 in 0 : vector<1x16x512xf32>, vector<1x16x512xf32>, vector<1x16x512xf32>, vector<1x16x512xf32>, vector<1x16x512xf32>, vector<1x16x512xf32>, vector<1x16x512xf32>, vector<1x16x512xf32> -> vector<8x16x512xf32>
    %141 = vector.shape_cast %50 : vector<8x16xf32> to vector<8x16x1xf32>
    %142 = vector.broadcast %141 : vector<8x16x1xf32> to vector<8x16x512xf32>
    %143 = arith.mulf %140, %142 : vector<8x16x512xf32>
    %cst_43 = arith.constant dense<0.000000e+00> : vector<8x512xf32>
    %144 = vector.multi_reduction <add>, %143, %cst_43 [1] : vector<8x16x512xf32> to vector<8x512xf32>
    %c0_44 = arith.constant 0 : index
    %c0_45 = arith.constant 0 : index
    %145 = vector.load %arg13[%c0_44, %c0_45] : memref<1x512xf32, #tpu.memory_space<vmem>>, vector<1x512xf32>
    %146 = vector.broadcast %145 : vector<1x512xf32> to vector<8x512xf32>
    %147 = arith.mulf %146, %44 : vector<8x512xf32>
    %148 = arith.addf %144, %147 : vector<8x512xf32>
    %149 = arith.negf %10 : vector<8x512xf32>
    %150 = math.exp %149 : vector<8x512xf32>
    %cst_46 = arith.constant 1.000000e+00 : f32
    %151 = vector.broadcast %cst_46 : f32 to vector<8x512xf32>
    %152 = arith.addf %151, %150 : vector<8x512xf32>
    %153 = arith.divf %151, %152 : vector<8x512xf32>
    %154 = arith.mulf %10, %153 : vector<8x512xf32>
    %155 = arith.mulf %148, %154 : vector<8x512xf32>
    %c0_47 = arith.constant 0 : index
    %c0_48 = arith.constant 0 : index
    %156 = vector.load %arg14[%c0_47, %c0_48] : memref<512x256xf32, #tpu.memory_space<vmem>>, vector<512x256xf32>
    %cst_49 = arith.constant dense<0.000000e+00> : vector<8x256xf32>
    %157 = tpu.matmul %155, %156, %cst_49 {dimension_numbers = #tpu.dot_dimension_numbers<[1], [0], [0], [1], [0, 0, 1, 1], [], []>} : vector<8x512xf32>, vector<512x256xf32>, vector<8x256xf32> -> vector<8x256xf32>
    %c0_50 = arith.constant 0 : index
    %c0_51 = arith.constant 0 : index
    %c0_52 = arith.constant 0 : index
    %158 = vector.load %arg15[%c0_50, %c0_51, %c0_52] : memref<1x8x256xf32, #tpu.memory_space<vmem>>, vector<1x8x256xf32>
    %159 = vector.shape_cast %158 : vector<1x8x256xf32> to vector<8x256xf32>
    %160 = vector.shape_cast %157 : vector<8x256xf32> to vector<1x8x256xf32>
    tpu.vector_store %arg15[%c0_50, %c0_51, %c0_52], %160 {strides = array<i32>} : memref<1x8x256xf32, #tpu.memory_space<vmem>>, vector<1x8x256xf32>,
    return
  }
  func.func @transform_0(%arg0: i32) -> (i32, i32, i32) {
    %c0_i32 = arith.constant 0 : i32
    %c0_i32_0 = arith.constant 0 : i32
    %c0_i32_1 = arith.constant 0 : i32
    return %arg0, %c0_i32, %c0_i32_0 : i32, i32, i32
  }
  func.func @transform_1(%arg0: i32) -> (i32, i32) {
    %c0_i32 = arith.constant 0 : i32
    %c0_i32_0 = arith.constant 0 : i32
    %c0_i32_1 = arith.constant 0 : i32
    return %c0_i32, %c0_i32_0 : i32, i32
  }
  func.func @transform_2(%arg0: i32) -> (i32, i32) {
    %c0_i32 = arith.constant 0 : i32
    %c0_i32_0 = arith.constant 0 : i32
    %c0_i32_1 = arith.constant 0 : i32
    return %c0_i32, %c0_i32_0 : i32, i32
  }
  func.func @transform_3(%arg0: i32) -> (i32, i32) {
    %c0_i32 = arith.constant 0 : i32
    %c0_i32_0 = arith.constant 0 : i32
    %c0_i32_1 = arith.constant 0 : i32
    return %c0_i32, %c0_i32_0 : i32, i32
  }
  func.func @transform_4(%arg0: i32) -> (i32, i32) {
    %c0_i32 = arith.constant 0 : i32
    %c0_i32_0 = arith.constant 0 : i32
    %c0_i32_1 = arith.constant 0 : i32
    return %c0_i32, %c0_i32_0 : i32, i32
  }
  func.func @transform_5(%arg0: i32) -> (i32, i32) {
    %c0_i32 = arith.constant 0 : i32
    %c0_i32_0 = arith.constant 0 : i32
    %c0_i32_1 = arith.constant 0 : i32
    return %c0_i32, %c0_i32_0 : i32, i32
  }
  func.func @transform_6(%arg0: i32) -> (i32, i32) {
    %c0_i32 = arith.constant 0 : i32
    %c0_i32_0 = arith.constant 0 : i32
    %c0_i32_1 = arith.constant 0 : i32
    return %c0_i32, %c0_i32_0 : i32, i32
  }
  func.func @transform_7(%arg0: i32) -> (i32, i32) {
    %c0_i32 = arith.constant 0 : i32
    %c0_i32_0 = arith.constant 0 : i32
    %c0_i32_1 = arith.constant 0 : i32
    return %c0_i32, %c0_i32_0 : i32, i32
  }
  func.func @transform_8(%arg0: i32) -> (i32, i32) {
    %c0_i32 = arith.constant 0 : i32
    %c0_i32_0 = arith.constant 0 : i32
    %c0_i32_1 = arith.constant 0 : i32
    return %c0_i32, %c0_i32_0 : i32, i32
  }
  func.func @transform_9(%arg0: i32) -> (i32, i32) {
    %c0_i32 = arith.constant 0 : i32
    %c0_i32_0 = arith.constant 0 : i32
    %c0_i32_1 = arith.constant 0 : i32
    return %c0_i32, %c0_i32_0 : i32, i32
  }
  func.func @transform_10(%arg0: i32) -> (i32, i32) {
    %c0_i32 = arith.constant 0 : i32
    %c0_i32_0 = arith.constant 0 : i32
    %c0_i32_1 = arith.constant 0 : i32
    return %c0_i32, %c0_i32_0 : i32, i32
  }
  func.func @transform_11(%arg0: i32) -> (i32, i32) {
    %c0_i32 = arith.constant 0 : i32
    %c0_i32_0 = arith.constant 0 : i32
    %c0_i32_1 = arith.constant 0 : i32
    return %c0_i32, %c0_i32_0 : i32, i32
  }
  func.func @transform_12(%arg0: i32) -> (i32, i32) {
    %c0_i32 = arith.constant 0 : i32
    %c0_i32_0 = arith.constant 0 : i32
    %c0_i32_1 = arith.constant 0 : i32
    return %c0_i32, %c0_i32_0 : i32, i32
  }
  func.func @transform_13(%arg0: i32) -> (i32, i32) {
    %c0_i32 = arith.constant 0 : i32
    %c0_i32_0 = arith.constant 0 : i32
    %c0_i32_1 = arith.constant 0 : i32
    return %c0_i32, %c0_i32_0 : i32, i32
  }
  func.func @transform_14(%arg0: i32) -> (i32, i32, i32) {
    %c0_i32 = arith.constant 0 : i32
    %c0_i32_0 = arith.constant 0 : i32
    %c0_i32_1 = arith.constant 0 : i32
    return %arg0, %c0_i32, %c0_i32_0 : i32, i32, i32
  }
}

</mosaic_0001>

<llo_original>
// kernel: tpu_custom_call.1
$region0: #{tpu_custom_call.1}
  #allocation0 [shape = 'u32[]', space=smem, size = 0x4, offset = 0x4, fixed_abs, tag = 'smem constant byte address 0x4 - core index']
  #allocation1 [shape = 'u32[144,128]{1,0:T(1,128)}', space=vmem, size = 0x12000, scoped, tag = 'internal scratch']
  #allocation2 [shape = 'f32[16,512]{1,0:T(8,128)}', space=vmem, size = 0x8000, scoped, tag = 'scratch operand']
  %s0 = inlined_call_operand.vmem [shape: f32[8,8,3], index: 0, kind: input, shape index: {}]
  %s1 = inlined_call_operand.vmem [shape: f32[3,256], index: 1, kind: input, shape index: {}]
  %s2 = inlined_call_operand.vmem [shape: f32[1,256], index: 2, kind: input, shape index: {}]
  %s3 = inlined_call_operand.hbm [shape: f32[256,1024], index: 3, kind: input, shape index: {}]
  %s4 = inlined_call_operand.vmem [shape: f32[4,512], index: 4, kind: input, shape index: {}]
  %s5 = inlined_call_operand.vmem [shape: f32[1,512], index: 5, kind: input, shape index: {}]
  %s6 = inlined_call_operand.vmem [shape: f32[512,16], index: 6, kind: input, shape index: {}]
  %s7 = inlined_call_operand.vmem [shape: f32[512,16], index: 7, kind: input, shape index: {}]
  %s8 = inlined_call_operand.vmem [shape: f32[512,16], index: 8, kind: input, shape index: {}]
  %s9 = inlined_call_operand.vmem [shape: f32[16,512], index: 9, kind: input, shape index: {}]
  %s10 = inlined_call_operand.vmem [shape: f32[1,512], index: 10, kind: input, shape index: {}]
  %s11 = inlined_call_operand.vmem [shape: f32[16,512], index: 11, kind: input, shape index: {}]
  %s12 = inlined_call_operand.vmem [shape: f32[1,512], index: 12, kind: input, shape index: {}]
  %s13 = inlined_call_operand.vmem [shape: f32[512,256], index: 13, kind: input, shape index: {}]
  %s14 = inlined_call_operand.hbm [shape: f32[8,8,256], index: 14, kind: output, shape index: {}]
  %s15 = sld [smem:[#allocation0]]
  $region93: #{tpu_custom_call.1} parent=0
    _
  %s17 = ssub.s32 1, %s15
  %s18 = scalar_select 0, %s17, %s15
  $region1: #{tpu_custom_call.1} parent=0
    #allocation3 [shape = 'u8[1048576]{0}', space=vmem, size = 0x100000, scoped, tag = 'input window, operand 3, single buffered']
    #allocation4 [shape = 's32[2]{0}', space=sflag, size = 0x8, scoped, tag = 'scoped memory for tpu_custom_call.1']
    #allocation5 [shape = 's32[2]{0}', space=sflag, size = 0x8, scoped, tag = 'scoped memory for tpu_custom_call.1']
    #allocation6 [shape = 'u8[16384]{0}', space=vmem, size = 0x4000, scoped, tag = 'output window, operand 0']
    %19 = vsyncpa [#allocation4], 0
    %20 = vsyncpa [#allocation5], 0
    %s21 = scalar_lea.sflag [#allocation5], 1
    %22 = vsyncpa %s21, 0
    loop: start=0, step=1, limit=10
    $region2: #{tpu_custom_call.1} parent=1 // loop_pre_header
      _
    $region3: #{tpu_custom_call.1} parent=1 // loop_header
      %s24 = sphi 0, %s28
      %p25 = scmp.ge.s32.totalorder %s24, 10
      %s34 = sphi 0, %s36
      %s37 = sphi 0, %s34
      %s38 = sphi 0, %s37
      %s54 = sphi 0, %s38
      %s58 = sphi 0, %s58
      %s60 = sphi 0, %s58
      %s61 = sphi 0, %s60
      %s75 = sphi 0, %s61
      %s79 = sphi 0, %s79
      %s81 = sphi 0, %s79
      %s82 = sphi 0, %s81
      %s96 = sphi 0, %s82
      %s100 = sphi 0, %s100
      %s102 = sphi 0, %s100
      %s103 = sphi 0, %s102
      %s117 = sphi 0, %s103
      %s121 = sphi 0, %s121
      %s123 = sphi 0, %s121
      %s124 = sphi 0, %s123
      %s138 = sphi 0, %s124
      %s142 = sphi 0, %s142
      %s144 = sphi 0, %s142
      %s145 = sphi 0, %s144
      %s159 = sphi 0, %s145
      %s163 = sphi 0, %s163
      %s165 = sphi 0, %s163
      %s166 = sphi 0, %s165
      %s180 = sphi 0, %s166
      %s184 = sphi 0, %s184
      %s186 = sphi 0, %s184
      %s187 = sphi 0, %s186
      %s201 = sphi 0, %s187
      %s205 = sphi 0, %s205
      %s207 = sphi 0, %s205
      %s208 = sphi 0, %s207
      %s222 = sphi 0, %s208
      %s226 = sphi 0, %s226
      %s228 = sphi 0, %s226
      %s229 = sphi 0, %s228
      %s243 = sphi 0, %s229
      %s247 = sphi 0, %s247
      %s249 = sphi 0, %s247
      %s250 = sphi 0, %s249
      %s264 = sphi 0, %s250
      %s268 = sphi 0, %s268
      %s270 = sphi 0, %s268
      %s271 = sphi 0, %s270
      %s285 = sphi 0, %s271
      %s289 = sphi 0, %s289
      %s291 = sphi 0, %s289
      %s292 = sphi 0, %s291
      %s306 = sphi 0, %s292
      %s310 = sphi 0, %s310
      %s312 = sphi 0, %s310
      %s313 = sphi 0, %s312
      %s327 = sphi 0, %s313
      %s333 = sphi 0, %s335
      %s336 = sphi 0, %s333
      %s337 = sphi 0, %s336
      %s353 = sphi 0, %s337
    $region4: #{tpu_custom_call.1} parent=1 // loop_header_branch
      %27 = sbr.rel (%p25) target = $region8
    $region5: #{tpu_custom_call.1} parent=1 // loop_body
      %s29 = ssub.s32 %s24, 1
      %s30 = ssub.s32 %s24, 2
      %s31 = sadd.s32 %s24, 1
      %s32 = ssub.s32 %s24, %s31
      %p33 = scmp.eq.s32.totalorder %s32, 0
      %s35 = sadd.s32 %s34, 1
      %s36 = scalar_select %p33, %s34, %s35
      %p39 = pneg %p33
      %p40 = scmp.eq.s32.totalorder %s24, 7
      %p41 = por %p39, %p40
      %p42 = scmp.ne.s32.totalorder %s34, %s37
      %p43 = scmp.eq.s32.totalorder %s24, 0
      %p44 = por %p42, %p43
      %p45 = scmp.ne.s32.totalorder %s34, %s37
      %p46 = scmp.eq.s32.totalorder %s29, 7
      %p47 = por %p45, %p46
      %p48 = scmp.ne.s32.totalorder %s37, %s38
      %p49 = scmp.eq.s32.totalorder %s29, 0
      %p50 = por %p48, %p49
      %p51 = scmp.ne.s32.totalorder %s37, %s38
      %p52 = scmp.eq.s32.totalorder %s30, 7
      %p53 = por %p51, %p52
      %p55 = scmp.ne.s32.totalorder %s38, %s54
      %p56 = scmp.eq.s32.totalorder %s30, 0
      %p57 = por %p55, %p56
      %s59 = sadd.s32 %s58, 1
      %p62 = scmp.eq.s32.totalorder %s24, 7
      %p63 = scmp.ne.s32.totalorder %s58, %s60
      %p64 = scmp.eq.s32.totalorder %s24, 0
      %p65 = por %p63, %p64
      %p66 = scmp.ne.s32.totalorder %s58, %s60
      %p67 = scmp.eq.s32.totalorder %s29, 7
      %p68 = por %p66, %p67
      %p69 = scmp.ne.s32.totalorder %s60, %s61
      %p70 = scmp.eq.s32.totalorder %s29, 0
      %p71 = por %p69, %p70
      %p72 = scmp.ne.s32.totalorder %s60, %s61
      %p73 = scmp.eq.s32.totalorder %s30, 7
      %p74 = por %p72, %p73
      %p76 = scmp.ne.s32.totalorder %s61, %s75
      %p77 = scmp.eq.s32.totalorder %s30, 0
      %p78 = por %p76, %p77
      %s80 = sadd.s32 %s79, 1
      %p83 = scmp.eq.s32.totalorder %s24, 7
      %p84 = scmp.ne.s32.totalorder %s79, %s81
      %p85 = scmp.eq.s32.totalorder %s24, 0
      %p86 = por %p84, %p85
      %p87 = scmp.ne.s32.totalorder %s79, %s81
      %p88 = scmp.eq.s32.totalorder %s29, 7
      %p89 = por %p87, %p88
      %p90 = scmp.ne.s32.totalorder %s81, %s82
      %p91 = scmp.eq.s32.totalorder %s29, 0
      %p92 = por %p90, %p91
      %p93 = scmp.ne.s32.totalorder %s81, %s82
      %p94 = scmp.eq.s32.totalorder %s30, 7
      %p95 = por %p93, %p94
      %p97 = scmp.ne.s32.totalorder %s82, %s96
      %p98 = scmp.eq.s32.totalorder %s30, 0
      %p99 = por %p97, %p98
      %s101 = sadd.s32 %s100, 1
      %p104 = scmp.eq.s32.totalorder %s24, 7
      %p105 = scmp.ne.s32.totalorder %s100, %s102
      %p106 = scmp.eq.s32.totalorder %s24, 0
      %p107 = por %p105, %p106
      %p108 = scmp.ne.s32.totalorder %s100, %s102
      %p109 = scmp.eq.s32.totalorder %s29, 7
      %p110 = por %p108, %p109
      %p111 = scmp.ne.s32.totalorder %s102, %s103
      %p112 = scmp.eq.s32.totalorder %s29, 0
      %p113 = por %p111, %p112
      %p114 = scmp.ne.s32.totalorder %s102, %s103
      %p115 = scmp.eq.s32.totalorder %s30, 7
      %p116 = por %p114, %p115
      %p118 = scmp.ne.s32.totalorder %s103, %s117
      %p119 = scmp.eq.s32.totalorder %s30, 0
      %p120 = por %p118, %p119
      %s122 = sadd.s32 %s121, 1
      %p125 = scmp.eq.s32.totalorder %s24, 7
      %p126 = scmp.ne.s32.totalorder %s121, %s123
      %p127 = scmp.eq.s32.totalorder %s24, 0
      %p128 = por %p126, %p127
      %p129 = scmp.ne.s32.totalorder %s121, %s123
      %p130 = scmp.eq.s32.totalorder %s29, 7
      %p131 = por %p129, %p130
      %p132 = scmp.ne.s32.totalorder %s123, %s124
      %p133 = scmp.eq.s32.totalorder %s29, 0
      %p134 = por %p132, %p133
      %p135 = scmp.ne.s32.totalorder %s123, %s124
      %p136 = scmp.eq.s32.totalorder %s30, 7
      %p137 = por %p135, %p136
      %p139 = scmp.ne.s32.totalorder %s124, %s138
      %p140 = scmp.eq.s32.totalorder %s30, 0
      %p141 = por %p139, %p140
      %s143 = sadd.s32 %s142, 1
      %p146 = scmp.eq.s32.totalorder %s24, 7
      %p147 = scmp.ne.s32.totalorder %s142, %s144
      %p148 = scmp.eq.s32.totalorder %s24, 0
      %p149 = por %p147, %p148
      %p150 = scmp.ne.s32.totalorder %s142, %s144
      %p151 = scmp.eq.s32.totalorder %s29, 7
      %p152 = por %p150, %p151
      %p153 = scmp.ne.s32.totalorder %s144, %s145
      %p154 = scmp.eq.s32.totalorder %s29, 0
      %p155 = por %p153, %p154
      %p156 = scmp.ne.s32.totalorder %s144, %s145
      %p157 = scmp.eq.s32.totalorder %s30, 7
      %p158 = por %p156, %p157
      %p160 = scmp.ne.s32.totalorder %s145, %s159
      %p161 = scmp.eq.s32.totalorder %s30, 0
      %p162 = por %p160, %p161
      %s164 = sadd.s32 %s163, 1
      %p167 = scmp.eq.s32.totalorder %s24, 7
      %p168 = scmp.ne.s32.totalorder %s163, %s165
      %p169 = scmp.eq.s32.totalorder %s24, 0
      %p170 = por %p168, %p169
      %p171 = scmp.ne.s32.totalorder %s163, %s165
      %p172 = scmp.eq.s32.totalorder %s29, 7
      %p173 = por %p171, %p172
      %p174 = scmp.ne.s32.totalorder %s165, %s166
      %p175 = scmp.eq.s32.totalorder %s29, 0
      %p176 = por %p174, %p175
      %p177 = scmp.ne.s32.totalorder %s165, %s166
      %p178 = scmp.eq.s32.totalorder %s30, 7
      %p179 = por %p177, %p178
      %p181 = scmp.ne.s32.totalorder %s166, %s180
      %p182 = scmp.eq.s32.totalorder %s30, 0
      %p183 = por %p181, %p182
      %s185 = sadd.s32 %s184, 1
      %p188 = scmp.eq.s32.totalorder %s24, 7
      %p189 = scmp.ne.s32.totalorder %s184, %s186
      %p190 = scmp.eq.s32.totalorder %s24, 0
      %p191 = por %p189, %p190
      %p192 = scmp.ne.s32.totalorder %s184, %s186
      %p193 = scmp.eq.s32.totalorder %s29, 7
      %p194 = por %p192, %p193
      %p195 = scmp.ne.s32.totalorder %s186, %s187
      %p196 = scmp.eq.s32.totalorder %s29, 0
      %p197 = por %p195, %p196
      %p198 = scmp.ne.s32.totalorder %s186, %s187
      %p199 = scmp.eq.s32.totalorder %s30, 7
      %p200 = por %p198, %p199
      %p202 = scmp.ne.s32.totalorder %s187, %s201
      %p203 = scmp.eq.s32.totalorder %s30, 0
      %p204 = por %p202, %p203
      %s206 = sadd.s32 %s205, 1
      %p209 = scmp.eq.s32.totalorder %s24, 7
      %p210 = scmp.ne.s32.totalorder %s205, %s207
      %p211 = scmp.eq.s32.totalorder %s24, 0
      %p212 = por %p210, %p211
      %p213 = scmp.ne.s32.totalorder %s205, %s207
      %p214 = scmp.eq.s32.totalorder %s29, 7
      %p215 = por %p213, %p214
      %p216 = scmp.ne.s32.totalorder %s207, %s208
      %p217 = scmp.eq.s32.totalorder %s29, 0
      %p218 = por %p216, %p217
      %p219 = scmp.ne.s32.totalorder %s207, %s208
      %p220 = scmp.eq.s32.totalorder %s30, 7
      %p221 = por %p219, %p220
      %p223 = scmp.ne.s32.totalorder %s208, %s222
      %p224 = scmp.eq.s32.totalorder %s30, 0
      %p225 = por %p223, %p224
      %s227 = sadd.s32 %s226, 1
      %p230 = scmp.eq.s32.totalorder %s24, 7
      %p231 = scmp.ne.s32.totalorder %s226, %s228
      %p232 = scmp.eq.s32.totalorder %s24, 0
      %p233 = por %p231, %p232
      %p234 = scmp.ne.s32.totalorder %s226, %s228
      %p235 = scmp.eq.s32.totalorder %s29, 7
      %p236 = por %p234, %p235
      %p237 = scmp.ne.s32.totalorder %s228, %s229
      %p238 = scmp.eq.s32.totalorder %s29, 0
      %p239 = por %p237, %p238
      %p240 = scmp.ne.s32.totalorder %s228, %s229
      %p241 = scmp.eq.s32.totalorder %s30, 7
      %p242 = por %p240, %p241
      %p244 = scmp.ne.s32.totalorder %s229, %s243
      %p245 = scmp.eq.s32.totalorder %s30, 0
      %p246 = por %p244, %p245
      %s248 = sadd.s32 %s247, 1
      %p251 = scmp.eq.s32.totalorder %s24, 7
      %p252 = scmp.ne.s32.totalorder %s247, %s249
      %p253 = scmp.eq.s32.totalorder %s24, 0
      %p254 = por %p252, %p253
      %p255 = scmp.ne.s32.totalorder %s247, %s249
      %p256 = scmp.eq.s32.totalorder %s29, 7
      %p257 = por %p255, %p256
      %p258 = scmp.ne.s32.totalorder %s249, %s250
      %p259 = scmp.eq.s32.totalorder %s29, 0
      %p260 = por %p258, %p259
      %p261 = scmp.ne.s32.totalorder %s249, %s250
      %p262 = scmp.eq.s32.totalorder %s30, 7
      %p263 = por %p261, %p262
      %p265 = scmp.ne.s32.totalorder %s250, %s264
      %p266 = scmp.eq.s32.totalorder %s30, 0
      %p267 = por %p265, %p266
      %s269 = sadd.s32 %s268, 1
      %p272 = scmp.eq.s32.totalorder %s24, 7
      %p273 = scmp.ne.s32.totalorder %s268, %s270
      %p274 = scmp.eq.s32.totalorder %s24, 0
      %p275 = por %p273, %p274
      %p276 = scmp.ne.s32.totalorder %s268, %s270
      %p277 = scmp.eq.s32.totalorder %s29, 7
      %p278 = por %p276, %p277
      %p279 = scmp.ne.s32.totalorder %s270, %s271
      %p280 = scmp.eq.s32.totalorder %s29, 0
      %p281 = por %p279, %p280
      %p282 = scmp.ne.s32.totalorder %s270, %s271
      %p283 = scmp.eq.s32.totalorder %s30, 7
      %p284 = por %p282, %p283
      %p286 = scmp.ne.s32.totalorder %s271, %s285
      %p287 = scmp.eq.s32.totalorder %s30, 0
      %p288 = por %p286, %p287
      %s290 = sadd.s32 %s289, 1
      %p293 = scmp.eq.s32.totalorder %s24, 7
      %p294 = scmp.ne.s32.totalorder %s289, %s291
      %p295 = scmp.eq.s32.totalorder %s24, 0
      %p296 = por %p294, %p295
      %p297 = scmp.ne.s32.totalorder %s289, %s291
      %p298 = scmp.eq.s32.totalorder %s29, 7
      %p299 = por %p297, %p298
      %p300 = scmp.ne.s32.totalorder %s291, %s292
      %p301 = scmp.eq.s32.totalorder %s29, 0
      %p302 = por %p300, %p301
      %p303 = scmp.ne.s32.totalorder %s291, %s292
      %p304 = scmp.eq.s32.totalorder %s30, 7
      %p305 = por %p303, %p304
      %p307 = scmp.ne.s32.totalorder %s292, %s306
      %p308 = scmp.eq.s32.totalorder %s30, 0
      %p309 = por %p307, %p308
      %s311 = sadd.s32 %s310, 1
      %p314 = scmp.eq.s32.totalorder %s24, 7
      %p315 = scmp.ne.s32.totalorder %s310, %s312
      %p316 = scmp.eq.s32.totalorder %s24, 0
      %p317 = por %p315, %p316
      %p318 = scmp.ne.s32.totalorder %s310, %s312
      %p319 = scmp.eq.s32.totalorder %s29, 7
      %p320 = por %p318, %p319
      %p321 = scmp.ne.s32.totalorder %s312, %s313
      %p322 = scmp.eq.s32.totalorder %s29, 0
      %p323 = por %p321, %p322
      %p324 = scmp.ne.s32.totalorder %s312, %s313
      %p325 = scmp.eq.s32.totalorder %s30, 7
      %p326 = por %p324, %p325
      %p328 = scmp.ne.s32.totalorder %s313, %s327
      %p329 = scmp.eq.s32.totalorder %s30, 0
      %p330 = por %p328, %p329
      %s331 = ssub.s32 %s24, %s31
      %p332 = scmp.eq.s32.totalorder %s331, 0
      %s334 = sadd.s32 %s333, 1
      %s335 = scalar_select %p332, %s333, %s334
      %p338 = pneg %p332
      %p339 = scmp.eq.s32.totalorder %s24, 7
      %p340 = por %p338, %p339
      %p341 = scmp.ne.s32.totalorder %s333, %s336
      %p342 = scmp.eq.s32.totalorder %s24, 0
      %p343 = por %p341, %p342
      %p344 = scmp.ne.s32.totalorder %s333, %s336
      %p345 = scmp.eq.s32.totalorder %s29, 7
      %p346 = por %p344, %p345
      %p347 = scmp.ne.s32.totalorder %s336, %s337
      %p348 = scmp.eq.s32.totalorder %s29, 0
      %p349 = por %p347, %p348
      %p350 = scmp.ne.s32.totalorder %s336, %s337
      %p351 = scmp.eq.s32.totalorder %s30, 7
      %p352 = por %p350, %p351
      %p354 = scmp.ne.s32.totalorder %s337, %s353
      %p355 = scmp.eq.s32.totalorder %s30, 0
      %p356 = por %p354, %p355
      %p357 = scmp.le.s32.totalorder 1, %s24
      %p358 = scmp.lt.s32.totalorder %s24, 9
      %p359 = pnand %p357, %p358
      %p360 = pneg %p359
      // Predicated region
      $region9: #{tpu_custom_call.1} parent=5 // pred_check
        _
      $region10: #{tpu_custom_call.1} parent=5 // pred_check_branch
        %362 = sbr.rel (%p359) target = $region12
      $region11: #{tpu_custom_call.1} parent=5 // pred_region
        %s363 = ssub.s32 %s24, 1
        // Predicated region
        $region13: #{tpu_custom_call.1} parent=11 // pred_check
          %p364 = pneg %p71
        $region14: #{tpu_custom_call.1} parent=11 // pred_check_branch
          %366 = sbr.rel (%p364) target = $region16
        $region15: #{tpu_custom_call.1} parent=11 // pred_region
          _
        $region16: #{tpu_custom_call.1} parent=11 // pred_fallthru
          _
        // Predicated region
        $region17: #{tpu_custom_call.1} parent=11 // pred_check
          %p367 = pneg %p92
        $region18: #{tpu_custom_call.1} parent=11 // pred_check_branch
          %369 = sbr.rel (%p367) target = $region20
        $region19: #{tpu_custom_call.1} parent=11 // pred_region
          _
        $region20: #{tpu_custom_call.1} parent=11 // pred_fallthru
          _
        // Predicated region
        $region21: #{tpu_custom_call.1} parent=11 // pred_check
          %p370 = pneg %p113
        $region22: #{tpu_custom_call.1} parent=11 // pred_check_branch
          %372 = sbr.rel (%p370) target = $region24
        $region23: #{tpu_custom_call.1} parent=11 // pred_region
          %s374 = ssub.s32 32768, 32768
          %375 = vsyncadd [#allocation4], %s374
          %s376 = sshll.u32 [#allocation3], 4
          %s377 = int_to_ptr.vmem [resolvable:$true] %s376
          %382 = dma.hbm_to_vmem [thread:$0]  %s3, 32768, %s377, [#allocation4], 1024, 1024, 64
        $region24: #{tpu_custom_call.1} parent=11 // pred_fallthru
          _
        // Predicated region
        $region25: #{tpu_custom_call.1} parent=11 // pred_check
          %p383 = pneg %p134
        $region26: #{tpu_custom_call.1} parent=11 // pred_check_branch
          %385 = sbr.rel (%p383) target = $region28
        $region27: #{tpu_custom_call.1} parent=11 // pred_region
          _
        $region28: #{tpu_custom_call.1} parent=11 // pred_fallthru
          _
        // Predicated region
        $region29: #{tpu_custom_call.1} parent=11 // pred_check
          %p386 = pneg %p155
        $region30: #{tpu_custom_call.1} parent=11 // pred_check_branch
          %388 = sbr.rel (%p386) target = $region32
        $region31: #{tpu_custom_call.1} parent=11 // pred_region
          _
        $region32: #{tpu_custom_call.1} parent=11 // pred_fallthru
          _
        // Predicated region
        $region33: #{tpu_custom_call.1} parent=11 // pred_check
          %p389 = pneg %p176
        $region34: #{tpu_custom_call.1} parent=11 // pred_check_branch
          %391 = sbr.rel (%p389) target = $region36
        $region35: #{tpu_custom_call.1} parent=11 // pred_region
          _
        $region36: #{tpu_custom_call.1} parent=11 // pred_fallthru
          _
        // Predicated region
        $region37: #{tpu_custom_call.1} parent=11 // pred_check
          %p392 = pneg %p197
        $region38: #{tpu_custom_call.1} parent=11 // pred_check_branch
          %394 = sbr.rel (%p392) target = $region40
        $region39: #{tpu_custom_call.1} parent=11 // pred_region
          _
        $region40: #{tpu_custom_call.1} parent=11 // pred_fallthru
          _
        // Predicated region
        $region41: #{tpu_custom_call.1} parent=11 // pred_check
          %p395 = pneg %p218
        $region42: #{tpu_custom_call.1} parent=11 // pred_check_branch
          %397 = sbr.rel (%p395) target = $region44
        $region43: #{tpu_custom_call.1} parent=11 // pred_region
          _
        $region44: #{tpu_custom_call.1} parent=11 // pred_fallthru
          _
        // Predicated region
        $region45: #{tpu_custom_call.1} parent=11 // pred_check
          %p398 = pneg %p239
        $region46: #{tpu_custom_call.1} parent=11 // pred_check_branch
          %400 = sbr.rel (%p398) target = $region48
        $region47: #{tpu_custom_call.1} parent=11 // pred_region
          _
        $region48: #{tpu_custom_call.1} parent=11 // pred_fallthru
          _
        // Predicated region
        $region49: #{tpu_custom_call.1} parent=11 // pred_check
          %p401 = pneg %p260
        $region50: #{tpu_custom_call.1} parent=11 // pred_check_branch
          %403 = sbr.rel (%p401) target = $region52
        $region51: #{tpu_custom_call.1} parent=11 // pred_region
          _
        $region52: #{tpu_custom_call.1} parent=11 // pred_fallthru
          _
        // Predicated region
        $region53: #{tpu_custom_call.1} parent=11 // pred_check
          %p404 = pneg %p281
        $region54: #{tpu_custom_call.1} parent=11 // pred_check_branch
          %406 = sbr.rel (%p404) target = $region56
        $region55: #{tpu_custom_call.1} parent=11 // pred_region
          _
        $region56: #{tpu_custom_call.1} parent=11 // pred_fallthru
          _
        // Predicated region
        $region57: #{tpu_custom_call.1} parent=11 // pred_check
          %p407 = pneg %p302
        $region58: #{tpu_custom_call.1} parent=11 // pred_check_branch
          %409 = sbr.rel (%p407) target = $region60
        $region59: #{tpu_custom_call.1} parent=11 // pred_region
          _
        $region60: #{tpu_custom_call.1} parent=11 // pred_fallthru
          _
        // Predicated region
        $region61: #{tpu_custom_call.1} parent=11 // pred_check
          %p410 = pneg %p323
        $region62: #{tpu_custom_call.1} parent=11 // pred_check_branch
          %412 = sbr.rel (%p410) target = $region64
        $region63: #{tpu_custom_call.1} parent=11 // pred_region
          _
        $region64: #{tpu_custom_call.1} parent=11 // pred_fallthru
          _
      $region12: #{tpu_custom_call.1} parent=5 // pred_fallthru
        _
      %p413 = scmp.lt.s32.totalorder %s24, 8
      // Predicated region
      $region65: #{tpu_custom_call.1} parent=5 // pred_check
        %p414 = pneg %p413
      $region66: #{tpu_custom_call.1} parent=5 // pred_check_branch
        %416 = sbr.rel (%p414) target = $region68
      $region67: #{tpu_custom_call.1} parent=5 // pred_region
        // Predicated region
        $region69: #{tpu_custom_call.1} parent=67 // pred_check
          %p417 = pneg %p44
        $region70: #{tpu_custom_call.1} parent=67 // pred_check_branch
          %419 = sbr.rel (%p417) target = $region72
        $region71: #{tpu_custom_call.1} parent=67 // pred_region
          %p420 = scmp.lt.s32.totalorder %s24, 7
          %s421 = scalar_select %p420, %s24, 7
          %s422 = smul.addr %s421, 8
          %s423 = scalar_lea.vmem %s0, %s422
        $region72: #{tpu_custom_call.1} parent=67 // pred_fallthru
          _
      $region68: #{tpu_custom_call.1} parent=5 // pred_fallthru
        _
      %p424 = scmp.le.s32.totalorder 1, %s24
      %p425 = scmp.lt.s32.totalorder %s24, 9
      %p426 = pnand %p424, %p425
      %p427 = pneg %p426
      // Predicated region
      $region73: #{tpu_custom_call.1} parent=5 // pred_check
        _
      $region74: #{tpu_custom_call.1} parent=5 // pred_check_branch
        %429 = sbr.rel (%p426) target = $region76
      $region75: #{tpu_custom_call.1} parent=5 // pred_region
        %s430 = ssub.s32 %s24, 1
        // Predicated region
        $region77: #{tpu_custom_call.1} parent=75 // pred_check
          %p431 = pneg %p113
        $region78: #{tpu_custom_call.1} parent=75 // pred_check_branch
          %433 = sbr.rel (%p431) target = $region80
        $region79: #{tpu_custom_call.1} parent=75 // pred_region
          %434 = dma.done [#allocation4], 32768
        $region80: #{tpu_custom_call.1} parent=75 // pred_fallthru
          _
        %p435 = scmp.lt.s32.totalorder %s29, 7
        %s436 = scalar_select %p435, %s29, 7
        %s437 = smul.addr %s436, 8
        %s438 = scalar_lea.vmem %s0, %s437
        %p439 = pneg %p50
        %p440 = pneg %p47
        %p441 = pneg %p71
        %p442 = pneg %p68
        %p443 = pneg %p92
        %p444 = pneg %p89
        %p445 = pneg %p113
        %p446 = pneg %p110
        %p447 = pneg %p134
        %p448 = pneg %p131
        %p449 = pneg %p155
        %p450 = pneg %p152
        %p451 = pneg %p176
        %p452 = pneg %p173
        %p453 = pneg %p197
        %p454 = pneg %p194
        %p455 = pneg %p218
        %p456 = pneg %p215
        %p457 = pneg %p239
        %p458 = pneg %p236
        %p459 = pneg %p260
        %p460 = pneg %p257
        %p461 = pneg %p281
        %p462 = pneg %p278
        %p463 = pneg %p302
        %p464 = pneg %p299
        %p465 = pneg %p323
        %p466 = pneg %p320
        %p467 = pneg %p349
        %p468 = pneg %p346
        %s469 = sand.u32 %s336, 1
        %s470 = scalar_lea.sflag [#allocation5], %s469
        %s471 = sand.u32 %s336, 1
        %s472 = smul.addr %s471, 16
        %s473 = scalar_lea.vmem [#allocation6], %s472
        %p474 = scmp.lt.s32.totalorder %s29, 7
        %s475 = scalar_select %p474, %s29, 7
        %s476 = smul.addr %s475, 8
        %s477 = scalar_lea.vmem %s0, %s476
        %v478 = vld [vmem:[%s477] sm:$0xff]
        %v479 = vld [vmem:[%s1] sm:$0x77]
        %v480 = vld [vmem:[%s2] sm:$0x3]
        %v482 = vlaneseq
        %v483 = vshrl.u32 %v482, 7
        %v484 = vsub.s32 0, %v483
        %v485 = vrot.slane %v480, %v484
        %v486 = vlaneseq
        %v487 = vshrl.u32 %v486, 7
        %v488 = vsub.s32 1, %v487
        %v489 = vrot.slane %v480, %v488
        %v493 = vcombine.high %v479, %v479
        %vm494 = vcmask 23552
        %v496 = vsel %vm494, %v478, 0
        %vm498 = vcmask 1042432
        %v499 = vsel %vm498, %v479, 0
        %v501 = vsel %vm498, %v493, 0
        %503 = vmatprep.subr.mxu0 0.0
        %504 = vmatpush1.msra.mxu0 0.0
        %505 = vmatprep.subr.mxu0 0.0
        %506 = vmatpush1.msra.mxu0 0.0
        %507 = vmatprep.subr.mxu0 0.0
        %508 = vmatpush1.msra.mxu0 0.0
        %509 = vmatprep.subr.mxu0 0.0
        %510 = vmatpush1.msra.mxu0 0.0
        %511 = vmatprep.subr.mxu0 0.0
        %512 = vmatpush1.msra.mxu0 0.0
        %513 = vmatprep.subr.mxu0 0.0
        %514 = vmatpush1.msra.mxu0 0.0
        %515 = vmatprep.subr.mxu0 0.0
        %516 = vmatpush1.msra.mxu0 0.0
        %517 = vmatprep.subr.mxu0 0.0
        %518 = vmatpush1.msra.mxu0 0.0
        %519 = vmatprep.subr.mxu0 0.0
        %520 = vmatpush1.msra.mxu0 0.0
        %521 = vmatprep.subr.mxu0 0.0
        %522 = vmatpush1.msra.mxu0 0.0
        %523 = vmatprep.subr.mxu0 0.0
        %524 = vmatpush1.msra.mxu0 0.0
        %525 = vmatprep.subr.mxu0 0.0
        %526 = vmatpush1.msra.mxu0 0.0
        %527 = vmatprep.subr.mxu0 0.0
        %528 = vmatpush1.msra.mxu0 0.0
        %529 = vmatprep.subr.mxu0 0.0
        %530 = vmatpush1.msra.mxu0 0.0
        %531 = vmatprep.subr.mxu0 0.0
        %532 = vmatpush1.msra.mxu0 0.0
        %533 = vmatprep.subr.mxu0 %v501
        %534 = vmatpush1.msra.mxu0 %v499
        %535 = vmatprep.subr.mxu0 0.0
        %536 = vmatpush2.msra.mxu0 0.0
        %537 = vmatprep.subr.mxu0 0.0
        %538 = vmatpush2.msra.mxu0 0.0
        %539 = vmatprep.subr.mxu0 0.0
        %540 = vmatpush2.msra.mxu0 0.0
        %541 = vmatprep.subr.mxu0 0.0
        %542 = vmatpush2.msra.mxu0 0.0
        %543 = vmatprep.subr.mxu0 0.0
        %544 = vmatpush2.msra.mxu0 0.0
        %545 = vmatprep.subr.mxu0 0.0
        %546 = vmatpush2.msra.mxu0 0.0
        %547 = vmatprep.subr.mxu0 0.0
        %548 = vmatpush2.msra.mxu0 0.0
        %549 = vmatprep.subr.mxu0 0.0
        %550 = vmatpush2.msra.mxu0 0.0
        %551 = vmatprep.subr.mxu0 0.0
        %552 = vmatpush2.msra.mxu0 0.0
        %553 = vmatprep.subr.mxu0 0.0
        %554 = vmatpush2.msra.mxu0 0.0
        %555 = vmatprep.subr.mxu0 0.0
        %556 = vmatpush2.msra.mxu0 0.0
        %557 = vmatprep.subr.mxu0 0.0
        %558 = vmatpush2.msra.mxu0 0.0
        %559 = vmatprep.subr.mxu0 0.0
        %560 = vmatpush2.msra.mxu0 0.0
        %561 = vmatprep.subr.mxu0 0.0
        %562 = vmatpush2.msra.mxu0 0.0
        %563 = vmatprep.subr.mxu0 0.0
        %564 = vmatpush2.msra.mxu0 0.0
        %565 = vmatprep.subr.mxu0 0.0
        %566 = vmatpush2.msra.mxu0 0.0
        %567 = vmatprep.mubr.f32.mxu0 0.0
        %568 = vmatmul.mubr.f32.gmra.mxu0 %v496
        %v569 = vpop.f32.mrf.mxu0
        %v570 = vadd.f32 %v485, %v569
        %v571 = vpop.f32.mrf.mxu0
        %v572 = vadd.f32 %v489, %v571
        %573 = vdwg.mxu0
        %v574 = vld [vmem:[#allocation3] sm:$0xff]
        %v575 = vld [vmem:[#allocation3 + $0x8] sm:$0xff]
        %v576 = vld [vmem:[#allocation3 + $0x10] sm:$0xff]
        %v577 = vld [vmem:[#allocation3 + $0x18] sm:$0xff]
        %v578 = vld [vmem:[#allocation3 + $0x20] sm:$0xff]
        %v579 = vld [vmem:[#allocation3 + $0x28] sm:$0xff]
        %v580 = vld [vmem:[#allocation3 + $0x30] sm:$0xff]
        %v581 = vld [vmem:[#allocation3 + $0x38] sm:$0xff]
        %v582 = vld [vmem:[#allocation3 + $0x40] sm:$0xff]
        %v583 = vld [vmem:[#allocation3 + $0x48] sm:$0xff]
        %v584 = vld [vmem:[#allocation3 + $0x50] sm:$0xff]
        %v585 = vld [vmem:[#allocation3 + $0x58] sm:$0xff]
        %v586 = vld [vmem:[#allocation3 + $0x60] sm:$0xff]
        %v587 = vld [vmem:[#allocation3 + $0x68] sm:$0xff]
        %v588 = vld [vmem:[#allocation3 + $0x70] sm:$0xff]
        %v589 = vld [vmem:[#allocation3 + $0x78] sm:$0xff]
        %v590 = vld [vmem:[#allocation3 + $0x80] sm:$0xff]
        %v591 = vld [vmem:[#allocation3 + $0x88] sm:$0xff]
        %v592 = vld [vmem:[#allocation3 + $0x90] sm:$0xff]
        %v593 = vld [vmem:[#allocation3 + $0x98] sm:$0xff]
        %v594 = vld [vmem:[#allocation3 + $0xa0] sm:$0xff]
        %v595 = vld [vmem:[#allocation3 + $0xa8] sm:$0xff]
        %v596 = vld [vmem:[#allocation3 + $0xb0] sm:$0xff]
        %v597 = vld [vmem:[#allocation3 + $0xb8] sm:$0xff]
        %v598 = vld [vmem:[#allocation3 + $0xc0] sm:$0xff]
        %v599 = vld [vmem:[#allocation3 + $0xc8] sm:$0xff]
        %v600 = vld [vmem:[#allocation3 + $0xd0] sm:$0xff]
        %v601 = vld [vmem:[#allocation3 + $0xd8] sm:$0xff]
        %v602 = vld [vmem:[#allocation3 + $0xe0] sm:$0xff]
        %v603 = vld [vmem:[#allocation3 + $0xe8] sm:$0xff]
        %v604 = vld [vmem:[#allocation3 + $0xf0] sm:$0xff]
        %v605 = vld [vmem:[#allocation3 + $0xf8] sm:$0xff]
        %v606 = vld [vmem:[#allocation3 + $0x100] sm:$0xff]
        %v607 = vld [vmem:[#allocation3 + $0x108] sm:$0xff]
        %v608 = vld [vmem:[#allocation3 + $0x110] sm:$0xff]
        %v609 = vld [vmem:[#allocation3 + $0x118] sm:$0xff]
        %v610 = vld [vmem:[#allocation3 + $0x120] sm:$0xff]
        %v611 = vld [vmem:[#allocation3 + $0x128] sm:$0xff]
        %v612 = vld [vmem:[#allocation3 + $0x130] sm:$0xff]
        %v613 = vld [vmem:[#allocation3 + $0x138] sm:$0xff]
        %v614 = vld [vmem:[#allocation3 + $0x140] sm:$0xff]
        %v615 = vld [vmem:[#allocation3 + $0x148] sm:$0xff]
        %v616 = vld [vmem:[#allocation3 + $0x150] sm:$0xff]
        %v617 = vld [vmem:[#allocation3 + $0x158] sm:$0xff]
        %v618 = vld [vmem:[#allocation3 + $0x160] sm:$0xff]
        %v619 = vld [vmem:[#allocation3 + $0x168] sm:$0xff]
        %v620 = vld [vmem:[#allocation3 + $0x170] sm:$0xff]
        %v621 = vld [vmem:[#allocation3 + $0x178] sm:$0xff]
        %v622 = vld [vmem:[#allocation3 + $0x180] sm:$0xff]
        %v623 = vld [vmem:[#allocation3 + $0x188] sm:$0xff]
        %v624 = vld [vmem:[#allocation3 + $0x190] sm:$0xff]
        %v625 = vld [vmem:[#allocation3 + $0x198] sm:$0xff]
        %v626 = vld [vmem:[#allocation3 + $0x1a0] sm:$0xff]
        %v627 = vld [vmem:[#allocation3 + $0x1a8] sm:$0xff]
        %v628 = vld [vmem:[#allocation3 + $0x1b0] sm:$0xff]
        %v629 = vld [vmem:[#allocation3 + $0x1b8] sm:$0xff]
        %v630 = vld [vmem:[#allocation3 + $0x1c0] sm:$0xff]
        %v631 = vld [vmem:[#allocation3 + $0x1c8] sm:$0xff]
        %v632 = vld [vmem:[#allocation3 + $0x1d0] sm:$0xff]
        %v633 = vld [vmem:[#allocation3 + $0x1d8] sm:$0xff]
        %v634 = vld [vmem:[#allocation3 + $0x1e0] sm:$0xff]
        %v635 = vld [vmem:[#allocation3 + $0x1e8] sm:$0xff]
        %v636 = vld [vmem:[#allocation3 + $0x1f0] sm:$0xff]
        %v637 = vld [vmem:[#allocation3 + $0x1f8] sm:$0xff]
        %v638 = vld [vmem:[#allocation3 + $0x200] sm:$0xff]
        %v639 = vld [vmem:[#allocation3 + $0x208] sm:$0xff]
        %v640 = vld [vmem:[#allocation3 + $0x210] sm:$0xff]
        %v641 = vld [vmem:[#allocation3 + $0x218] sm:$0xff]
        %v642 = vld [vmem:[#allocation3 + $0x220] sm:$0xff]
        %v643 = vld [vmem:[#allocation3 + $0x228] sm:$0xff]
        %v644 = vld [vmem:[#allocation3 + $0x230] sm:$0xff]
        %v645 = vld [vmem:[#allocation3 + $0x238] sm:$0xff]
        %v646 = vld [vmem:[#allocation3 + $0x240] sm:$0xff]
        %v647 = vld [vmem:[#allocation3 + $0x248] sm:$0xff]
        %v648 = vld [vmem:[#allocation3 + $0x250] sm:$0xff]
        %v649 = vld [vmem:[#allocation3 + $0x258] sm:$0xff]
        %v650 = vld [vmem:[#allocation3 + $0x260] sm:$0xff]
        %v651 = vld [vmem:[#allocation3 + $0x268] sm:$0xff]
        %v652 = vld [vmem:[#allocation3 + $0x270] sm:$0xff]
        %v653 = vld [vmem:[#allocation3 + $0x278] sm:$0xff]
        %v654 = vld [vmem:[#allocation3 + $0x280] sm:$0xff]
        %v655 = vld [vmem:[#allocation3 + $0x288] sm:$0xff]
        %v656 = vld [vmem:[#allocation3 + $0x290] sm:$0xff]
        %v657 = vld [vmem:[#allocation3 + $0x298] sm:$0xff]
        %v658 = vld [vmem:[#allocation3 + $0x2a0] sm:$0xff]
        %v659 = vld [vmem:[#allocation3 + $0x2a8] sm:$0xff]
        %v660 = vld [vmem:[#allocation3 + $0x2b0] sm:$0xff]
        %v661 = vld [vmem:[#allocation3 + $0x2b8] sm:$0xff]
        %v662 = vld [vmem:[#allocation3 + $0x2c0] sm:$0xff]
        %v663 = vld [vmem:[#allocation3 + $0x2c8] sm:$0xff]
        %v664 = vld [vmem:[#allocation3 + $0x2d0] sm:$0xff]
        %v665 = vld [vmem:[#allocation3 + $0x2d8] sm:$0xff]
        %v666 = vld [vmem:[#allocation3 + $0x2e0] sm:$0xff]
        %v667 = vld [vmem:[#allocation3 + $0x2e8] sm:$0xff]
        %v668 = vld [vmem:[#allocation3 + $0x2f0] sm:$0xff]
        %v669 = vld [vmem:[#allocation3 + $0x2f8] sm:$0xff]
        %v670 = vld [vmem:[#allocation3 + $0x300] sm:$0xff]
        %v671 = vld [vmem:[#allocation3 + $0x308] sm:$0xff]
        %v672 = vld [vmem:[#allocation3 + $0x310] sm:$0xff]
        %v673 = vld [vmem:[#allocation3 + $0x318] sm:$0xff]
        %v674 = vld [vmem:[#allocation3 + $0x320] sm:$0xff]
        %v675 = vld [vmem:[#allocation3 + $0x328] sm:$0xff]
        %v676 = vld [vmem:[#allocation3 + $0x330] sm:$0xff]
        %v677 = vld [vmem:[#allocation3 + $0x338] sm:$0xff]
        %v678 = vld [vmem:[#allocation3 + $0x340] sm:$0xff]
        %v679 = vld [vmem:[#allocation3 + $0x348] sm:$0xff]
        %v680 = vld [vmem:[#allocation3 + $0x350] sm:$0xff]
        %v681 = vld [vmem:[#allocation3 + $0x358] sm:$0xff]
        %v682 = vld [vmem:[#allocation3 + $0x360] sm:$0xff]
        %v683 = vld [vmem:[#allocation3 + $0x368] sm:$0xff]
        %v684 = vld [vmem:[#allocation3 + $0x370] sm:$0xff]
        %v685 = vld [vmem:[#allocation3 + $0x378] sm:$0xff]
        %v686 = vld [vmem:[#allocation3 + $0x380] sm:$0xff]
        %v687 = vld [vmem:[#allocation3 + $0x388] sm:$0xff]
        %v688 = vld [vmem:[#allocation3 + $0x390] sm:$0xff]
        %v689 = vld [vmem:[#allocation3 + $0x398] sm:$0xff]
        %v690 = vld [vmem:[#allocation3 + $0x3a0] sm:$0xff]
        %v691 = vld [vmem:[#allocation3 + $0x3a8] sm:$0xff]
        %v692 = vld [vmem:[#allocation3 + $0x3b0] sm:$0xff]
        %v693 = vld [vmem:[#allocation3 + $0x3b8] sm:$0xff]
        %v694 = vld [vmem:[#allocation3 + $0x3c0] sm:$0xff]
        %v695 = vld [vmem:[#allocation3 + $0x3c8] sm:$0xff]
        %v696 = vld [vmem:[#allocation3 + $0x3d0] sm:$0xff]
        %v697 = vld [vmem:[#allocation3 + $0x3d8] sm:$0xff]
        %v698 = vld [vmem:[#allocation3 + $0x3e0] sm:$0xff]
        %v699 = vld [vmem:[#allocation3 + $0x3e8] sm:$0xff]
        %v700 = vld [vmem:[#allocation3 + $0x3f0] sm:$0xff]
        %v701 = vld [vmem:[#allocation3 + $0x3f8] sm:$0xff]
        %v702 = vld [vmem:[#allocation3 + $0x400] sm:$0xff]
        %v703 = vld [vmem:[#allocation3 + $0x408] sm:$0xff]
        %v704 = vld [vmem:[#allocation3 + $0x410] sm:$0xff]
        %v705 = vld [vmem:[#allocation3 + $0x418] sm:$0xff]
        %v706 = vld [vmem:[#allocation3 + $0x420] sm:$0xff]
        %v707 = vld [vmem:[#allocation3 + $0x428] sm:$0xff]
        %v708 = vld [vmem:[#allocation3 + $0x430] sm:$0xff]
        %v709 = vld [vmem:[#allocation3 + $0x438] sm:$0xff]
        %v710 = vld [vmem:[#allocation3 + $0x440] sm:$0xff]
        %v711 = vld [vmem:[#allocation3 + $0x448] sm:$0xff]
        %v712 = vld [vmem:[#allocation3 + $0x450] sm:$0xff]
        %v713 = vld [vmem:[#allocation3 + $0x458] sm:$0xff]
        %v714 = vld [vmem:[#allocation3 + $0x460] sm:$0xff]
        %v715 = vld [vmem:[#allocation3 + $0x468] sm:$0xff]
        %v716 = vld [vmem:[#allocation3 + $0x470] sm:$0xff]
        %v717 = vld [vmem:[#allocation3 + $0x478] sm:$0xff]
        %v718 = vld [vmem:[#allocation3 + $0x480] sm:$0xff]
        %v719 = vld [vmem:[#allocation3 + $0x488] sm:$0xff]
        %v720 = vld [vmem:[#allocation3 + $0x490] sm:$0xff]
        %v721 = vld [vmem:[#allocation3 + $0x498] sm:$0xff]
        %v722 = vld [vmem:[#allocation3 + $0x4a0] sm:$0xff]
        %v723 = vld [vmem:[#allocation3 + $0x4a8] sm:$0xff]
        %v724 = vld [vmem:[#allocation3 + $0x4b0] sm:$0xff]
        %v725 = vld [vmem:[#allocation3 + $0x4b8] sm:$0xff]
        %v726 = vld [vmem:[#allocation3 + $0x4c0] sm:$0xff]
        %v727 = vld [vmem:[#allocation3 + $0x4c8] sm:$0xff]
        %v728 = vld [vmem:[#allocation3 + $0x4d0] sm:$0xff]
        %v729 = vld [vmem:[#allocation3 + $0x4d8] sm:$0xff]
        %v730 = vld [vmem:[#allocation3 + $0x4e0] sm:$0xff]
        %v731 = vld [vmem:[#allocation3 + $0x4e8] sm:$0xff]
        %v732 = vld [vmem:[#allocation3 + $0x4f0] sm:$0xff]
        %v733 = vld [vmem:[#allocation3 + $0x4f8] sm:$0xff]
        %v734 = vld [vmem:[#allocation3 + $0x500] sm:$0xff]
        %v735 = vld [vmem:[#allocation3 + $0x508] sm:$0xff]
        %v736 = vld [vmem:[#allocation3 + $0x510] sm:$0xff]
        %v737 = vld [vmem:[#allocation3 + $0x518] sm:$0xff]
        %v738 = vld [vmem:[#allocation3 + $0x520] sm:$0xff]
        %v739 = vld [vmem:[#allocation3 + $0x528] sm:$0xff]
        %v740 = vld [vmem:[#allocation3 + $0x530] sm:$0xff]
        %v741 = vld [vmem:[#allocation3 + $0x538] sm:$0xff]
        %v742 = vld [vmem:[#allocation3 + $0x540] sm:$0xff]
        %v743 = vld [vmem:[#allocation3 + $0x548] sm:$0xff]
        %v744 = vld [vmem:[#allocation3 + $0x550] sm:$0xff]
        %v745 = vld [vmem:[#allocation3 + $0x558] sm:$0xff]
        %v746 = vld [vmem:[#allocation3 + $0x560] sm:$0xff]
        %v747 = vld [vmem:[#allocation3 + $0x568] sm:$0xff]
        %v748 = vld [vmem:[#allocation3 + $0x570] sm:$0xff]
        %v749 = vld [vmem:[#allocation3 + $0x578] sm:$0xff]
        %v750 = vld [vmem:[#allocation3 + $0x580] sm:$0xff]
        %v751 = vld [vmem:[#allocation3 + $0x588] sm:$0xff]
        %v752 = vld [vmem:[#allocation3 + $0x590] sm:$0xff]
        %v753 = vld [vmem:[#allocation3 + $0x598] sm:$0xff]
        %v754 = vld [vmem:[#allocation3 + $0x5a0] sm:$0xff]
        %v755 = vld [vmem:[#allocation3 + $0x5a8] sm:$0xff]
        %v756 = vld [vmem:[#allocation3 + $0x5b0] sm:$0xff]
        %v757 = vld [vmem:[#allocation3 + $0x5b8] sm:$0xff]
        %v758 = vld [vmem:[#allocation3 + $0x5c0] sm:$0xff]
        %v759 = vld [vmem:[#allocation3 + $0x5c8] sm:$0xff]
        %v760 = vld [vmem:[#allocation3 + $0x5d0] sm:$0xff]
        %v761 = vld [vmem:[#allocation3 + $0x5d8] sm:$0xff]
        %v762 = vld [vmem:[#allocation3 + $0x5e0] sm:$0xff]
        %v763 = vld [vmem:[#allocation3 + $0x5e8] sm:$0xff]
        %v764 = vld [vmem:[#allocation3 + $0x5f0] sm:$0xff]
        %v765 = vld [vmem:[#allocation3 + $0x5f8] sm:$0xff]
        %v766 = vld [vmem:[#allocation3 + $0x600] sm:$0xff]
        %v767 = vld [vmem:[#allocation3 + $0x608] sm:$0xff]
        %v768 = vld [vmem:[#allocation3 + $0x610] sm:$0xff]
        %v769 = vld [vmem:[#allocation3 + $0x618] sm:$0xff]
        %v770 = vld [vmem:[#allocation3 + $0x620] sm:$0xff]
        %v771 = vld [vmem:[#allocation3 + $0x628] sm:$0xff]
        %v772 = vld [vmem:[#allocation3 + $0x630] sm:$0xff]
        %v773 = vld [vmem:[#allocation3 + $0x638] sm:$0xff]
        %v774 = vld [vmem:[#allocation3 + $0x640] sm:$0xff]
        %v775 = vld [vmem:[#allocation3 + $0x648] sm:$0xff]
        %v776 = vld [vmem:[#allocation3 + $0x650] sm:$0xff]
        %v777 = vld [vmem:[#allocation3 + $0x658] sm:$0xff]
        %v778 = vld [vmem:[#allocation3 + $0x660] sm:$0xff]
        %v779 = vld [vmem:[#allocation3 + $0x668] sm:$0xff]
        %v780 = vld [vmem:[#allocation3 + $0x670] sm:$0xff]
        %v781 = vld [vmem:[#allocation3 + $0x678] sm:$0xff]
        %v782 = vld [vmem:[#allocation3 + $0x680] sm:$0xff]
        %v783 = vld [vmem:[#allocation3 + $0x688] sm:$0xff]
        %v784 = vld [vmem:[#allocation3 + $0x690] sm:$0xff]
        %v785 = vld [vmem:[#allocation3 + $0x698] sm:$0xff]
        %v786 = vld [vmem:[#allocation3 + $0x6a0] sm:$0xff]
        %v787 = vld [vmem:[#allocation3 + $0x6a8] sm:$0xff]
        %v788 = vld [vmem:[#allocation3 + $0x6b0] sm:$0xff]
        %v789 = vld [vmem:[#allocation3 + $0x6b8] sm:$0xff]
        %v790 = vld [vmem:[#allocation3 + $0x6c0] sm:$0xff]
        %v791 = vld [vmem:[#allocation3 + $0x6c8] sm:$0xff]
        %v792 = vld [vmem:[#allocation3 + $0x6d0] sm:$0xff]
        %v793 = vld [vmem:[#allocation3 + $0x6d8] sm:$0xff]
        %v794 = vld [vmem:[#allocation3 + $0x6e0] sm:$0xff]
        %v795 = vld [vmem:[#allocation3 + $0x6e8] sm:$0xff]
        %v796 = vld [vmem:[#allocation3 + $0x6f0] sm:$0xff]
        %v797 = vld [vmem:[#allocation3 + $0x6f8] sm:$0xff]
        %v798 = vld [vmem:[#allocation3 + $0x700] sm:$0xff]
        %v799 = vld [vmem:[#allocation3 + $0x708] sm:$0xff]
        %v800 = vld [vmem:[#allocation3 + $0x710] sm:$0xff]
        %v801 = vld [vmem:[#allocation3 + $0x718] sm:$0xff]
        %v802 = vld [vmem:[#allocation3 + $0x720] sm:$0xff]
        %v803 = vld [vmem:[#allocation3 + $0x728] sm:$0xff]
        %v804 = vld [vmem:[#allocation3 + $0x730] sm:$0xff]
        %v805 = vld [vmem:[#allocation3 + $0x738] sm:$0xff]
        %v806 = vld [vmem:[#allocation3 + $0x740] sm:$0xff]
        %v807 = vld [vmem:[#allocation3 + $0x748] sm:$0xff]
        %v808 = vld [vmem:[#allocation3 + $0x750] sm:$0xff]
        %v809 = vld [vmem:[#allocation3 + $0x758] sm:$0xff]
        %v810 = vld [vmem:[#allocation3 + $0x760] sm:$0xff]
        %v811 = vld [vmem:[#allocation3 + $0x768] sm:$0xff]
        %v812 = vld [vmem:[#allocation3 + $0x770] sm:$0xff]
        %v813 = vld [vmem:[#allocation3 + $0x778] sm:$0xff]
        %v814 = vld [vmem:[#allocation3 + $0x780] sm:$0xff]
        %v815 = vld [vmem:[#allocation3 + $0x788] sm:$0xff]
        %v816 = vld [vmem:[#allocation3 + $0x790] sm:$0xff]
        %v817 = vld [vmem:[#allocation3 + $0x798] sm:$0xff]
        %v818 = vld [vmem:[#allocation3 + $0x7a0] sm:$0xff]
        %v819 = vld [vmem:[#allocation3 + $0x7a8] sm:$0xff]
        %v820 = vld [vmem:[#allocation3 + $0x7b0] sm:$0xff]
        %v821 = vld [vmem:[#allocation3 + $0x7b8] sm:$0xff]
        %v822 = vld [vmem:[#allocation3 + $0x7c0] sm:$0xff]
        %v823 = vld [vmem:[#allocation3 + $0x7c8] sm:$0xff]
        %v824 = vld [vmem:[#allocation3 + $0x7d0] sm:$0xff]
        %v825 = vld [vmem:[#allocation3 + $0x7d8] sm:$0xff]
        %v826 = vld [vmem:[#allocation3 + $0x7e0] sm:$0xff]
        %v827 = vld [vmem:[#allocation3 + $0x7e8] sm:$0xff]
        %v828 = vld [vmem:[#allocation3 + $0x7f0] sm:$0xff]
        %v829 = vld [vmem:[#allocation3 + $0x7f8] sm:$0xff]
        %830 = vmatprep.subr.mxu0 %v695
        %831 = vmatpush1.msra.mxu0 %v694
        %832 = vmatprep.subr.mxu0 %v687
        %833 = vmatpush1.msra.mxu0 %v686
        %834 = vmatprep.subr.mxu0 %v679
        %835 = vmatpush1.msra.mxu0 %v678
        %836 = vmatprep.subr.mxu0 %v671
        %837 = vmatpush1.msra.mxu0 %v670
        %838 = vmatprep.subr.mxu0 %v663
        %839 = vmatpush1.msra.mxu0 %v662
        %840 = vmatprep.subr.mxu0 %v655
        %841 = vmatpush1.msra.mxu0 %v654
        %842 = vmatprep.subr.mxu0 %v647
        %843 = vmatpush1.msra.mxu0 %v646
        %844 = vmatprep.subr.mxu0 %v639
        %845 = vmatpush1.msra.mxu0 %v638
        %846 = vmatprep.subr.mxu0 %v631
        %847 = vmatpush1.msra.mxu0 %v630
        %848 = vmatprep.subr.mxu0 %v623
        %849 = vmatpush1.msra.mxu0 %v622
        %850 = vmatprep.subr.mxu0 %v615
        %851 = vmatpush1.msra.mxu0 %v614
        %852 = vmatprep.subr.mxu0 %v607
        %853 = vmatpush1.msra.mxu0 %v606
        %854 = vmatprep.subr.mxu0 %v599
        %855 = vmatpush1.msra.mxu0 %v598
        %856 = vmatprep.subr.mxu0 %v591
        %857 = vmatpush1.msra.mxu0 %v590
        %858 = vmatprep.subr.mxu0 %v583
        %859 = vmatpush1.msra.mxu0 %v582
        %860 = vmatprep.subr.mxu0 %v575
        %861 = vmatpush1.msra.mxu0 %v574
        %862 = vmatprep.subr.mxu0 %v823
        %863 = vmatpush2.msra.mxu0 %v822
        %864 = vmatprep.subr.mxu0 %v815
        %865 = vmatpush2.msra.mxu0 %v814
        %866 = vmatprep.subr.mxu0 %v807
        %867 = vmatpush2.msra.mxu0 %v806
        %868 = vmatprep.subr.mxu0 %v799
        %869 = vmatpush2.msra.mxu0 %v798
        %870 = vmatprep.subr.mxu0 %v791
        %871 = vmatpush2.msra.mxu0 %v790
        %872 = vmatprep.subr.mxu0 %v783
        %873 = vmatpush2.msra.mxu0 %v782
        %874 = vmatprep.subr.mxu0 %v775
        %875 = vmatpush2.msra.mxu0 %v774
        %876 = vmatprep.subr.mxu0 %v767
        %877 = vmatpush2.msra.mxu0 %v766
        %878 = vmatprep.subr.mxu0 %v759
        %879 = vmatpush2.msra.mxu0 %v758
        %880 = vmatprep.subr.mxu0 %v751
        %881 = vmatpush2.msra.mxu0 %v750
        %882 = vmatprep.subr.mxu0 %v743
        %883 = vmatpush2.msra.mxu0 %v742
        %884 = vmatprep.subr.mxu0 %v735
        %885 = vmatpush2.msra.mxu0 %v734
        %886 = vmatprep.subr.mxu0 %v727
        %887 = vmatpush2.msra.mxu0 %v726
        %888 = vmatprep.subr.mxu0 %v719
        %889 = vmatpush2.msra.mxu0 %v718
        %890 = vmatprep.subr.mxu0 %v711
        %891 = vmatpush2.msra.mxu0 %v710
        %892 = vmatprep.subr.mxu0 %v703
        %893 = vmatpush2.msra.mxu0 %v702
        %894 = vmatprep.mubr.f32.mxu0 %v572
        %895 = vmatmul.mubr.f32.gmra.mxu0 %v570
        %v896 = vpop.f32.mrf.mxu0
        %v897 = vadd.f32 0.0, %v896
        %v898 = vpop.f32.mrf.mxu0
        %v899 = vadd.f32 0.0, %v898
        %900 = vdwg.mxu0
        %901 = vmatprep.subr.mxu0 %v697
        %902 = vmatpush1.msra.mxu0 %v696
        %903 = vmatprep.subr.mxu0 %v689
        %904 = vmatpush1.msra.mxu0 %v688
        %905 = vmatprep.subr.mxu0 %v681
        %906 = vmatpush1.msra.mxu0 %v680
        %907 = vmatprep.subr.mxu0 %v673
        %908 = vmatpush1.msra.mxu0 %v672
        %909 = vmatprep.subr.mxu0 %v665
        %910 = vmatpush1.msra.mxu0 %v664
        %911 = vmatprep.subr.mxu0 %v657
        %912 = vmatpush1.msra.mxu0 %v656
        %913 = vmatprep.subr.mxu0 %v649
        %914 = vmatpush1.msra.mxu0 %v648
        %915 = vmatprep.subr.mxu0 %v641
        %916 = vmatpush1.msra.mxu0 %v640
        %917 = vmatprep.subr.mxu0 %v633
        %918 = vmatpush1.msra.mxu0 %v632
        %919 = vmatprep.subr.mxu0 %v625
        %920 = vmatpush1.msra.mxu0 %v624
        %921 = vmatprep.subr.mxu0 %v617
        %922 = vmatpush1.msra.mxu0 %v616
        %923 = vmatprep.subr.mxu0 %v609
        %924 = vmatpush1.msra.mxu0 %v608
        %925 = vmatprep.subr.mxu0 %v601
        %926 = vmatpush1.msra.mxu0 %v600
        %927 = vmatprep.subr.mxu0 %v593
        %928 = vmatpush1.msra.mxu0 %v592
        %929 = vmatprep.subr.mxu0 %v585
        %930 = vmatpush1.msra.mxu0 %v584
        %931 = vmatprep.subr.mxu0 %v577
        %932 = vmatpush1.msra.mxu0 %v576
        %933 = vmatprep.subr.mxu0 %v825
        %934 = vmatpush2.msra.mxu0 %v824
        %935 = vmatprep.subr.mxu0 %v817
        %936 = vmatpush2.msra.mxu0 %v816
        %937 = vmatprep.subr.mxu0 %v809
        %938 = vmatpush2.msra.mxu0 %v808
        %939 = vmatprep.subr.mxu0 %v801
        %940 = vmatpush2.msra.mxu0 %v800
        %941 = vmatprep.subr.mxu0 %v793
        %942 = vmatpush2.msra.mxu0 %v792
        %943 = vmatprep.subr.mxu0 %v785
        %944 = vmatpush2.msra.mxu0 %v784
        %945 = vmatprep.subr.mxu0 %v777
        %946 = vmatpush2.msra.mxu0 %v776
        %947 = vmatprep.subr.mxu0 %v769
        %948 = vmatpush2.msra.mxu0 %v768
        %949 = vmatprep.subr.mxu0 %v761
        %950 = vmatpush2.msra.mxu0 %v760
        %951 = vmatprep.subr.mxu0 %v753
        %952 = vmatpush2.msra.mxu0 %v752
        %953 = vmatprep.subr.mxu0 %v745
        %954 = vmatpush2.msra.mxu0 %v744
        %955 = vmatprep.subr.mxu0 %v737
        %956 = vmatpush2.msra.mxu0 %v736
        %957 = vmatprep.subr.mxu0 %v729
        %958 = vmatpush2.msra.mxu0 %v728
        %959 = vmatprep.subr.mxu0 %v721
        %960 = vmatpush2.msra.mxu0 %v720
        %961 = vmatprep.subr.mxu0 %v713
        %962 = vmatpush2.msra.mxu0 %v712
        %963 = vmatprep.subr.mxu0 %v705
        %964 = vmatpush2.msra.mxu0 %v704
        %965 = vmatprep.mubr.f32.mxu0 %v572
        %966 = vmatmul.mubr.f32.gmra.mxu0 %v570
        %v967 = vpop.f32.mrf.mxu0
        %v968 = vadd.f32 0.0, %v967
        %v969 = vpop.f32.mrf.mxu0
        %v970 = vadd.f32 0.0, %v969
        %971 = vdwg.mxu0
        %972 = vmatprep.subr.mxu0 %v699
        %973 = vmatpush1.msra.mxu0 %v698
        %974 = vmatprep.subr.mxu0 %v691
        %975 = vmatpush1.msra.mxu0 %v690
        %976 = vmatprep.subr.mxu0 %v683
        %977 = vmatpush1.msra.mxu0 %v682
        %978 = vmatprep.subr.mxu0 %v675
        %979 = vmatpush1.msra.mxu0 %v674
        %980 = vmatprep.subr.mxu0 %v667
        %981 = vmatpush1.msra.mxu0 %v666
        %982 = vmatprep.subr.mxu0 %v659
        %983 = vmatpush1.msra.mxu0 %v658
        %984 = vmatprep.subr.mxu0 %v651
        %985 = vmatpush1.msra.mxu0 %v650
        %986 = vmatprep.subr.mxu0 %v643
        %987 = vmatpush1.msra.mxu0 %v642
        %988 = vmatprep.subr.mxu0 %v635
        %989 = vmatpush1.msra.mxu0 %v634
        %990 = vmatprep.subr.mxu0 %v627
        %991 = vmatpush1.msra.mxu0 %v626
        %992 = vmatprep.subr.mxu0 %v619
        %993 = vmatpush1.msra.mxu0 %v618
        %994 = vmatprep.subr.mxu0 %v611
        %995 = vmatpush1.msra.mxu0 %v610
        %996 = vmatprep.subr.mxu0 %v603
        %997 = vmatpush1.msra.mxu0 %v602
        %998 = vmatprep.subr.mxu0 %v595
        %999 = vmatpush1.msra.mxu0 %v594
        %1000 = vmatprep.subr.mxu0 %v587
        %1001 = vmatpush1.msra.mxu0 %v586
        %1002 = vmatprep.subr.mxu0 %v579
        %1003 = vmatpush1.msra.mxu0 %v578
        %1004 = vmatprep.subr.mxu0 %v827
        %1005 = vmatpush2.msra.mxu0 %v826
        %1006 = vmatprep.subr.mxu0 %v819
        %1007 = vmatpush2.msra.mxu0 %v818
        %1008 = vmatprep.subr.mxu0 %v811
        %1009 = vmatpush2.msra.mxu0 %v810
        %1010 = vmatprep.subr.mxu0 %v803
        %1011 = vmatpush2.msra.mxu0 %v802
        %1012 = vmatprep.subr.mxu0 %v795
        %1013 = vmatpush2.msra.mxu0 %v794
        %1014 = vmatprep.subr.mxu0 %v787
        %1015 = vmatpush2.msra.mxu0 %v786
        %1016 = vmatprep.subr.mxu0 %v779
        %1017 = vmatpush2.msra.mxu0 %v778
        %1018 = vmatprep.subr.mxu0 %v771
        %1019 = vmatpush2.msra.mxu0 %v770
        %1020 = vmatprep.subr.mxu0 %v763
        %1021 = vmatpush2.msra.mxu0 %v762
        %1022 = vmatprep.subr.mxu0 %v755
        %1023 = vmatpush2.msra.mxu0 %v754
        %1024 = vmatprep.subr.mxu0 %v747
        %1025 = vmatpush2.msra.mxu0 %v746
        %1026 = vmatprep.subr.mxu0 %v739
        %1027 = vmatpush2.msra.mxu0 %v738
        %1028 = vmatprep.subr.mxu0 %v731
        %1029 = vmatpush2.msra.mxu0 %v730
        %1030 = vmatprep.subr.mxu0 %v723
        %1031 = vmatpush2.msra.mxu0 %v722
        %1032 = vmatprep.subr.mxu0 %v715
        %1033 = vmatpush2.msra.mxu0 %v714
        %1034 = vmatprep.subr.mxu0 %v707
        %1035 = vmatpush2.msra.mxu0 %v706
        %1036 = vmatprep.mubr.f32.mxu0 %v572
        %1037 = vmatmul.mubr.f32.gmra.mxu0 %v570
        %v1038 = vpop.f32.mrf.mxu0
        %v1039 = vadd.f32 0.0, %v1038
        %v1040 = vpop.f32.mrf.mxu0
        %v1041 = vadd.f32 0.0, %v1040
        %1042 = vdwg.mxu0
        %1043 = vmatprep.subr.mxu0 %v701
        %1044 = vmatpush1.msra.mxu0 %v700
        %1045 = vmatprep.subr.mxu0 %v693
        %1046 = vmatpush1.msra.mxu0 %v692
        %1047 = vmatprep.subr.mxu0 %v685
        %1048 = vmatpush1.msra.mxu0 %v684
        %1049 = vmatprep.subr.mxu0 %v677
        %1050 = vmatpush1.msra.mxu0 %v676
        %1051 = vmatprep.subr.mxu0 %v669
        %1052 = vmatpush1.msra.mxu0 %v668
        %1053 = vmatprep.subr.mxu0 %v661
        %1054 = vmatpush1.msra.mxu0 %v660
        %1055 = vmatprep.subr.mxu0 %v653
        %1056 = vmatpush1.msra.mxu0 %v652
        %1057 = vmatprep.subr.mxu0 %v645
        %1058 = vmatpush1.msra.mxu0 %v644
        %1059 = vmatprep.subr.mxu0 %v637
        %1060 = vmatpush1.msra.mxu0 %v636
        %1061 = vmatprep.subr.mxu0 %v629
        %1062 = vmatpush1.msra.mxu0 %v628
        %1063 = vmatprep.subr.mxu0 %v621
        %1064 = vmatpush1.msra.mxu0 %v620
        %1065 = vmatprep.subr.mxu0 %v613
        %1066 = vmatpush1.msra.mxu0 %v612
        %1067 = vmatprep.subr.mxu0 %v605
        %1068 = vmatpush1.msra.mxu0 %v604
        %1069 = vmatprep.subr.mxu0 %v597
        %1070 = vmatpush1.msra.mxu0 %v596
        %1071 = vmatprep.subr.mxu0 %v589
        %1072 = vmatpush1.msra.mxu0 %v588
        %1073 = vmatprep.subr.mxu0 %v581
        %1074 = vmatpush1.msra.mxu0 %v580
        %1075 = vmatprep.subr.mxu0 %v829
        %1076 = vmatpush2.msra.mxu0 %v828
        %1077 = vmatprep.subr.mxu0 %v821
        %1078 = vmatpush2.msra.mxu0 %v820
        %1079 = vmatprep.subr.mxu0 %v813
        %1080 = vmatpush2.msra.mxu0 %v812
        %1081 = vmatprep.subr.mxu0 %v805
        %1082 = vmatpush2.msra.mxu0 %v804
        %1083 = vmatprep.subr.mxu0 %v797
        %1084 = vmatpush2.msra.mxu0 %v796
        %1085 = vmatprep.subr.mxu0 %v789
        %1086 = vmatpush2.msra.mxu0 %v788
        %1087 = vmatprep.subr.mxu0 %v781
        %1088 = vmatpush2.msra.mxu0 %v780
        %1089 = vmatprep.subr.mxu0 %v773
        %1090 = vmatpush2.msra.mxu0 %v772
        %1091 = vmatprep.subr.mxu0 %v765
        %1092 = vmatpush2.msra.mxu0 %v764
        %1093 = vmatprep.subr.mxu0 %v757
        %1094 = vmatpush2.msra.mxu0 %v756
        %1095 = vmatprep.subr.mxu0 %v749
        %1096 = vmatpush2.msra.mxu0 %v748
        %1097 = vmatprep.subr.mxu0 %v741
        %1098 = vmatpush2.msra.mxu0 %v740
        %1099 = vmatprep.subr.mxu0 %v733
        %1100 = vmatpush2.msra.mxu0 %v732
        %1101 = vmatprep.subr.mxu0 %v725
        %1102 = vmatpush2.msra.mxu0 %v724
        %1103 = vmatprep.subr.mxu0 %v717
        %1104 = vmatpush2.msra.mxu0 %v716
        %1105 = vmatprep.subr.mxu0 %v709
        %1106 = vmatpush2.msra.mxu0 %v708
        %1107 = vmatprep.mubr.f32.mxu0 %v572
        %1108 = vmatmul.mubr.f32.gmra.mxu0 %v570
        %v1109 = vpop.f32.mrf.mxu0
        %v1110 = vadd.f32 0.0, %v1109
        %v1111 = vpop.f32.mrf.mxu0
        %v1112 = vadd.f32 0.0, %v1111
        %1113 = vdwg.mxu0
        %1114 = vst [vmem:[#allocation2] sm:$0xff] 0.0
        %1115 = vst [vmem:[#allocation2 + $0x8] sm:$0xff] 0.0
        %1116 = vst [vmem:[#allocation2 + $0x10] sm:$0xff] 0.0
        %1117 = vst [vmem:[#allocation2 + $0x18] sm:$0xff] 0.0
        %1118 = vst [vmem:[#allocation2 + $0x20] sm:$0xff] %v897
        %1119 = vst [vmem:[#allocation2 + $0x28] sm:$0xff] %v899
        %1120 = vst [vmem:[#allocation2 + $0x30] sm:$0xff] %v968
        %1121 = vst [vmem:[#allocation2 + $0x38] sm:$0xff] %v970
        %v1122 = vld [vmem:[%s4] sm:$0xff]
        %v1123 = vld [vmem:[%s4 + $0x8] sm:$0xff]
        %v1124 = vld [vmem:[#allocation2] sm:$0xe0]
        %v1125 = vld [vmem:[#allocation2 + $0x8] sm:$0xe0]
        %v1126 = vld [vmem:[#allocation2 + $0x10] sm:$0xe0]
        %v1127 = vld [vmem:[#allocation2 + $0x18] sm:$0xe0]
        %v1128 = vld [vmem:[#allocation2 + $0x20] sm:$0x1f]
        %v1129 = vld [vmem:[#allocation2 + $0x28] sm:$0x1f]
        %v1130 = vld [vmem:[#allocation2 + $0x30] sm:$0x1f]
        %v1131 = vld [vmem:[#allocation2 + $0x38] sm:$0x1f]
        %v1134 = vlaneseq
        %v1135 = vshrl.u32 %v1134, 7
        %v1136 = vsub.s32 0, %v1135
        %v1137 = vrot.slane %v1122, %v1136
        %v1138 = vlaneseq
        %v1139 = vshrl.u32 %v1138, 7
        %v1140 = vsub.s32 4, %v1139
        %v1141 = vrot.slane %v1122, %v1140
        %v1142 = vlaneseq
        %v1143 = vshrl.u32 %v1142, 7
        %v1144 = vsub.s32 0, %v1143
        %v1145 = vrot.slane %v1123, %v1144
        %v1146 = vlaneseq
        %v1147 = vshrl.u32 %v1146, 7
        %v1148 = vsub.s32 4, %v1147
        %v1149 = vrot.slane %v1123, %v1148
        %v1154 = vlaneseq
        %v1155 = vshrl.u32 %v1154, 7
        %v1156 = vsub.s32 0, %v1155
        %v1157 = vrot.slane %v1137, %v1156
        %v1158 = vlaneseq
        %v1159 = vshrl.u32 %v1158, 7
        %v1160 = vsub.s32 0, %v1159
        %v1161 = vrot.slane %v1141, %v1160
        %v1162 = vlaneseq
        %v1163 = vshrl.u32 %v1162, 7
        %v1164 = vsub.s32 0, %v1163
        %v1165 = vrot.slane %v1145, %v1164
        %v1166 = vlaneseq
        %v1167 = vshrl.u32 %v1166, 7
        %v1168 = vsub.s32 0, %v1167
        %v1169 = vrot.slane %v1149, %v1168
        %v1170 = vmul.f32 %v1157, %v1124
        %v1171 = vmul.f32 %v1161, %v1125
        %v1172 = vmul.f32 %v1165, %v1126
        %v1173 = vmul.f32 %v1169, %v1127
        %v1174 = vmul.f32 %v1157, %v1128
        %v1175 = vmul.f32 %v1161, %v1129
        %v1176 = vmul.f32 %v1165, %v1130
        %v1177 = vmul.f32 %v1169, %v1131
        %v1178 = vadd.f32 %v1170, 0.0
        %v1179 = vadd.f32 %v1171, 0.0
        %v1180 = vadd.f32 %v1172, 0.0
        %v1181 = vadd.f32 %v1173, 0.0
        %v1182 = vadd.f32 %v1174, 0.0
        %v1183 = vadd.f32 %v1175, 0.0
        %v1184 = vadd.f32 %v1176, 0.0
        %v1185 = vadd.f32 %v1177, 0.0
        %v1186 = vld [vmem:[#allocation2] sm:$0xc0]
        %v1187 = vld [vmem:[#allocation2 + $0x8] sm:$0xc0]
        %v1188 = vld [vmem:[#allocation2 + $0x10] sm:$0xc0]
        %v1189 = vld [vmem:[#allocation2 + $0x18] sm:$0xc0]
        %v1190 = vld [vmem:[#allocation2 + $0x20] sm:$0x3f]
        %v1191 = vld [vmem:[#allocation2 + $0x28] sm:$0x3f]
        %v1192 = vld [vmem:[#allocation2 + $0x30] sm:$0x3f]
        %v1193 = vld [vmem:[#allocation2 + $0x38] sm:$0x3f]
        %v1194 = vlaneseq
        %v1195 = vshrl.u32 %v1194, 7
        %v1196 = vsub.s32 1, %v1195
        %v1197 = vrot.slane %v1122, %v1196
        %v1198 = vlaneseq
        %v1199 = vshrl.u32 %v1198, 7
        %v1200 = vsub.s32 5, %v1199
        %v1201 = vrot.slane %v1122, %v1200
        %v1202 = vlaneseq
        %v1203 = vshrl.u32 %v1202, 7
        %v1204 = vsub.s32 1, %v1203
        %v1205 = vrot.slane %v1123, %v1204
        %v1206 = vlaneseq
        %v1207 = vshrl.u32 %v1206, 7
        %v1208 = vsub.s32 5, %v1207
        %v1209 = vrot.slane %v1123, %v1208
        %v1214 = vlaneseq
        %v1215 = vshrl.u32 %v1214, 7
        %v1216 = vsub.s32 1, %v1215
        %v1217 = vrot.slane %v1197, %v1216
        %v1218 = vlaneseq
        %v1219 = vshrl.u32 %v1218, 7
        %v1220 = vsub.s32 1, %v1219
        %v1221 = vrot.slane %v1201, %v1220
        %v1222 = vlaneseq
        %v1223 = vshrl.u32 %v1222, 7
        %v1224 = vsub.s32 1, %v1223
        %v1225 = vrot.slane %v1205, %v1224
        %v1226 = vlaneseq
        %v1227 = vshrl.u32 %v1226, 7
        %v1228 = vsub.s32 1, %v1227
        %v1229 = vrot.slane %v1209, %v1228
        %v1230 = vmul.f32 %v1217, %v1186
        %v1231 = vmul.f32 %v1221, %v1187
        %v1232 = vmul.f32 %v1225, %v1188
        %v1233 = vmul.f32 %v1229, %v1189
        %v1234 = vmul.f32 %v1217, %v1190
        %v1235 = vmul.f32 %v1221, %v1191
        %v1236 = vmul.f32 %v1225, %v1192
        %v1237 = vmul.f32 %v1229, %v1193
        %vm1246 = vcmask 1046528
        %v1247 = vrot.slane %v1230, 1
        %v1248 = vrot.slane %v1234, 1
        %v1249 = vsel %vm1246, %v1247, %v1248
        %v1250 = vrot.slane %v1231, 1
        %v1251 = vrot.slane %v1235, 1
        %v1252 = vsel %vm1246, %v1250, %v1251
        %v1253 = vrot.slane %v1232, 1
        %v1254 = vrot.slane %v1236, 1
        %v1255 = vsel %vm1246, %v1253, %v1254
        %v1256 = vrot.slane %v1233, 1
        %v1257 = vrot.slane %v1237, 1
        %v1258 = vsel %vm1246, %v1256, %v1257
        %v1267 = vadd.f32 %v1178, %v1249
        %v1268 = vadd.f32 %v1179, %v1252
        %v1269 = vadd.f32 %v1180, %v1255
        %v1270 = vadd.f32 %v1181, %v1258
        %v1271 = vadd.f32 %v1182, %v1248
        %v1272 = vadd.f32 %v1183, %v1251
        %v1273 = vadd.f32 %v1184, %v1254
        %v1274 = vadd.f32 %v1185, %v1257
        %v1275 = vld [vmem:[#allocation2] sm:$0x80]
        %v1276 = vld [vmem:[#allocation2 + $0x8] sm:$0x80]
        %v1277 = vld [vmem:[#allocation2 + $0x10] sm:$0x80]
        %v1278 = vld [vmem:[#allocation2 + $0x18] sm:$0x80]
        %v1279 = vld [vmem:[#allocation2 + $0x20] sm:$0x7f]
        %v1280 = vld [vmem:[#allocation2 + $0x28] sm:$0x7f]
        %v1281 = vld [vmem:[#allocation2 + $0x30] sm:$0x7f]
        %v1282 = vld [vmem:[#allocation2 + $0x38] sm:$0x7f]
        %v1283 = vlaneseq
        %v1284 = vshrl.u32 %v1283, 7
        %v1285 = vsub.s32 2, %v1284
        %v1286 = vrot.slane %v1122, %v1285
        %v1287 = vlaneseq
        %v1288 = vshrl.u32 %v1287, 7
        %v1289 = vsub.s32 6, %v1288
        %v1290 = vrot.slane %v1122, %v1289
        %v1291 = vlaneseq
        %v1292 = vshrl.u32 %v1291, 7
        %v1293 = vsub.s32 2, %v1292
        %v1294 = vrot.slane %v1123, %v1293
        %v1295 = vlaneseq
        %v1296 = vshrl.u32 %v1295, 7
        %v1297 = vsub.s32 6, %v1296
        %v1298 = vrot.slane %v1123, %v1297
        %v1303 = vlaneseq
        %v1304 = vshrl.u32 %v1303, 7
        %v1305 = vsub.s32 2, %v1304
        %v1306 = vrot.slane %v1286, %v1305
        %v1307 = vlaneseq
        %v1308 = vshrl.u32 %v1307, 7
        %v1309 = vsub.s32 2, %v1308
        %v1310 = vrot.slane %v1290, %v1309
        %v1311 = vlaneseq
        %v1312 = vshrl.u32 %v1311, 7
        %v1313 = vsub.s32 2, %v1312
        %v1314 = vrot.slane %v1294, %v1313
        %v1315 = vlaneseq
        %v1316 = vshrl.u32 %v1315, 7
        %v1317 = vsub.s32 2, %v1316
        %v1318 = vrot.slane %v1298, %v1317
        %v1319 = vmul.f32 %v1306, %v1275
        %v1320 = vmul.f32 %v1310, %v1276
        %v1321 = vmul.f32 %v1314, %v1277
        %v1322 = vmul.f32 %v1318, %v1278
        %v1323 = vmul.f32 %v1306, %v1279
        %v1324 = vmul.f32 %v1310, %v1280
        %v1325 = vmul.f32 %v1314, %v1281
        %v1326 = vmul.f32 %v1318, %v1282
        %vm1335 = vcmask 1045504
        %v1336 = vrot.slane %v1319, 2
        %v1337 = vrot.slane %v1323, 2
        %v1338 = vsel %vm1335, %v1336, %v1337
        %v1339 = vrot.slane %v1320, 2
        %v1340 = vrot.slane %v1324, 2
        %v1341 = vsel %vm1335, %v1339, %v1340
        %v1342 = vrot.slane %v1321, 2
        %v1343 = vrot.slane %v1325, 2
        %v1344 = vsel %vm1335, %v1342, %v1343
        %v1345 = vrot.slane %v1322, 2
        %v1346 = vrot.slane %v1326, 2
        %v1347 = vsel %vm1335, %v1345, %v1346
        %v1356 = vadd.f32 %v1267, %v1338
        %v1357 = vadd.f32 %v1268, %v1341
        %v1358 = vadd.f32 %v1269, %v1344
        %v1359 = vadd.f32 %v1270, %v1347
        %v1360 = vadd.f32 %v1271, %v1337
        %v1361 = vadd.f32 %v1272, %v1340
        %v1362 = vadd.f32 %v1273, %v1343
        %v1363 = vadd.f32 %v1274, %v1346
        %v1364 = vld [vmem:[#allocation2 + $0x20] sm:$0xff]
        %v1365 = vld [vmem:[#allocation2 + $0x28] sm:$0xff]
        %v1366 = vld [vmem:[#allocation2 + $0x30] sm:$0xff]
        %v1367 = vld [vmem:[#allocation2 + $0x38] sm:$0xff]
        %v1368 = vlaneseq
        %v1369 = vshrl.u32 %v1368, 7
        %v1370 = vsub.s32 3, %v1369
        %v1371 = vrot.slane %v1122, %v1370
        %v1372 = vlaneseq
        %v1373 = vshrl.u32 %v1372, 7
        %v1374 = vsub.s32 7, %v1373
        %v1375 = vrot.slane %v1122, %v1374
        %v1376 = vlaneseq
        %v1377 = vshrl.u32 %v1376, 7
        %v1378 = vsub.s32 3, %v1377
        %v1379 = vrot.slane %v1123, %v1378
        %v1380 = vlaneseq
        %v1381 = vshrl.u32 %v1380, 7
        %v1382 = vsub.s32 7, %v1381
        %v1383 = vrot.slane %v1123, %v1382
        %v1388 = vlaneseq
        %v1389 = vshrl.u32 %v1388, 7
        %v1390 = vsub.s32 3, %v1389
        %v1391 = vrot.slane %v1371, %v1390
        %v1392 = vlaneseq
        %v1393 = vshrl.u32 %v1392, 7
        %v1394 = vsub.s32 3, %v1393
        %v1395 = vrot.slane %v1375, %v1394
        %v1396 = vlaneseq
        %v1397 = vshrl.u32 %v1396, 7
        %v1398 = vsub.s32 3, %v1397
        %v1399 = vrot.slane %v1379, %v1398
        %v1400 = vlaneseq
        %v1401 = vshrl.u32 %v1400, 7
        %v1402 = vsub.s32 3, %v1401
        %v1403 = vrot.slane %v1383, %v1402
        %v1404 = vmul.f32 %v1391, %v1364
        %v1405 = vmul.f32 %v1395, %v1365
        %v1406 = vmul.f32 %v1399, %v1366
        %v1407 = vmul.f32 %v1403, %v1367
        %v1412 = vrot.slane %v1404, 3
        %v1413 = vrot.slane %v1405, 3
        %v1414 = vrot.slane %v1406, 3
        %v1415 = vrot.slane %v1407, 3
        %v1420 = vadd.f32 %v1356, %v1412
        %v1421 = vadd.f32 %v1357, %v1413
        %v1422 = vadd.f32 %v1358, %v1414
        %v1423 = vadd.f32 %v1359, %v1415
        %v1424 = vadd.f32 %v1360, %v1412
        %v1425 = vadd.f32 %v1361, %v1413
        %v1426 = vadd.f32 %v1362, %v1414
        %v1427 = vadd.f32 %v1363, %v1415
        %v1428 = vld [vmem:[%s5] sm:$0xf]
        %v1430 = vlaneseq
        %v1431 = vshrl.u32 %v1430, 7
        %v1432 = vsub.s32 0, %v1431
        %v1433 = vrot.slane %v1428, %v1432
        %v1434 = vlaneseq
        %v1435 = vshrl.u32 %v1434, 7
        %v1436 = vsub.s32 1, %v1435
        %v1437 = vrot.slane %v1428, %v1436
        %v1438 = vlaneseq
        %v1439 = vshrl.u32 %v1438, 7
        %v1440 = vsub.s32 2, %v1439
        %v1441 = vrot.slane %v1428, %v1440
        %v1442 = vlaneseq
        %v1443 = vshrl.u32 %v1442, 7
        %v1444 = vsub.s32 3, %v1443
        %v1445 = vrot.slane %v1428, %v1444
        %v1450 = vadd.f32 %v1420, %v1433
        %v1451 = vadd.f32 %v1421, %v1437
        %v1452 = vadd.f32 %v1422, %v1441
        %v1453 = vadd.f32 %v1423, %v1445
        %v1454 = vadd.f32 %v1424, %v1433
        %v1455 = vadd.f32 %v1425, %v1437
        %v1456 = vadd.f32 %v1426, %v1441
        %v1457 = vadd.f32 %v1427, %v1445
        %v1458 = vxor.u32 %v1450, 2147483648
        %v1459 = vxor.u32 %v1451, 2147483648
        %v1460 = vxor.u32 %v1452, 2147483648
        %v1461 = vxor.u32 %v1453, 2147483648
        %v1462 = vxor.u32 %v1454, 2147483648
        %v1463 = vxor.u32 %v1455, 2147483648
        %v1464 = vxor.u32 %v1456, 2147483648
        %v1465 = vxor.u32 %v1457, 2147483648
        %v1466 = vmul.f32 %v1458, 1.442695
        %v1467 = vpow.pop %v1466
        %v1468 = vmul.f32 %v1459, 1.442695
        %v1469 = vpow.pop %v1468
        %v1470 = vmul.f32 %v1460, 1.442695
        %v1471 = vpow.pop %v1470
        %v1472 = vmul.f32 %v1461, 1.442695
        %v1473 = vpow.pop %v1472
        %v1474 = vmul.f32 %v1462, 1.442695
        %v1475 = vpow.pop %v1474
        %v1476 = vmul.f32 %v1463, 1.442695
        %v1477 = vpow.pop %v1476
        %v1478 = vmul.f32 %v1464, 1.442695
        %v1479 = vpow.pop %v1478
        %v1480 = vmul.f32 %v1465, 1.442695
        %v1481 = vpow.pop %v1480
        %v1482 = vadd.f32 %v1467, 1.0
        %v1483 = vadd.f32 %v1469, 1.0
        %v1484 = vadd.f32 %v1471, 1.0
        %v1485 = vadd.f32 %v1473, 1.0
        %v1486 = vadd.f32 %v1475, 1.0
        %v1487 = vadd.f32 %v1477, 1.0
        %v1488 = vadd.f32 %v1479, 1.0
        %v1489 = vadd.f32 %v1481, 1.0
        %v1490 = vrcp.pop %v1482
        %v1491 = vmul.f32 1.0, %v1490
        %v1492 = vrcp.pop %v1483
        %v1493 = vmul.f32 1.0, %v1492
        %v1494 = vrcp.pop %v1484
        %v1495 = vmul.f32 1.0, %v1494
        %v1496 = vrcp.pop %v1485
        %v1497 = vmul.f32 1.0, %v1496
        %v1498 = vrcp.pop %v1486
        %v1499 = vmul.f32 1.0, %v1498
        %v1500 = vrcp.pop %v1487
        %v1501 = vmul.f32 1.0, %v1500
        %v1502 = vrcp.pop %v1488
        %v1503 = vmul.f32 1.0, %v1502
        %v1504 = vrcp.pop %v1489
        %v1505 = vmul.f32 1.0, %v1504
        %v1506 = vmul.f32 %v1450, %v1491
        %v1507 = vmul.f32 %v1451, %v1493
        %v1508 = vmul.f32 %v1452, %v1495
        %v1509 = vmul.f32 %v1453, %v1497
        %v1510 = vmul.f32 %v1454, %v1499
        %v1511 = vmul.f32 %v1455, %v1501
        %v1512 = vmul.f32 %v1456, %v1503
        %v1513 = vmul.f32 %v1457, %v1505
        %v1514 = vld [vmem:[%s6] sm:$0xff]
        %v1515 = vld [vmem:[%s6 + $0x8] sm:$0xff]
        %v1516 = vld [vmem:[%s6 + $0x10] sm:$0xff]
        %v1517 = vld [vmem:[%s6 + $0x18] sm:$0xff]
        %v1518 = vld [vmem:[%s6 + $0x20] sm:$0xff]
        %v1519 = vld [vmem:[%s6 + $0x28] sm:$0xff]
        %v1520 = vld [vmem:[%s6 + $0x30] sm:$0xff]
        %v1521 = vld [vmem:[%s6 + $0x38] sm:$0xff]
        %v1522 = vld [vmem:[%s6 + $0x40] sm:$0xff]
        %v1523 = vld [vmem:[%s6 + $0x48] sm:$0xff]
        %v1524 = vld [vmem:[%s6 + $0x50] sm:$0xff]
        %v1525 = vld [vmem:[%s6 + $0x58] sm:$0xff]
        %v1526 = vld [vmem:[%s6 + $0x60] sm:$0xff]
        %v1527 = vld [vmem:[%s6 + $0x68] sm:$0xff]
        %v1528 = vld [vmem:[%s6 + $0x70] sm:$0xff]
        %v1529 = vld [vmem:[%s6 + $0x78] sm:$0xff]
        %v1530 = vld [vmem:[%s6 + $0x80] sm:$0xff]
        %v1531 = vld [vmem:[%s6 + $0x88] sm:$0xff]
        %v1532 = vld [vmem:[%s6 + $0x90] sm:$0xff]
        %v1533 = vld [vmem:[%s6 + $0x98] sm:$0xff]
        %v1534 = vld [vmem:[%s6 + $0xa0] sm:$0xff]
        %v1535 = vld [vmem:[%s6 + $0xa8] sm:$0xff]
        %v1536 = vld [vmem:[%s6 + $0xb0] sm:$0xff]
        %v1537 = vld [vmem:[%s6 + $0xb8] sm:$0xff]
        %v1538 = vld [vmem:[%s6 + $0xc0] sm:$0xff]
        %v1539 = vld [vmem:[%s6 + $0xc8] sm:$0xff]
        %v1540 = vld [vmem:[%s6 + $0xd0] sm:$0xff]
        %v1541 = vld [vmem:[%s6 + $0xd8] sm:$0xff]
        %v1542 = vld [vmem:[%s6 + $0xe0] sm:$0xff]
        %v1543 = vld [vmem:[%s6 + $0xe8] sm:$0xff]
        %v1544 = vld [vmem:[%s6 + $0xf0] sm:$0xff]
        %v1545 = vld [vmem:[%s6 + $0xf8] sm:$0xff]
        %v1546 = vld [vmem:[%s6 + $0x100] sm:$0xff]
        %v1547 = vld [vmem:[%s6 + $0x108] sm:$0xff]
        %v1548 = vld [vmem:[%s6 + $0x110] sm:$0xff]
        %v1549 = vld [vmem:[%s6 + $0x118] sm:$0xff]
        %v1550 = vld [vmem:[%s6 + $0x120] sm:$0xff]
        %v1551 = vld [vmem:[%s6 + $0x128] sm:$0xff]
        %v1552 = vld [vmem:[%s6 + $0x130] sm:$0xff]
        %v1553 = vld [vmem:[%s6 + $0x138] sm:$0xff]
        %v1554 = vld [vmem:[%s6 + $0x140] sm:$0xff]
        %v1555 = vld [vmem:[%s6 + $0x148] sm:$0xff]
        %v1556 = vld [vmem:[%s6 + $0x150] sm:$0xff]
        %v1557 = vld [vmem:[%s6 + $0x158] sm:$0xff]
        %v1558 = vld [vmem:[%s6 + $0x160] sm:$0xff]
        %v1559 = vld [vmem:[%s6 + $0x168] sm:$0xff]
        %v1560 = vld [vmem:[%s6 + $0x170] sm:$0xff]
        %v1561 = vld [vmem:[%s6 + $0x178] sm:$0xff]
        %v1562 = vld [vmem:[%s6 + $0x180] sm:$0xff]
        %v1563 = vld [vmem:[%s6 + $0x188] sm:$0xff]
        %v1564 = vld [vmem:[%s6 + $0x190] sm:$0xff]
        %v1565 = vld [vmem:[%s6 + $0x198] sm:$0xff]
        %v1566 = vld [vmem:[%s6 + $0x1a0] sm:$0xff]
        %v1567 = vld [vmem:[%s6 + $0x1a8] sm:$0xff]
        %v1568 = vld [vmem:[%s6 + $0x1b0] sm:$0xff]
        %v1569 = vld [vmem:[%s6 + $0x1b8] sm:$0xff]
        %v1570 = vld [vmem:[%s6 + $0x1c0] sm:$0xff]
        %v1571 = vld [vmem:[%s6 + $0x1c8] sm:$0xff]
        %v1572 = vld [vmem:[%s6 + $0x1d0] sm:$0xff]
        %v1573 = vld [vmem:[%s6 + $0x1d8] sm:$0xff]
        %v1574 = vld [vmem:[%s6 + $0x1e0] sm:$0xff]
        %v1575 = vld [vmem:[%s6 + $0x1e8] sm:$0xff]
        %v1576 = vld [vmem:[%s6 + $0x1f0] sm:$0xff]
        %v1577 = vld [vmem:[%s6 + $0x1f8] sm:$0xff]
        %v1586 = vrot.slane %v1506, 5
        %v1587 = vrot.slane %v1510, 5
        %v1588 = vsel %vm498, %v1586, %v1587
        %v1589 = vrot.slane %v1507, 5
        %v1590 = vrot.slane %v1511, 5
        %v1591 = vsel %vm498, %v1589, %v1590
        %v1592 = vrot.slane %v1508, 5
        %v1593 = vrot.slane %v1512, 5
        %v1594 = vsel %vm498, %v1592, %v1593
        %v1595 = vrot.slane %v1509, 5
        %v1596 = vrot.slane %v1513, 5
        %v1597 = vsel %vm498, %v1595, %v1596
        %1602 = vmatprep.subr.mxu0 0.0
        %1603 = vmatpush1.msra.mxu0 %v1529
        %1604 = vmatprep.subr.mxu0 0.0
        %1605 = vmatpush1.msra.mxu0 %v1528
        %1606 = vmatprep.subr.mxu0 0.0
        %1607 = vmatpush1.msra.mxu0 %v1527
        %1608 = vmatprep.subr.mxu0 0.0
        %1609 = vmatpush1.msra.mxu0 %v1526
        %1610 = vmatprep.subr.mxu0 0.0
        %1611 = vmatpush1.msra.mxu0 %v1525
        %1612 = vmatprep.subr.mxu0 0.0
        %1613 = vmatpush1.msra.mxu0 %v1524
        %1614 = vmatprep.subr.mxu0 0.0
        %1615 = vmatpush1.msra.mxu0 %v1523
        %1616 = vmatprep.subr.mxu0 0.0
        %1617 = vmatpush1.msra.mxu0 %v1522
        %1618 = vmatprep.subr.mxu0 0.0
        %1619 = vmatpush1.msra.mxu0 %v1521
        %1620 = vmatprep.subr.mxu0 0.0
        %1621 = vmatpush1.msra.mxu0 %v1520
        %1622 = vmatprep.subr.mxu0 0.0
        %1623 = vmatpush1.msra.mxu0 %v1519
        %1624 = vmatprep.subr.mxu0 0.0
        %1625 = vmatpush1.msra.mxu0 %v1518
        %1626 = vmatprep.subr.mxu0 0.0
        %1627 = vmatpush1.msra.mxu0 %v1517
        %1628 = vmatprep.subr.mxu0 0.0
        %1629 = vmatpush1.msra.mxu0 %v1516
        %1630 = vmatprep.subr.mxu0 0.0
        %1631 = vmatpush1.msra.mxu0 %v1515
        %1632 = vmatprep.subr.mxu0 0.0
        %1633 = vmatpush1.msra.mxu0 %v1514
        %1634 = vmatprep.subr.mxu0 0.0
        %1635 = vmatpush2.msra.mxu0 %v1545
        %1636 = vmatprep.subr.mxu0 0.0
        %1637 = vmatpush2.msra.mxu0 %v1544
        %1638 = vmatprep.subr.mxu0 0.0
        %1639 = vmatpush2.msra.mxu0 %v1543
        %1640 = vmatprep.subr.mxu0 0.0
        %1641 = vmatpush2.msra.mxu0 %v1542
        %1642 = vmatprep.subr.mxu0 0.0
        %1643 = vmatpush2.msra.mxu0 %v1541
        %1644 = vmatprep.subr.mxu0 0.0
        %1645 = vmatpush2.msra.mxu0 %v1540
        %1646 = vmatprep.subr.mxu0 0.0
        %1647 = vmatpush2.msra.mxu0 %v1539
        %1648 = vmatprep.subr.mxu0 0.0
        %1649 = vmatpush2.msra.mxu0 %v1538
        %1650 = vmatprep.subr.mxu0 0.0
        %1651 = vmatpush2.msra.mxu0 %v1537
        %1652 = vmatprep.subr.mxu0 0.0
        %1653 = vmatpush2.msra.mxu0 %v1536
        %1654 = vmatprep.subr.mxu0 0.0
        %1655 = vmatpush2.msra.mxu0 %v1535
        %1656 = vmatprep.subr.mxu0 0.0
        %1657 = vmatpush2.msra.mxu0 %v1534
        %1658 = vmatprep.subr.mxu0 0.0
        %1659 = vmatpush2.msra.mxu0 %v1533
        %1660 = vmatprep.subr.mxu0 0.0
        %1661 = vmatpush2.msra.mxu0 %v1532
        %1662 = vmatprep.subr.mxu0 0.0
        %1663 = vmatpush2.msra.mxu0 %v1531
        %1664 = vmatprep.subr.mxu0 0.0
        %1665 = vmatpush2.msra.mxu0 %v1530
        %1666 = vmatprep.mubr.f32.mxu0 %v1591
        %1667 = vmatmul.mubr.f32.gmra.mxu0 %v1588
        %v1668 = vpop.f32.mrf.mxu0
        %v1669 = vadd.f32 0.0, %v1668
        %v1670 = vpop.f32.mrf.mxu0
        %1671 = vdwg.mxu0
        %1672 = vmatprep.subr.mxu0 0.0
        %1673 = vmatpush1.msra.mxu0 %v1561
        %1674 = vmatprep.subr.mxu0 0.0
        %1675 = vmatpush1.msra.mxu0 %v1560
        %1676 = vmatprep.subr.mxu0 0.0
        %1677 = vmatpush1.msra.mxu0 %v1559
        %1678 = vmatprep.subr.mxu0 0.0
        %1679 = vmatpush1.msra.mxu0 %v1558
        %1680 = vmatprep.subr.mxu0 0.0
        %1681 = vmatpush1.msra.mxu0 %v1557
        %1682 = vmatprep.subr.mxu0 0.0
        %1683 = vmatpush1.msra.mxu0 %v1556
        %1684 = vmatprep.subr.mxu0 0.0
        %1685 = vmatpush1.msra.mxu0 %v1555
        %1686 = vmatprep.subr.mxu0 0.0
        %1687 = vmatpush1.msra.mxu0 %v1554
        %1688 = vmatprep.subr.mxu0 0.0
        %1689 = vmatpush1.msra.mxu0 %v1553
        %1690 = vmatprep.subr.mxu0 0.0
        %1691 = vmatpush1.msra.mxu0 %v1552
        %1692 = vmatprep.subr.mxu0 0.0
        %1693 = vmatpush1.msra.mxu0 %v1551
        %1694 = vmatprep.subr.mxu0 0.0
        %1695 = vmatpush1.msra.mxu0 %v1550
        %1696 = vmatprep.subr.mxu0 0.0
        %1697 = vmatpush1.msra.mxu0 %v1549
        %1698 = vmatprep.subr.mxu0 0.0
        %1699 = vmatpush1.msra.mxu0 %v1548
        %1700 = vmatprep.subr.mxu0 0.0
        %1701 = vmatpush1.msra.mxu0 %v1547
        %1702 = vmatprep.subr.mxu0 0.0
        %1703 = vmatpush1.msra.mxu0 %v1546
        %1704 = vmatprep.subr.mxu0 0.0
        %1705 = vmatpush2.msra.mxu0 %v1577
        %1706 = vmatprep.subr.mxu0 0.0
        %1707 = vmatpush2.msra.mxu0 %v1576
        %1708 = vmatprep.subr.mxu0 0.0
        %1709 = vmatpush2.msra.mxu0 %v1575
        %1710 = vmatprep.subr.mxu0 0.0
        %1711 = vmatpush2.msra.mxu0 %v1574
        %1712 = vmatprep.subr.mxu0 0.0
        %1713 = vmatpush2.msra.mxu0 %v1573
        %1714 = vmatprep.subr.mxu0 0.0
        %1715 = vmatpush2.msra.mxu0 %v1572
        %1716 = vmatprep.subr.mxu0 0.0
        %1717 = vmatpush2.msra.mxu0 %v1571
        %1718 = vmatprep.subr.mxu0 0.0
        %1719 = vmatpush2.msra.mxu0 %v1570
        %1720 = vmatprep.subr.mxu0 0.0
        %1721 = vmatpush2.msra.mxu0 %v1569
        %1722 = vmatprep.subr.mxu0 0.0
        %1723 = vmatpush2.msra.mxu0 %v1568
        %1724 = vmatprep.subr.mxu0 0.0
        %1725 = vmatpush2.msra.mxu0 %v1567
        %1726 = vmatprep.subr.mxu0 0.0
        %1727 = vmatpush2.msra.mxu0 %v1566
        %1728 = vmatprep.subr.mxu0 0.0
        %1729 = vmatpush2.msra.mxu0 %v1565
        %1730 = vmatprep.subr.mxu0 0.0
        %1731 = vmatpush2.msra.mxu0 %v1564
        %1732 = vmatprep.subr.mxu0 0.0
        %1733 = vmatpush2.msra.mxu0 %v1563
        %1734 = vmatprep.subr.mxu0 0.0
        %1735 = vmatpush2.msra.mxu0 %v1562
        %1736 = vmatprep.mubr.f32.mxu0 %v1597
        %1737 = vmatmul.mubr.f32.gmra.mxu0 %v1594
        %v1738 = vpop.f32.mrf.mxu0
        %v1739 = vadd.f32 %v1669, %v1738
        %v1740 = vpop.f32.mrf.mxu0
        %1741 = vdwg.mxu0
        %v1742 = vld [vmem:[%s7] sm:$0xff]
        %v1743 = vld [vmem:[%s7 + $0x8] sm:$0xff]
        %v1744 = vld [vmem:[%s7 + $0x10] sm:$0xff]
        %v1745 = vld [vmem:[%s7 + $0x18] sm:$0xff]
        %v1746 = vld [vmem:[%s7 + $0x20] sm:$0xff]
        %v1747 = vld [vmem:[%s7 + $0x28] sm:$0xff]
        %v1748 = vld [vmem:[%s7 + $0x30] sm:$0xff]
        %v1749 = vld [vmem:[%s7 + $0x38] sm:$0xff]
        %v1750 = vld [vmem:[%s7 + $0x40] sm:$0xff]
        %v1751 = vld [vmem:[%s7 + $0x48] sm:$0xff]
        %v1752 = vld [vmem:[%s7 + $0x50] sm:$0xff]
        %v1753 = vld [vmem:[%s7 + $0x58] sm:$0xff]
        %v1754 = vld [vmem:[%s7 + $0x60] sm:$0xff]
        %v1755 = vld [vmem:[%s7 + $0x68] sm:$0xff]
        %v1756 = vld [vmem:[%s7 + $0x70] sm:$0xff]
        %v1757 = vld [vmem:[%s7 + $0x78] sm:$0xff]
        %v1758 = vld [vmem:[%s7 + $0x80] sm:$0xff]
        %v1759 = vld [vmem:[%s7 + $0x88] sm:$0xff]
        %v1760 = vld [vmem:[%s7 + $0x90] sm:$0xff]
        %v1761 = vld [vmem:[%s7 + $0x98] sm:$0xff]
        %v1762 = vld [vmem:[%s7 + $0xa0] sm:$0xff]
        %v1763 = vld [vmem:[%s7 + $0xa8] sm:$0xff]
        %v1764 = vld [vmem:[%s7 + $0xb0] sm:$0xff]
        %v1765 = vld [vmem:[%s7 + $0xb8] sm:$0xff]
        %v1766 = vld [vmem:[%s7 + $0xc0] sm:$0xff]
        %v1767 = vld [vmem:[%s7 + $0xc8] sm:$0xff]
        %v1768 = vld [vmem:[%s7 + $0xd0] sm:$0xff]
        %v1769 = vld [vmem:[%s7 + $0xd8] sm:$0xff]
        %v1770 = vld [vmem:[%s7 + $0xe0] sm:$0xff]
        %v1771 = vld [vmem:[%s7 + $0xe8] sm:$0xff]
        %v1772 = vld [vmem:[%s7 + $0xf0] sm:$0xff]
        %v1773 = vld [vmem:[%s7 + $0xf8] sm:$0xff]
        %v1774 = vld [vmem:[%s7 + $0x100] sm:$0xff]
        %v1775 = vld [vmem:[%s7 + $0x108] sm:$0xff]
        %v1776 = vld [vmem:[%s7 + $0x110] sm:$0xff]
        %v1777 = vld [vmem:[%s7 + $0x118] sm:$0xff]
        %v1778 = vld [vmem:[%s7 + $0x120] sm:$0xff]
        %v1779 = vld [vmem:[%s7 + $0x128] sm:$0xff]
        %v1780 = vld [vmem:[%s7 + $0x130] sm:$0xff]
        %v1781 = vld [vmem:[%s7 + $0x138] sm:$0xff]
        %v1782 = vld [vmem:[%s7 + $0x140] sm:$0xff]
        %v1783 = vld [vmem:[%s7 + $0x148] sm:$0xff]
        %v1784 = vld [vmem:[%s7 + $0x150] sm:$0xff]
        %v1785 = vld [vmem:[%s7 + $0x158] sm:$0xff]
        %v1786 = vld [vmem:[%s7 + $0x160] sm:$0xff]
        %v1787 = vld [vmem:[%s7 + $0x168] sm:$0xff]
        %v1788 = vld [vmem:[%s7 + $0x170] sm:$0xff]
        %v1789 = vld [vmem:[%s7 + $0x178] sm:$0xff]
        %v1790 = vld [vmem:[%s7 + $0x180] sm:$0xff]
        %v1791 = vld [vmem:[%s7 + $0x188] sm:$0xff]
        %v1792 = vld [vmem:[%s7 + $0x190] sm:$0xff]
        %v1793 = vld [vmem:[%s7 + $0x198] sm:$0xff]
        %v1794 = vld [vmem:[%s7 + $0x1a0] sm:$0xff]
        %v1795 = vld [vmem:[%s7 + $0x1a8] sm:$0xff]
        %v1796 = vld [vmem:[%s7 + $0x1b0] sm:$0xff]
        %v1797 = vld [vmem:[%s7 + $0x1b8] sm:$0xff]
        %v1798 = vld [vmem:[%s7 + $0x1c0] sm:$0xff]
        %v1799 = vld [vmem:[%s7 + $0x1c8] sm:$0xff]
        %v1800 = vld [vmem:[%s7 + $0x1d0] sm:$0xff]
        %v1801 = vld [vmem:[%s7 + $0x1d8] sm:$0xff]
        %v1802 = vld [vmem:[%s7 + $0x1e0] sm:$0xff]
        %v1803 = vld [vmem:[%s7 + $0x1e8] sm:$0xff]
        %v1804 = vld [vmem:[%s7 + $0x1f0] sm:$0xff]
        %v1805 = vld [vmem:[%s7 + $0x1f8] sm:$0xff]
        %1806 = vmatprep.subr.mxu0 0.0
        %1807 = vmatpush1.msra.mxu0 %v1757
        %1808 = vmatprep.subr.mxu0 0.0
        %1809 = vmatpush1.msra.mxu0 %v1756
        %1810 = vmatprep.subr.mxu0 0.0
        %1811 = vmatpush1.msra.mxu0 %v1755
        %1812 = vmatprep.subr.mxu0 0.0
        %1813 = vmatpush1.msra.mxu0 %v1754
        %1814 = vmatprep.subr.mxu0 0.0
        %1815 = vmatpush1.msra.mxu0 %v1753
        %1816 = vmatprep.subr.mxu0 0.0
        %1817 = vmatpush1.msra.mxu0 %v1752
        %1818 = vmatprep.subr.mxu0 0.0
        %1819 = vmatpush1.msra.mxu0 %v1751
        %1820 = vmatprep.subr.mxu0 0.0
        %1821 = vmatpush1.msra.mxu0 %v1750
        %1822 = vmatprep.subr.mxu0 0.0
        %1823 = vmatpush1.msra.mxu0 %v1749
        %1824 = vmatprep.subr.mxu0 0.0
        %1825 = vmatpush1.msra.mxu0 %v1748
        %1826 = vmatprep.subr.mxu0 0.0
        %1827 = vmatpush1.msra.mxu0 %v1747
        %1828 = vmatprep.subr.mxu0 0.0
        %1829 = vmatpush1.msra.mxu0 %v1746
        %1830 = vmatprep.subr.mxu0 0.0
        %1831 = vmatpush1.msra.mxu0 %v1745
        %1832 = vmatprep.subr.mxu0 0.0
        %1833 = vmatpush1.msra.mxu0 %v1744
        %1834 = vmatprep.subr.mxu0 0.0
        %1835 = vmatpush1.msra.mxu0 %v1743
        %1836 = vmatprep.subr.mxu0 0.0
        %1837 = vmatpush1.msra.mxu0 %v1742
        %1838 = vmatprep.subr.mxu0 0.0
        %1839 = vmatpush2.msra.mxu0 %v1773
        %1840 = vmatprep.subr.mxu0 0.0
        %1841 = vmatpush2.msra.mxu0 %v1772
        %1842 = vmatprep.subr.mxu0 0.0
        %1843 = vmatpush2.msra.mxu0 %v1771
        %1844 = vmatprep.subr.mxu0 0.0
        %1845 = vmatpush2.msra.mxu0 %v1770
        %1846 = vmatprep.subr.mxu0 0.0
        %1847 = vmatpush2.msra.mxu0 %v1769
        %1848 = vmatprep.subr.mxu0 0.0
        %1849 = vmatpush2.msra.mxu0 %v1768
        %1850 = vmatprep.subr.mxu0 0.0
        %1851 = vmatpush2.msra.mxu0 %v1767
        %1852 = vmatprep.subr.mxu0 0.0
        %1853 = vmatpush2.msra.mxu0 %v1766
        %1854 = vmatprep.subr.mxu0 0.0
        %1855 = vmatpush2.msra.mxu0 %v1765
        %1856 = vmatprep.subr.mxu0 0.0
        %1857 = vmatpush2.msra.mxu0 %v1764
        %1858 = vmatprep.subr.mxu0 0.0
        %1859 = vmatpush2.msra.mxu0 %v1763
        %1860 = vmatprep.subr.mxu0 0.0
        %1861 = vmatpush2.msra.mxu0 %v1762
        %1862 = vmatprep.subr.mxu0 0.0
        %1863 = vmatpush2.msra.mxu0 %v1761
        %1864 = vmatprep.subr.mxu0 0.0
        %1865 = vmatpush2.msra.mxu0 %v1760
        %1866 = vmatprep.subr.mxu0 0.0
        %1867 = vmatpush2.msra.mxu0 %v1759
        %1868 = vmatprep.subr.mxu0 0.0
        %1869 = vmatpush2.msra.mxu0 %v1758
        %1870 = vmatprep.mubr.f32.mxu0 %v1591
        %1871 = vmatmul.mubr.f32.gmra.mxu0 %v1588
        %v1872 = vpop.f32.mrf.mxu0
        %v1873 = vadd.f32 0.0, %v1872
        %v1874 = vpop.f32.mrf.mxu0
        %1875 = vdwg.mxu0
        %1876 = vmatprep.subr.mxu0 0.0
        %1877 = vmatpush1.msra.mxu0 %v1789
        %1878 = vmatprep.subr.mxu0 0.0
        %1879 = vmatpush1.msra.mxu0 %v1788
        %1880 = vmatprep.subr.mxu0 0.0
        %1881 = vmatpush1.msra.mxu0 %v1787
        %1882 = vmatprep.subr.mxu0 0.0
        %1883 = vmatpush1.msra.mxu0 %v1786
        %1884 = vmatprep.subr.mxu0 0.0
        %1885 = vmatpush1.msra.mxu0 %v1785
        %1886 = vmatprep.subr.mxu0 0.0
        %1887 = vmatpush1.msra.mxu0 %v1784
        %1888 = vmatprep.subr.mxu0 0.0
        %1889 = vmatpush1.msra.mxu0 %v1783
        %1890 = vmatprep.subr.mxu0 0.0
        %1891 = vmatpush1.msra.mxu0 %v1782
        %1892 = vmatprep.subr.mxu0 0.0
        %1893 = vmatpush1.msra.mxu0 %v1781
        %1894 = vmatprep.subr.mxu0 0.0
        %1895 = vmatpush1.msra.mxu0 %v1780
        %1896 = vmatprep.subr.mxu0 0.0
        %1897 = vmatpush1.msra.mxu0 %v1779
        %1898 = vmatprep.subr.mxu0 0.0
        %1899 = vmatpush1.msra.mxu0 %v1778
        %1900 = vmatprep.subr.mxu0 0.0
        %1901 = vmatpush1.msra.mxu0 %v1777
        %1902 = vmatprep.subr.mxu0 0.0
        %1903 = vmatpush1.msra.mxu0 %v1776
        %1904 = vmatprep.subr.mxu0 0.0
        %1905 = vmatpush1.msra.mxu0 %v1775
        %1906 = vmatprep.subr.mxu0 0.0
        %1907 = vmatpush1.msra.mxu0 %v1774
        %1908 = vmatprep.subr.mxu0 0.0
        %1909 = vmatpush2.msra.mxu0 %v1805
        %1910 = vmatprep.subr.mxu0 0.0
        %1911 = vmatpush2.msra.mxu0 %v1804
        %1912 = vmatprep.subr.mxu0 0.0
        %1913 = vmatpush2.msra.mxu0 %v1803
        %1914 = vmatprep.subr.mxu0 0.0
        %1915 = vmatpush2.msra.mxu0 %v1802
        %1916 = vmatprep.subr.mxu0 0.0
        %1917 = vmatpush2.msra.mxu0 %v1801
        %1918 = vmatprep.subr.mxu0 0.0
        %1919 = vmatpush2.msra.mxu0 %v1800
        %1920 = vmatprep.subr.mxu0 0.0
        %1921 = vmatpush2.msra.mxu0 %v1799
        %1922 = vmatprep.subr.mxu0 0.0
        %1923 = vmatpush2.msra.mxu0 %v1798
        %1924 = vmatprep.subr.mxu0 0.0
        %1925 = vmatpush2.msra.mxu0 %v1797
        %1926 = vmatprep.subr.mxu0 0.0
        %1927 = vmatpush2.msra.mxu0 %v1796
        %1928 = vmatprep.subr.mxu0 0.0
        %1929 = vmatpush2.msra.mxu0 %v1795
        %1930 = vmatprep.subr.mxu0 0.0
        %1931 = vmatpush2.msra.mxu0 %v1794
        %1932 = vmatprep.subr.mxu0 0.0
        %1933 = vmatpush2.msra.mxu0 %v1793
        %1934 = vmatprep.subr.mxu0 0.0
        %1935 = vmatpush2.msra.mxu0 %v1792
        %1936 = vmatprep.subr.mxu0 0.0
        %1937 = vmatpush2.msra.mxu0 %v1791
        %1938 = vmatprep.subr.mxu0 0.0
        %1939 = vmatpush2.msra.mxu0 %v1790
        %1940 = vmatprep.mubr.f32.mxu0 %v1597
        %1941 = vmatmul.mubr.f32.gmra.mxu0 %v1594
        %v1942 = vpop.f32.mrf.mxu0
        %v1943 = vadd.f32 %v1873, %v1942
        %v1944 = vpop.f32.mrf.mxu0
        %1945 = vdwg.mxu0
        %v1946 = vld [vmem:[%s8] sm:$0xff]
        %v1947 = vld [vmem:[%s8 + $0x8] sm:$0xff]
        %v1948 = vld [vmem:[%s8 + $0x10] sm:$0xff]
        %v1949 = vld [vmem:[%s8 + $0x18] sm:$0xff]
        %v1950 = vld [vmem:[%s8 + $0x20] sm:$0xff]
        %v1951 = vld [vmem:[%s8 + $0x28] sm:$0xff]
        %v1952 = vld [vmem:[%s8 + $0x30] sm:$0xff]
        %v1953 = vld [vmem:[%s8 + $0x38] sm:$0xff]
        %v1954 = vld [vmem:[%s8 + $0x40] sm:$0xff]
        %v1955 = vld [vmem:[%s8 + $0x48] sm:$0xff]
        %v1956 = vld [vmem:[%s8 + $0x50] sm:$0xff]
        %v1957 = vld [vmem:[%s8 + $0x58] sm:$0xff]
        %v1958 = vld [vmem:[%s8 + $0x60] sm:$0xff]
        %v1959 = vld [vmem:[%s8 + $0x68] sm:$0xff]
        %v1960 = vld [vmem:[%s8 + $0x70] sm:$0xff]
        %v1961 = vld [vmem:[%s8 + $0x78] sm:$0xff]
        %v1962 = vld [vmem:[%s8 + $0x80] sm:$0xff]
        %v1963 = vld [vmem:[%s8 + $0x88] sm:$0xff]
        %v1964 = vld [vmem:[%s8 + $0x90] sm:$0xff]
        %v1965 = vld [vmem:[%s8 + $0x98] sm:$0xff]
        %v1966 = vld [vmem:[%s8 + $0xa0] sm:$0xff]
        %v1967 = vld [vmem:[%s8 + $0xa8] sm:$0xff]
        %v1968 = vld [vmem:[%s8 + $0xb0] sm:$0xff]
        %v1969 = vld [vmem:[%s8 + $0xb8] sm:$0xff]
        %v1970 = vld [vmem:[%s8 + $0xc0] sm:$0xff]
        %v1971 = vld [vmem:[%s8 + $0xc8] sm:$0xff]
        %v1972 = vld [vmem:[%s8 + $0xd0] sm:$0xff]
        %v1973 = vld [vmem:[%s8 + $0xd8] sm:$0xff]
        %v1974 = vld [vmem:[%s8 + $0xe0] sm:$0xff]
        %v1975 = vld [vmem:[%s8 + $0xe8] sm:$0xff]
        %v1976 = vld [vmem:[%s8 + $0xf0] sm:$0xff]
        %v1977 = vld [vmem:[%s8 + $0xf8] sm:$0xff]
        %v1978 = vld [vmem:[%s8 + $0x100] sm:$0xff]
        %v1979 = vld [vmem:[%s8 + $0x108] sm:$0xff]
        %v1980 = vld [vmem:[%s8 + $0x110] sm:$0xff]
        %v1981 = vld [vmem:[%s8 + $0x118] sm:$0xff]
        %v1982 = vld [vmem:[%s8 + $0x120] sm:$0xff]
        %v1983 = vld [vmem:[%s8 + $0x128] sm:$0xff]
        %v1984 = vld [vmem:[%s8 + $0x130] sm:$0xff]
        %v1985 = vld [vmem:[%s8 + $0x138] sm:$0xff]
        %v1986 = vld [vmem:[%s8 + $0x140] sm:$0xff]
        %v1987 = vld [vmem:[%s8 + $0x148] sm:$0xff]
        %v1988 = vld [vmem:[%s8 + $0x150] sm:$0xff]
        %v1989 = vld [vmem:[%s8 + $0x158] sm:$0xff]
        %v1990 = vld [vmem:[%s8 + $0x160] sm:$0xff]
        %v1991 = vld [vmem:[%s8 + $0x168] sm:$0xff]
        %v1992 = vld [vmem:[%s8 + $0x170] sm:$0xff]
        %v1993 = vld [vmem:[%s8 + $0x178] sm:$0xff]
        %v1994 = vld [vmem:[%s8 + $0x180] sm:$0xff]
        %v1995 = vld [vmem:[%s8 + $0x188] sm:$0xff]
        %v1996 = vld [vmem:[%s8 + $0x190] sm:$0xff]
        %v1997 = vld [vmem:[%s8 + $0x198] sm:$0xff]
        %v1998 = vld [vmem:[%s8 + $0x1a0] sm:$0xff]
        %v1999 = vld [vmem:[%s8 + $0x1a8] sm:$0xff]
        %v2000 = vld [vmem:[%s8 + $0x1b0] sm:$0xff]
        %v2001 = vld [vmem:[%s8 + $0x1b8] sm:$0xff]
        %v2002 = vld [vmem:[%s8 + $0x1c0] sm:$0xff]
        %v2003 = vld [vmem:[%s8 + $0x1c8] sm:$0xff]
        %v2004 = vld [vmem:[%s8 + $0x1d0] sm:$0xff]
        %v2005 = vld [vmem:[%s8 + $0x1d8] sm:$0xff]
        %v2006 = vld [vmem:[%s8 + $0x1e0] sm:$0xff]
        %v2007 = vld [vmem:[%s8 + $0x1e8] sm:$0xff]
        %v2008 = vld [vmem:[%s8 + $0x1f0] sm:$0xff]
        %v2009 = vld [vmem:[%s8 + $0x1f8] sm:$0xff]
        %2010 = vmatprep.subr.mxu0 0.0
        %2011 = vmatpush1.msra.mxu0 %v1961
        %2012 = vmatprep.subr.mxu0 0.0
        %2013 = vmatpush1.msra.mxu0 %v1960
        %2014 = vmatprep.subr.mxu0 0.0
        %2015 = vmatpush1.msra.mxu0 %v1959
        %2016 = vmatprep.subr.mxu0 0.0
        %2017 = vmatpush1.msra.mxu0 %v1958
        %2018 = vmatprep.subr.mxu0 0.0
        %2019 = vmatpush1.msra.mxu0 %v1957
        %2020 = vmatprep.subr.mxu0 0.0
        %2021 = vmatpush1.msra.mxu0 %v1956
        %2022 = vmatprep.subr.mxu0 0.0
        %2023 = vmatpush1.msra.mxu0 %v1955
        %2024 = vmatprep.subr.mxu0 0.0
        %2025 = vmatpush1.msra.mxu0 %v1954
        %2026 = vmatprep.subr.mxu0 0.0
        %2027 = vmatpush1.msra.mxu0 %v1953
        %2028 = vmatprep.subr.mxu0 0.0
        %2029 = vmatpush1.msra.mxu0 %v1952
        %2030 = vmatprep.subr.mxu0 0.0
        %2031 = vmatpush1.msra.mxu0 %v1951
        %2032 = vmatprep.subr.mxu0 0.0
        %2033 = vmatpush1.msra.mxu0 %v1950
        %2034 = vmatprep.subr.mxu0 0.0
        %2035 = vmatpush1.msra.mxu0 %v1949
        %2036 = vmatprep.subr.mxu0 0.0
        %2037 = vmatpush1.msra.mxu0 %v1948
        %2038 = vmatprep.subr.mxu0 0.0
        %2039 = vmatpush1.msra.mxu0 %v1947
        %2040 = vmatprep.subr.mxu0 0.0
        %2041 = vmatpush1.msra.mxu0 %v1946
        %2042 = vmatprep.subr.mxu0 0.0
        %2043 = vmatpush2.msra.mxu0 %v1977
        %2044 = vmatprep.subr.mxu0 0.0
        %2045 = vmatpush2.msra.mxu0 %v1976
        %2046 = vmatprep.subr.mxu0 0.0
        %2047 = vmatpush2.msra.mxu0 %v1975
        %2048 = vmatprep.subr.mxu0 0.0
        %2049 = vmatpush2.msra.mxu0 %v1974
        %2050 = vmatprep.subr.mxu0 0.0
        %2051 = vmatpush2.msra.mxu0 %v1973
        %2052 = vmatprep.subr.mxu0 0.0
        %2053 = vmatpush2.msra.mxu0 %v1972
        %2054 = vmatprep.subr.mxu0 0.0
        %2055 = vmatpush2.msra.mxu0 %v1971
        %2056 = vmatprep.subr.mxu0 0.0
        %2057 = vmatpush2.msra.mxu0 %v1970
        %2058 = vmatprep.subr.mxu0 0.0
        %2059 = vmatpush2.msra.mxu0 %v1969
        %2060 = vmatprep.subr.mxu0 0.0
        %2061 = vmatpush2.msra.mxu0 %v1968
        %2062 = vmatprep.subr.mxu0 0.0
        %2063 = vmatpush2.msra.mxu0 %v1967
        %2064 = vmatprep.subr.mxu0 0.0
        %2065 = vmatpush2.msra.mxu0 %v1966
        %2066 = vmatprep.subr.mxu0 0.0
        %2067 = vmatpush2.msra.mxu0 %v1965
        %2068 = vmatprep.subr.mxu0 0.0
        %2069 = vmatpush2.msra.mxu0 %v1964
        %2070 = vmatprep.subr.mxu0 0.0
        %2071 = vmatpush2.msra.mxu0 %v1963
        %2072 = vmatprep.subr.mxu0 0.0
        %2073 = vmatpush2.msra.mxu0 %v1962
        %2074 = vmatprep.mubr.f32.mxu0 %v1591
        %2075 = vmatmul.mubr.f32.gmra.mxu0 %v1588
        %v2076 = vpop.f32.mrf.mxu0
        %v2077 = vadd.f32 0.0, %v2076
        %v2078 = vpop.f32.mrf.mxu0
        %2079 = vdwg.mxu0
        %2080 = vmatprep.subr.mxu0 0.0
        %2081 = vmatpush1.msra.mxu0 %v1993
        %2082 = vmatprep.subr.mxu0 0.0
        %2083 = vmatpush1.msra.mxu0 %v1992
        %2084 = vmatprep.subr.mxu0 0.0
        %2085 = vmatpush1.msra.mxu0 %v1991
        %2086 = vmatprep.subr.mxu0 0.0
        %2087 = vmatpush1.msra.mxu0 %v1990
        %2088 = vmatprep.subr.mxu0 0.0
        %2089 = vmatpush1.msra.mxu0 %v1989
        %2090 = vmatprep.subr.mxu0 0.0
        %2091 = vmatpush1.msra.mxu0 %v1988
        %2092 = vmatprep.subr.mxu0 0.0
        %2093 = vmatpush1.msra.mxu0 %v1987
        %2094 = vmatprep.subr.mxu0 0.0
        %2095 = vmatpush1.msra.mxu0 %v1986
        %2096 = vmatprep.subr.mxu0 0.0
        %2097 = vmatpush1.msra.mxu0 %v1985
        %2098 = vmatprep.subr.mxu0 0.0
        %2099 = vmatpush1.msra.mxu0 %v1984
        %2100 = vmatprep.subr.mxu0 0.0
        %2101 = vmatpush1.msra.mxu0 %v1983
        %2102 = vmatprep.subr.mxu0 0.0
        %2103 = vmatpush1.msra.mxu0 %v1982
        %2104 = vmatprep.subr.mxu0 0.0
        %2105 = vmatpush1.msra.mxu0 %v1981
        %2106 = vmatprep.subr.mxu0 0.0
        %2107 = vmatpush1.msra.mxu0 %v1980
        %2108 = vmatprep.subr.mxu0 0.0
        %2109 = vmatpush1.msra.mxu0 %v1979
        %2110 = vmatprep.subr.mxu0 0.0
        %2111 = vmatpush1.msra.mxu0 %v1978
        %2112 = vmatprep.subr.mxu0 0.0
        %2113 = vmatpush2.msra.mxu0 %v2009
        %2114 = vmatprep.subr.mxu0 0.0
        %2115 = vmatpush2.msra.mxu0 %v2008
        %2116 = vmatprep.subr.mxu0 0.0
        %2117 = vmatpush2.msra.mxu0 %v2007
        %2118 = vmatprep.subr.mxu0 0.0
        %2119 = vmatpush2.msra.mxu0 %v2006
        %2120 = vmatprep.subr.mxu0 0.0
        %2121 = vmatpush2.msra.mxu0 %v2005
        %2122 = vmatprep.subr.mxu0 0.0
        %2123 = vmatpush2.msra.mxu0 %v2004
        %2124 = vmatprep.subr.mxu0 0.0
        %2125 = vmatpush2.msra.mxu0 %v2003
        %2126 = vmatprep.subr.mxu0 0.0
        %2127 = vmatpush2.msra.mxu0 %v2002
        %2128 = vmatprep.subr.mxu0 0.0
        %2129 = vmatpush2.msra.mxu0 %v2001
        %2130 = vmatprep.subr.mxu0 0.0
        %2131 = vmatpush2.msra.mxu0 %v2000
        %2132 = vmatprep.subr.mxu0 0.0
        %2133 = vmatpush2.msra.mxu0 %v1999
        %2134 = vmatprep.subr.mxu0 0.0
        %2135 = vmatpush2.msra.mxu0 %v1998
        %2136 = vmatprep.subr.mxu0 0.0
        %2137 = vmatpush2.msra.mxu0 %v1997
        %2138 = vmatprep.subr.mxu0 0.0
        %2139 = vmatpush2.msra.mxu0 %v1996
        %2140 = vmatprep.subr.mxu0 0.0
        %2141 = vmatpush2.msra.mxu0 %v1995
        %2142 = vmatprep.subr.mxu0 0.0
        %2143 = vmatpush2.msra.mxu0 %v1994
        %2144 = vmatprep.mubr.f32.mxu0 %v1597
        %2145 = vmatmul.mubr.f32.gmra.mxu0 %v1594
        %v2146 = vpop.f32.mrf.mxu0
        %v2147 = vadd.f32 %v2077, %v2146
        %v2148 = vpop.f32.mrf.mxu0
        %2149 = vdwg.mxu0
        %v2150 = vld [vmem:[%s9] sm:$0xff]
        %v2151 = vld [vmem:[%s9 + $0x8] sm:$0xff]
        %v2152 = vld [vmem:[%s9 + $0x10] sm:$0xff]
        %v2153 = vld [vmem:[%s9 + $0x18] sm:$0xff]
        %v2154 = vld [vmem:[%s9 + $0x20] sm:$0xff]
        %v2155 = vld [vmem:[%s9 + $0x28] sm:$0xff]
        %v2156 = vld [vmem:[%s9 + $0x30] sm:$0xff]
        %v2157 = vld [vmem:[%s9 + $0x38] sm:$0xff]
        %v2158 = vld [vmem:[%s10] sm:$0xf]
        %v2160 = vlaneseq
        %v2161 = vshrl.u32 %v2160, 7
        %v2162 = vsub.s32 0, %v2161
        %v2163 = vrot.slane %v2158, %v2162
        %v2164 = vlaneseq
        %v2165 = vshrl.u32 %v2164, 7
        %v2166 = vsub.s32 1, %v2165
        %v2167 = vrot.slane %v2158, %v2166
        %v2168 = vlaneseq
        %v2169 = vshrl.u32 %v2168, 7
        %v2170 = vsub.s32 2, %v2169
        %v2171 = vrot.slane %v2158, %v2170
        %v2172 = vlaneseq
        %v2173 = vshrl.u32 %v2172, 7
        %v2174 = vsub.s32 3, %v2173
        %v2175 = vrot.slane %v2158, %v2174
        %vm2180 = vcmask 130048
        %v2182 = vsel %vm2180, %v1739, 0
        %2184 = vmatprep.subr.mxu0 0.0
        %2185 = vmatpush1.msra.mxu0 0.0
        %2186 = vmatprep.subr.mxu0 0.0
        %2187 = vmatpush1.msra.mxu0 0.0
        %2188 = vmatprep.subr.mxu0 0.0
        %2189 = vmatpush1.msra.mxu0 0.0
        %2190 = vmatprep.subr.mxu0 0.0
        %2191 = vmatpush1.msra.mxu0 0.0
        %2192 = vmatprep.subr.mxu0 0.0
        %2193 = vmatpush1.msra.mxu0 0.0
        %2194 = vmatprep.subr.mxu0 0.0
        %2195 = vmatpush1.msra.mxu0 0.0
        %2196 = vmatprep.subr.mxu0 0.0
        %2197 = vmatpush1.msra.mxu0 0.0
        %2198 = vmatprep.subr.mxu0 0.0
        %2199 = vmatpush1.msra.mxu0 0.0
        %2200 = vmatprep.subr.mxu0 0.0
        %2201 = vmatpush1.msra.mxu0 0.0
        %2202 = vmatprep.subr.mxu0 0.0
        %2203 = vmatpush1.msra.mxu0 0.0
        %2204 = vmatprep.subr.mxu0 0.0
        %2205 = vmatpush1.msra.mxu0 0.0
        %2206 = vmatprep.subr.mxu0 0.0
        %2207 = vmatpush1.msra.mxu0 0.0
        %2208 = vmatprep.subr.mxu0 0.0
        %2209 = vmatpush1.msra.mxu0 0.0
        %2210 = vmatprep.subr.mxu0 0.0
        %2211 = vmatpush1.msra.mxu0 0.0
        %2212 = vmatprep.subr.mxu0 %v2155
        %2213 = vmatpush1.msra.mxu0 %v2154
        %2214 = vmatprep.subr.mxu0 %v2151
        %2215 = vmatpush1.msra.mxu0 %v2150
        %2216 = vmatprep.subr.mxu0 0.0
        %2217 = vmatpush2.msra.mxu0 0.0
        %2218 = vmatprep.subr.mxu0 0.0
        %2219 = vmatpush2.msra.mxu0 0.0
        %2220 = vmatprep.subr.mxu0 0.0
        %2221 = vmatpush2.msra.mxu0 0.0
        %2222 = vmatprep.subr.mxu0 0.0
        %2223 = vmatpush2.msra.mxu0 0.0
        %2224 = vmatprep.subr.mxu0 0.0
        %2225 = vmatpush2.msra.mxu0 0.0
        %2226 = vmatprep.subr.mxu0 0.0
        %2227 = vmatpush2.msra.mxu0 0.0
        %2228 = vmatprep.subr.mxu0 0.0
        %2229 = vmatpush2.msra.mxu0 0.0
        %2230 = vmatprep.subr.mxu0 0.0
        %2231 = vmatpush2.msra.mxu0 0.0
        %2232 = vmatprep.subr.mxu0 0.0
        %2233 = vmatpush2.msra.mxu0 0.0
        %2234 = vmatprep.subr.mxu0 0.0
        %2235 = vmatpush2.msra.mxu0 0.0
        %2236 = vmatprep.subr.mxu0 0.0
        %2237 = vmatpush2.msra.mxu0 0.0
        %2238 = vmatprep.subr.mxu0 0.0
        %2239 = vmatpush2.msra.mxu0 0.0
        %2240 = vmatprep.subr.mxu0 0.0
        %2241 = vmatpush2.msra.mxu0 0.0
        %2242 = vmatprep.subr.mxu0 0.0
        %2243 = vmatpush2.msra.mxu0 0.0
        %2244 = vmatprep.subr.mxu0 0.0
        %2245 = vmatpush2.msra.mxu0 0.0
        %2246 = vmatprep.subr.mxu0 0.0
        %2247 = vmatpush2.msra.mxu0 0.0
        %2248 = vmatprep.mubr.f32.mxu0 0.0
        %2249 = vmatmul.mubr.f32.gmra.mxu0 %v2182
        %v2250 = vpop.f32.mrf.mxu0
        %v2251 = vadd.f32 %v2163, %v2250
        %v2252 = vpop.f32.mrf.mxu0
        %v2253 = vadd.f32 %v2167, %v2252
        %2254 = vdwg.mxu0
        %2255 = vmatprep.subr.mxu0 0.0
        %2256 = vmatpush1.msra.mxu0 0.0
        %2257 = vmatprep.subr.mxu0 0.0
        %2258 = vmatpush1.msra.mxu0 0.0
        %2259 = vmatprep.subr.mxu0 0.0
        %2260 = vmatpush1.msra.mxu0 0.0
        %2261 = vmatprep.subr.mxu0 0.0
        %2262 = vmatpush1.msra.mxu0 0.0
        %2263 = vmatprep.subr.mxu0 0.0
        %2264 = vmatpush1.msra.mxu0 0.0
        %2265 = vmatprep.subr.mxu0 0.0
        %2266 = vmatpush1.msra.mxu0 0.0
        %2267 = vmatprep.subr.mxu0 0.0
        %2268 = vmatpush1.msra.mxu0 0.0
        %2269 = vmatprep.subr.mxu0 0.0
        %2270 = vmatpush1.msra.mxu0 0.0
        %2271 = vmatprep.subr.mxu0 0.0
        %2272 = vmatpush1.msra.mxu0 0.0
        %2273 = vmatprep.subr.mxu0 0.0
        %2274 = vmatpush1.msra.mxu0 0.0
        %2275 = vmatprep.subr.mxu0 0.0
        %2276 = vmatpush1.msra.mxu0 0.0
        %2277 = vmatprep.subr.mxu0 0.0
        %2278 = vmatpush1.msra.mxu0 0.0
        %2279 = vmatprep.subr.mxu0 0.0
        %2280 = vmatpush1.msra.mxu0 0.0
        %2281 = vmatprep.subr.mxu0 0.0
        %2282 = vmatpush1.msra.mxu0 0.0
        %2283 = vmatprep.subr.mxu0 %v2157
        %2284 = vmatpush1.msra.mxu0 %v2156
        %2285 = vmatprep.subr.mxu0 %v2153
        %2286 = vmatpush1.msra.mxu0 %v2152
        %2287 = vmatprep.subr.mxu0 0.0
        %2288 = vmatpush2.msra.mxu0 0.0
        %2289 = vmatprep.subr.mxu0 0.0
        %2290 = vmatpush2.msra.mxu0 0.0
        %2291 = vmatprep.subr.mxu0 0.0
        %2292 = vmatpush2.msra.mxu0 0.0
        %2293 = vmatprep.subr.mxu0 0.0
        %2294 = vmatpush2.msra.mxu0 0.0
        %2295 = vmatprep.subr.mxu0 0.0
        %2296 = vmatpush2.msra.mxu0 0.0
        %2297 = vmatprep.subr.mxu0 0.0
        %2298 = vmatpush2.msra.mxu0 0.0
        %2299 = vmatprep.subr.mxu0 0.0
        %2300 = vmatpush2.msra.mxu0 0.0
        %2301 = vmatprep.subr.mxu0 0.0
        %2302 = vmatpush2.msra.mxu0 0.0
        %2303 = vmatprep.subr.mxu0 0.0
        %2304 = vmatpush2.msra.mxu0 0.0
        %2305 = vmatprep.subr.mxu0 0.0
        %2306 = vmatpush2.msra.mxu0 0.0
        %2307 = vmatprep.subr.mxu0 0.0
        %2308 = vmatpush2.msra.mxu0 0.0
        %2309 = vmatprep.subr.mxu0 0.0
        %2310 = vmatpush2.msra.mxu0 0.0
        %2311 = vmatprep.subr.mxu0 0.0
        %2312 = vmatpush2.msra.mxu0 0.0
        %2313 = vmatprep.subr.mxu0 0.0
        %2314 = vmatpush2.msra.mxu0 0.0
        %2315 = vmatprep.subr.mxu0 0.0
        %2316 = vmatpush2.msra.mxu0 0.0
        %2317 = vmatprep.subr.mxu0 0.0
        %2318 = vmatpush2.msra.mxu0 0.0
        %2319 = vmatprep.mubr.f32.mxu0 0.0
        %2320 = vmatmul.mubr.f32.gmra.mxu0 %v2182
        %v2321 = vpop.f32.mrf.mxu0
        %v2322 = vadd.f32 %v2171, %v2321
        %v2323 = vpop.f32.mrf.mxu0
        %v2324 = vadd.f32 %v2175, %v2323
        %2325 = vdwg.mxu0
        %v2326 = vmax.f32 %v2251, 0.0
        %v2327 = vmax.f32 %v2253, 0.0
        %v2328 = vmax.f32 %v2322, 0.0
        %v2329 = vmax.f32 %v2324, 0.0
        %vm2330 = vcmp.ne.f32.partialorder %v2251, %v2251
        %vm2331 = vcmp.ne.f32.partialorder %v2253, %v2253
        %vm2332 = vcmp.ne.f32.partialorder %v2322, %v2322
        %vm2333 = vcmp.ne.f32.partialorder %v2324, %v2324
        %v2334 = vadd.f32 %v2251, 0.0
        %v2335 = vadd.f32 %v2253, 0.0
        %v2336 = vadd.f32 %v2322, 0.0
        %v2337 = vadd.f32 %v2324, 0.0
        %v2338 = vand.u32 2147483647, %v2251
        %v2339 = vand.u32 2147483647, %v2253
        %v2340 = vand.u32 2147483647, %v2322
        %v2341 = vand.u32 2147483647, %v2324
        %v2342 = vsub.f32 0.0, %v2338
        %v2343 = vsub.f32 0.0, %v2339
        %v2344 = vsub.f32 0.0, %v2340
        %v2345 = vsub.f32 0.0, %v2341
        %v2346 = vmul.f32 %v2342, 1.442695
        %v2347 = vpow.pop %v2346
        %v2348 = vmul.f32 %v2343, 1.442695
        %v2349 = vpow.pop %v2348
        %v2350 = vmul.f32 %v2344, 1.442695
        %v2351 = vpow.pop %v2350
        %v2352 = vmul.f32 %v2345, 1.442695
        %v2353 = vpow.pop %v2352
        %v2354 = vadd.f32 %v2347, 1.0
        %v2355 = vlog2.pop %v2354
        %v2356 = vmul.f32 %v2355, 0.6931472
        %v2357 = vmul.f32 -0.5, %v2347
        %v2358 = vadd.f32 %v2357, 1.0
        %v2359 = vmul.f32 %v2358, %v2347
        %v2360 = vand.u32 2147483647, %v2347
        %vm2361 = vcmp.lt.f32.partialorder %v2360, 0.0004427343
        %v2362 = vsel %vm2361, %v2359, %v2356
        %v2363 = vadd.f32 %v2349, 1.0
        %v2364 = vlog2.pop %v2363
        %v2365 = vmul.f32 %v2364, 0.6931472
        %v2366 = vmul.f32 -0.5, %v2349
        %v2367 = vadd.f32 %v2366, 1.0
        %v2368 = vmul.f32 %v2367, %v2349
        %v2369 = vand.u32 2147483647, %v2349
        %vm2370 = vcmp.lt.f32.partialorder %v2369, 0.0004427343
        %v2371 = vsel %vm2370, %v2368, %v2365
        %v2372 = vadd.f32 %v2351, 1.0
        %v2373 = vlog2.pop %v2372
        %v2374 = vmul.f32 %v2373, 0.6931472
        %v2375 = vmul.f32 -0.5, %v2351
        %v2376 = vadd.f32 %v2375, 1.0
        %v2377 = vmul.f32 %v2376, %v2351
        %v2378 = vand.u32 2147483647, %v2351
        %vm2379 = vcmp.lt.f32.partialorder %v2378, 0.0004427343
        %v2380 = vsel %vm2379, %v2377, %v2374
        %v2381 = vadd.f32 %v2353, 1.0
        %v2382 = vlog2.pop %v2381
        %v2383 = vmul.f32 %v2382, 0.6931472
        %v2384 = vmul.f32 -0.5, %v2353
        %v2385 = vadd.f32 %v2384, 1.0
        %v2386 = vmul.f32 %v2385, %v2353
        %v2387 = vand.u32 2147483647, %v2353
        %vm2388 = vcmp.lt.f32.partialorder %v2387, 0.0004427343
        %v2389 = vsel %vm2388, %v2386, %v2383
        %v2390 = vadd.f32 %v2326, %v2362
        %v2391 = vadd.f32 %v2327, %v2371
        %v2392 = vadd.f32 %v2328, %v2380
        %v2393 = vadd.f32 %v2329, %v2389
        %v2394 = vsel %vm2330, %v2334, %v2390
        %v2395 = vsel %vm2331, %v2335, %v2391
        %v2396 = vsel %vm2332, %v2336, %v2392
        %v2397 = vsel %vm2333, %v2337, %v2393
        %v2398 = vld [vmem:[%s11] sm:$0xff]
        %v2399 = vld [vmem:[%s11 + $0x8] sm:$0xff]
        %v2400 = vld [vmem:[%s11 + $0x10] sm:$0xff]
        %v2401 = vld [vmem:[%s11 + $0x18] sm:$0xff]
        %v2402 = vld [vmem:[%s11 + $0x20] sm:$0xff]
        %v2403 = vld [vmem:[%s11 + $0x28] sm:$0xff]
        %v2404 = vld [vmem:[%s11 + $0x30] sm:$0xff]
        %v2405 = vld [vmem:[%s11 + $0x38] sm:$0xff]
        %v2410 = vcombine.low %v2394, %v2395
        %v2411 = vcombine.high %v2394, %v2395
        %v2412 = vcombine.low %v2396, %v2397
        %v2413 = vcombine.high %v2396, %v2397
        %v2415 = vunpack.c.l.s4 1966171168
        %v2416 = vunpack.c.0.s8 %v2415
        %v2417 = vlaneseq
        %v2418 = vshrl.u32 %v2417, 7
        %v2419 = vsub.s32 %v2416, %v2418
        %v2420 = vrot.slane %v2410, %v2419
        %v2422 = vunpack.c.l.s4 1966171168
        %v2423 = vunpack.c.0.s8 %v2422
        %v2424 = vlaneseq
        %v2425 = vshrl.u32 %v2424, 7
        %v2426 = vsub.s32 %v2423, %v2425
        %v2427 = vrot.slane %v2411, %v2426
        %v2429 = vunpack.c.l.s4 1966171168
        %v2430 = vunpack.c.0.s8 %v2429
        %v2431 = vlaneseq
        %v2432 = vshrl.u32 %v2431, 7
        %v2433 = vsub.s32 %v2430, %v2432
        %v2434 = vrot.slane %v2412, %v2433
        %v2436 = vunpack.c.l.s4 1966171168
        %v2437 = vunpack.c.0.s8 %v2436
        %v2438 = vlaneseq
        %v2439 = vshrl.u32 %v2438, 7
        %v2440 = vsub.s32 %v2437, %v2439
        %v2441 = vrot.slane %v2413, %v2440
        %v2442 = vcombine.low %v2420, %v2434
        %v2443 = vcombine.high %v2420, %v2434
        %v2444 = vcombine.low %v2427, %v2441
        %v2445 = vcombine.high %v2427, %v2441
        %v2447 = vunpack.c.l.s4 1966171168
        %v2448 = vunpack.c.0.s8 %v2447
        %v2449 = vlaneseq
        %v2450 = vshrl.u32 %v2449, 7
        %v2451 = vsub.s32 %v2448, %v2450
        %v2452 = vrot.slane %v2442, %v2451
        %v2454 = vunpack.c.l.s4 1966171168
        %v2455 = vunpack.c.0.s8 %v2454
        %v2456 = vlaneseq
        %v2457 = vshrl.u32 %v2456, 7
        %v2458 = vsub.s32 %v2455, %v2457
        %v2459 = vrot.slane %v2444, %v2458
        %v2461 = vunpack.c.l.s4 1966171168
        %v2462 = vunpack.c.0.s8 %v2461
        %v2463 = vlaneseq
        %v2464 = vshrl.u32 %v2463, 7
        %v2465 = vsub.s32 %v2462, %v2464
        %v2466 = vrot.slane %v2443, %v2465
        %v2468 = vunpack.c.l.s4 1966171168
        %v2469 = vunpack.c.0.s8 %v2468
        %v2470 = vlaneseq
        %v2471 = vshrl.u32 %v2470, 7
        %v2472 = vsub.s32 %v2469, %v2471
        %v2473 = vrot.slane %v2445, %v2472
        %v2474 = vcombine.high %v2452, %v2452
        %v2475 = vcombine.high %v2459, %v2459
        %v2476 = vcombine.high %v2466, %v2466
        %v2477 = vcombine.high %v2473, %v2473
        %v2478 = vlaneseq
        %v2479 = vshrl.u32 %v2478, 7
        %v2480 = vsub.s32 0, %v2479
        %v2481 = vrot.slane %v2452, %v2480
        %v2482 = vlaneseq
        %v2483 = vshrl.u32 %v2482, 7
        %v2484 = vsub.s32 1, %v2483
        %v2485 = vrot.slane %v2452, %v2484
        %v2486 = vlaneseq
        %v2487 = vshrl.u32 %v2486, 7
        %v2488 = vsub.s32 2, %v2487
        %v2489 = vrot.slane %v2452, %v2488
        %v2490 = vlaneseq
        %v2491 = vshrl.u32 %v2490, 7
        %v2492 = vsub.s32 3, %v2491
        %v2493 = vrot.slane %v2452, %v2492
        %v2494 = vlaneseq
        %v2495 = vshrl.u32 %v2494, 7
        %v2496 = vsub.s32 0, %v2495
        %v2497 = vrot.slane %v2466, %v2496
        %v2498 = vlaneseq
        %v2499 = vshrl.u32 %v2498, 7
        %v2500 = vsub.s32 1, %v2499
        %v2501 = vrot.slane %v2466, %v2500
        %v2502 = vlaneseq
        %v2503 = vshrl.u32 %v2502, 7
        %v2504 = vsub.s32 2, %v2503
        %v2505 = vrot.slane %v2466, %v2504
        %v2506 = vlaneseq
        %v2507 = vshrl.u32 %v2506, 7
        %v2508 = vsub.s32 3, %v2507
        %v2509 = vrot.slane %v2466, %v2508
        %v2510 = vlaneseq
        %v2511 = vshrl.u32 %v2510, 7
        %v2512 = vsub.s32 0, %v2511
        %v2513 = vrot.slane %v2474, %v2512
        %v2514 = vlaneseq
        %v2515 = vshrl.u32 %v2514, 7
        %v2516 = vsub.s32 1, %v2515
        %v2517 = vrot.slane %v2474, %v2516
        %v2518 = vlaneseq
        %v2519 = vshrl.u32 %v2518, 7
        %v2520 = vsub.s32 2, %v2519
        %v2521 = vrot.slane %v2474, %v2520
        %v2522 = vlaneseq
        %v2523 = vshrl.u32 %v2522, 7
        %v2524 = vsub.s32 3, %v2523
        %v2525 = vrot.slane %v2474, %v2524
        %v2526 = vlaneseq
        %v2527 = vshrl.u32 %v2526, 7
        %v2528 = vsub.s32 0, %v2527
        %v2529 = vrot.slane %v2476, %v2528
        %v2530 = vlaneseq
        %v2531 = vshrl.u32 %v2530, 7
        %v2532 = vsub.s32 1, %v2531
        %v2533 = vrot.slane %v2476, %v2532
        %v2534 = vlaneseq
        %v2535 = vshrl.u32 %v2534, 7
        %v2536 = vsub.s32 2, %v2535
        %v2537 = vrot.slane %v2476, %v2536
        %v2538 = vlaneseq
        %v2539 = vshrl.u32 %v2538, 7
        %v2540 = vsub.s32 3, %v2539
        %v2541 = vrot.slane %v2476, %v2540
        %v2542 = vlaneseq
        %v2543 = vshrl.u32 %v2542, 7
        %v2544 = vsub.s32 0, %v2543
        %v2545 = vrot.slane %v2459, %v2544
        %v2546 = vlaneseq
        %v2547 = vshrl.u32 %v2546, 7
        %v2548 = vsub.s32 1, %v2547
        %v2549 = vrot.slane %v2459, %v2548
        %v2550 = vlaneseq
        %v2551 = vshrl.u32 %v2550, 7
        %v2552 = vsub.s32 2, %v2551
        %v2553 = vrot.slane %v2459, %v2552
        %v2554 = vlaneseq
        %v2555 = vshrl.u32 %v2554, 7
        %v2556 = vsub.s32 3, %v2555
        %v2557 = vrot.slane %v2459, %v2556
        %v2558 = vlaneseq
        %v2559 = vshrl.u32 %v2558, 7
        %v2560 = vsub.s32 0, %v2559
        %v2561 = vrot.slane %v2473, %v2560
        %v2562 = vlaneseq
        %v2563 = vshrl.u32 %v2562, 7
        %v2564 = vsub.s32 1, %v2563
        %v2565 = vrot.slane %v2473, %v2564
        %v2566 = vlaneseq
        %v2567 = vshrl.u32 %v2566, 7
        %v2568 = vsub.s32 2, %v2567
        %v2569 = vrot.slane %v2473, %v2568
        %v2570 = vlaneseq
        %v2571 = vshrl.u32 %v2570, 7
        %v2572 = vsub.s32 3, %v2571
        %v2573 = vrot.slane %v2473, %v2572
        %v2574 = vlaneseq
        %v2575 = vshrl.u32 %v2574, 7
        %v2576 = vsub.s32 0, %v2575
        %v2577 = vrot.slane %v2475, %v2576
        %v2578 = vlaneseq
        %v2579 = vshrl.u32 %v2578, 7
        %v2580 = vsub.s32 1, %v2579
        %v2581 = vrot.slane %v2475, %v2580
        %v2582 = vlaneseq
        %v2583 = vshrl.u32 %v2582, 7
        %v2584 = vsub.s32 2, %v2583
        %v2585 = vrot.slane %v2475, %v2584
        %v2586 = vlaneseq
        %v2587 = vshrl.u32 %v2586, 7
        %v2588 = vsub.s32 3, %v2587
        %v2589 = vrot.slane %v2475, %v2588
        %v2590 = vlaneseq
        %v2591 = vshrl.u32 %v2590, 7
        %v2592 = vsub.s32 0, %v2591
        %v2593 = vrot.slane %v2477, %v2592
        %v2594 = vlaneseq
        %v2595 = vshrl.u32 %v2594, 7
        %v2596 = vsub.s32 1, %v2595
        %v2597 = vrot.slane %v2477, %v2596
        %v2598 = vlaneseq
        %v2599 = vshrl.u32 %v2598, 7
        %v2600 = vsub.s32 2, %v2599
        %v2601 = vrot.slane %v2477, %v2600
        %v2602 = vlaneseq
        %v2603 = vshrl.u32 %v2602, 7
        %v2604 = vsub.s32 3, %v2603
        %v2605 = vrot.slane %v2477, %v2604
        %v2638 = vmul.f32 %v2481, %v2398
        %v2639 = vmul.f32 %v2485, %v2399
        %v2640 = vmul.f32 %v2489, %v2400
        %v2641 = vmul.f32 %v2493, %v2401
        %v2642 = vmul.f32 %v2481, %v2402
        %v2643 = vmul.f32 %v2485, %v2403
        %v2644 = vmul.f32 %v2489, %v2404
        %v2645 = vmul.f32 %v2493, %v2405
        %v2646 = vmul.f32 %v2497, %v2398
        %v2647 = vmul.f32 %v2501, %v2399
        %v2648 = vmul.f32 %v2505, %v2400
        %v2649 = vmul.f32 %v2509, %v2401
        %v2650 = vmul.f32 %v2497, %v2402
        %v2651 = vmul.f32 %v2501, %v2403
        %v2652 = vmul.f32 %v2505, %v2404
        %v2653 = vmul.f32 %v2509, %v2405
        %v2654 = vmul.f32 %v2513, %v2398
        %v2655 = vmul.f32 %v2517, %v2399
        %v2656 = vmul.f32 %v2521, %v2400
        %v2657 = vmul.f32 %v2525, %v2401
        %v2658 = vmul.f32 %v2513, %v2402
        %v2659 = vmul.f32 %v2517, %v2403
        %v2660 = vmul.f32 %v2521, %v2404
        %v2661 = vmul.f32 %v2525, %v2405
        %v2662 = vmul.f32 %v2529, %v2398
        %v2663 = vmul.f32 %v2533, %v2399
        %v2664 = vmul.f32 %v2537, %v2400
        %v2665 = vmul.f32 %v2541, %v2401
        %v2666 = vmul.f32 %v2529, %v2402
        %v2667 = vmul.f32 %v2533, %v2403
        %v2668 = vmul.f32 %v2537, %v2404
        %v2669 = vmul.f32 %v2541, %v2405
        %v2670 = vmul.f32 %v2545, %v2398
        %v2671 = vmul.f32 %v2549, %v2399
        %v2672 = vmul.f32 %v2553, %v2400
        %v2673 = vmul.f32 %v2557, %v2401
        %v2674 = vmul.f32 %v2545, %v2402
        %v2675 = vmul.f32 %v2549, %v2403
        %v2676 = vmul.f32 %v2553, %v2404
        %v2677 = vmul.f32 %v2557, %v2405
        %v2678 = vmul.f32 %v2561, %v2398
        %v2679 = vmul.f32 %v2565, %v2399
        %v2680 = vmul.f32 %v2569, %v2400
        %v2681 = vmul.f32 %v2573, %v2401
        %v2682 = vmul.f32 %v2561, %v2402
        %v2683 = vmul.f32 %v2565, %v2403
        %v2684 = vmul.f32 %v2569, %v2404
        %v2685 = vmul.f32 %v2573, %v2405
        %v2686 = vmul.f32 %v2577, %v2398
        %v2687 = vmul.f32 %v2581, %v2399
        %v2688 = vmul.f32 %v2585, %v2400
        %v2689 = vmul.f32 %v2589, %v2401
        %v2690 = vmul.f32 %v2577, %v2402
        %v2691 = vmul.f32 %v2581, %v2403
        %v2692 = vmul.f32 %v2585, %v2404
        %v2693 = vmul.f32 %v2589, %v2405
        %v2694 = vmul.f32 %v2593, %v2398
        %v2695 = vmul.f32 %v2597, %v2399
        %v2696 = vmul.f32 %v2601, %v2400
        %v2697 = vmul.f32 %v2605, %v2401
        %v2698 = vmul.f32 %v2593, %v2402
        %v2699 = vmul.f32 %v2597, %v2403
        %v2700 = vmul.f32 %v2601, %v2404
        %v2701 = vmul.f32 %v2605, %v2405
        %v2702 = vmul.f32 %v2638, 1.442695
        %v2703 = vpow.pop %v2702
        %v2704 = vmul.f32 %v2639, 1.442695
        %v2705 = vpow.pop %v2704
        %v2706 = vmul.f32 %v2640, 1.442695
        %v2707 = vpow.pop %v2706
        %v2708 = vmul.f32 %v2641, 1.442695
        %v2709 = vpow.pop %v2708
        %v2710 = vmul.f32 %v2642, 1.442695
        %v2711 = vpow.pop %v2710
        %v2712 = vmul.f32 %v2643, 1.442695
        %v2713 = vpow.pop %v2712
        %v2714 = vmul.f32 %v2644, 1.442695
        %v2715 = vpow.pop %v2714
        %v2716 = vmul.f32 %v2645, 1.442695
        %v2717 = vpow.pop %v2716
        %v2718 = vmul.f32 %v2646, 1.442695
        %v2719 = vpow.pop %v2718
        %v2720 = vmul.f32 %v2647, 1.442695
        %v2721 = vpow.pop %v2720
        %v2722 = vmul.f32 %v2648, 1.442695
        %v2723 = vpow.pop %v2722
        %v2724 = vmul.f32 %v2649, 1.442695
        %v2725 = vpow.pop %v2724
        %v2726 = vmul.f32 %v2650, 1.442695
        %v2727 = vpow.pop %v2726
        %v2728 = vmul.f32 %v2651, 1.442695
        %v2729 = vpow.pop %v2728
        %v2730 = vmul.f32 %v2652, 1.442695
        %v2731 = vpow.pop %v2730
        %v2732 = vmul.f32 %v2653, 1.442695
        %v2733 = vpow.pop %v2732
        %v2734 = vmul.f32 %v2654, 1.442695
        %v2735 = vpow.pop %v2734
        %v2736 = vmul.f32 %v2655, 1.442695
        %v2737 = vpow.pop %v2736
        %v2738 = vmul.f32 %v2656, 1.442695
        %v2739 = vpow.pop %v2738
        %v2740 = vmul.f32 %v2657, 1.442695
        %v2741 = vpow.pop %v2740
        %v2742 = vmul.f32 %v2658, 1.442695
        %v2743 = vpow.pop %v2742
        %v2744 = vmul.f32 %v2659, 1.442695
        %v2745 = vpow.pop %v2744
        %v2746 = vmul.f32 %v2660, 1.442695
        %v2747 = vpow.pop %v2746
        %v2748 = vmul.f32 %v2661, 1.442695
        %v2749 = vpow.pop %v2748
        %v2750 = vmul.f32 %v2662, 1.442695
        %v2751 = vpow.pop %v2750
        %v2752 = vmul.f32 %v2663, 1.442695
        %v2753 = vpow.pop %v2752
        %v2754 = vmul.f32 %v2664, 1.442695
        %v2755 = vpow.pop %v2754
        %v2756 = vmul.f32 %v2665, 1.442695
        %v2757 = vpow.pop %v2756
        %v2758 = vmul.f32 %v2666, 1.442695
        %v2759 = vpow.pop %v2758
        %v2760 = vmul.f32 %v2667, 1.442695
        %v2761 = vpow.pop %v2760
        %v2762 = vmul.f32 %v2668, 1.442695
        %v2763 = vpow.pop %v2762
        %v2764 = vmul.f32 %v2669, 1.442695
        %v2765 = vpow.pop %v2764
        %v2766 = vmul.f32 %v2670, 1.442695
        %v2767 = vpow.pop %v2766
        %v2768 = vmul.f32 %v2671, 1.442695
        %v2769 = vpow.pop %v2768
        %v2770 = vmul.f32 %v2672, 1.442695
        %v2771 = vpow.pop %v2770
        %v2772 = vmul.f32 %v2673, 1.442695
        %v2773 = vpow.pop %v2772
        %v2774 = vmul.f32 %v2674, 1.442695
        %v2775 = vpow.pop %v2774
        %v2776 = vmul.f32 %v2675, 1.442695
        %v2777 = vpow.pop %v2776
        %v2778 = vmul.f32 %v2676, 1.442695
        %v2779 = vpow.pop %v2778
        %v2780 = vmul.f32 %v2677, 1.442695
        %v2781 = vpow.pop %v2780
        %v2782 = vmul.f32 %v2678, 1.442695
        %v2783 = vpow.pop %v2782
        %v2784 = vmul.f32 %v2679, 1.442695
        %v2785 = vpow.pop %v2784
        %v2786 = vmul.f32 %v2680, 1.442695
        %v2787 = vpow.pop %v2786
        %v2788 = vmul.f32 %v2681, 1.442695
        %v2789 = vpow.pop %v2788
        %v2790 = vmul.f32 %v2682, 1.442695
        %v2791 = vpow.pop %v2790
        %v2792 = vmul.f32 %v2683, 1.442695
        %v2793 = vpow.pop %v2792
        %v2794 = vmul.f32 %v2684, 1.442695
        %v2795 = vpow.pop %v2794
        %v2796 = vmul.f32 %v2685, 1.442695
        %v2797 = vpow.pop %v2796
        %v2798 = vmul.f32 %v2686, 1.442695
        %v2799 = vpow.pop %v2798
        %v2800 = vmul.f32 %v2687, 1.442695
        %v2801 = vpow.pop %v2800
        %v2802 = vmul.f32 %v2688, 1.442695
        %v2803 = vpow.pop %v2802
        %v2804 = vmul.f32 %v2689, 1.442695
        %v2805 = vpow.pop %v2804
        %v2806 = vmul.f32 %v2690, 1.442695
        %v2807 = vpow.pop %v2806
        %v2808 = vmul.f32 %v2691, 1.442695
        %v2809 = vpow.pop %v2808
        %v2810 = vmul.f32 %v2692, 1.442695
        %v2811 = vpow.pop %v2810
        %v2812 = vmul.f32 %v2693, 1.442695
        %v2813 = vpow.pop %v2812
        %v2814 = vmul.f32 %v2694, 1.442695
        %v2815 = vpow.pop %v2814
        %v2816 = vmul.f32 %v2695, 1.442695
        %v2817 = vpow.pop %v2816
        %v2818 = vmul.f32 %v2696, 1.442695
        %v2819 = vpow.pop %v2818
        %v2820 = vmul.f32 %v2697, 1.442695
        %v2821 = vpow.pop %v2820
        %v2822 = vmul.f32 %v2698, 1.442695
        %v2823 = vpow.pop %v2822
        %v2824 = vmul.f32 %v2699, 1.442695
        %v2825 = vpow.pop %v2824
        %v2826 = vmul.f32 %v2700, 1.442695
        %v2827 = vpow.pop %v2826
        %v2828 = vmul.f32 %v2701, 1.442695
        %v2829 = vpow.pop %v2828
        %v2830 = vlaneseq
        %v2831 = vshrl.u32 %v2830, 7
        %v2832 = vsub.s32 0, %v2831
        %v2833 = vrot.slane %v1943, %v2832
        %2835 = vbcast.lane.b32.xlu0 %v2833, 256
        %v2836 = vpop.permute.xlu0 %2835
        %s2838 = sor.u32 256, 8
        %2839 = vbcast.lane.b32.xlu0 %v2833, %s2838
        %v2840 = vpop.permute.xlu0 %2839
        %v2841 = vlaneseq
        %v2842 = vshrl.u32 %v2841, 7
        %v2843 = vsub.s32 1, %v2842
        %v2844 = vrot.slane %v1943, %v2843
        %2846 = vbcast.lane.b32.xlu0 %v2844, 256
        %v2847 = vpop.permute.xlu0 %2846
        %s2849 = sor.u32 256, 8
        %2850 = vbcast.lane.b32.xlu0 %v2844, %s2849
        %v2851 = vpop.permute.xlu0 %2850
        %v2852 = vlaneseq
        %v2853 = vshrl.u32 %v2852, 7
        %v2854 = vsub.s32 2, %v2853
        %v2855 = vrot.slane %v1943, %v2854
        %2857 = vbcast.lane.b32.xlu0 %v2855, 256
        %v2858 = vpop.permute.xlu0 %2857
        %s2860 = sor.u32 256, 8
        %2861 = vbcast.lane.b32.xlu0 %v2855, %s2860
        %v2862 = vpop.permute.xlu0 %2861
        %v2863 = vlaneseq
        %v2864 = vshrl.u32 %v2863, 7
        %v2865 = vsub.s32 3, %v2864
        %v2866 = vrot.slane %v1943, %v2865
        %2868 = vbcast.lane.b32.xlu0 %v2866, 256
        %v2869 = vpop.permute.xlu0 %2868
        %s2871 = sor.u32 256, 8
        %2872 = vbcast.lane.b32.xlu0 %v2866, %s2871
        %v2873 = vpop.permute.xlu0 %2872
        %v2874 = vlaneseq
        %v2875 = vshrl.u32 %v2874, 7
        %v2876 = vsub.s32 4, %v2875
        %v2877 = vrot.slane %v1943, %v2876
        %2879 = vbcast.lane.b32.xlu0 %v2877, 256
        %v2880 = vpop.permute.xlu0 %2879
        %s2882 = sor.u32 256, 8
        %2883 = vbcast.lane.b32.xlu0 %v2877, %s2882
        %v2884 = vpop.permute.xlu0 %2883
        %v2885 = vlaneseq
        %v2886 = vshrl.u32 %v2885, 7
        %v2887 = vsub.s32 5, %v2886
        %v2888 = vrot.slane %v1943, %v2887
        %2890 = vbcast.lane.b32.xlu0 %v2888, 256
        %v2891 = vpop.permute.xlu0 %2890
        %s2893 = sor.u32 256, 8
        %2894 = vbcast.lane.b32.xlu0 %v2888, %s2893
        %v2895 = vpop.permute.xlu0 %2894
        %v2896 = vlaneseq
        %v2897 = vshrl.u32 %v2896, 7
        %v2898 = vsub.s32 6, %v2897
        %v2899 = vrot.slane %v1943, %v2898
        %2901 = vbcast.lane.b32.xlu0 %v2899, 256
        %v2902 = vpop.permute.xlu0 %2901
        %s2904 = sor.u32 256, 8
        %2905 = vbcast.lane.b32.xlu0 %v2899, %s2904
        %v2906 = vpop.permute.xlu0 %2905
        %v2907 = vlaneseq
        %v2908 = vshrl.u32 %v2907, 7
        %v2909 = vsub.s32 7, %v2908
        %v2910 = vrot.slane %v1943, %v2909
        %2912 = vbcast.lane.b32.xlu0 %v2910, 256
        %v2913 = vpop.permute.xlu0 %2912
        %s2915 = sor.u32 256, 8
        %2916 = vbcast.lane.b32.xlu0 %v2910, %s2915
        %v2917 = vpop.permute.xlu0 %2916
        %v2918 = vmul.f32 %v2394, %v1588
        %v2919 = vmul.f32 %v2395, %v1591
        %v2920 = vmul.f32 %v2396, %v1594
        %v2921 = vmul.f32 %v2397, %v1597
        %v2926 = vcombine.low %v2918, %v2919
        %v2927 = vcombine.high %v2918, %v2919
        %v2928 = vcombine.low %v2920, %v2921
        %v2929 = vcombine.high %v2920, %v2921
        %v2931 = vunpack.c.l.s4 1966171168
        %v2932 = vunpack.c.0.s8 %v2931
        %v2933 = vlaneseq
        %v2934 = vshrl.u32 %v2933, 7
        %v2935 = vsub.s32 %v2932, %v2934
        %v2936 = vrot.slane %v2926, %v2935
        %v2938 = vunpack.c.l.s4 1966171168
        %v2939 = vunpack.c.0.s8 %v2938
        %v2940 = vlaneseq
        %v2941 = vshrl.u32 %v2940, 7
        %v2942 = vsub.s32 %v2939, %v2941
        %v2943 = vrot.slane %v2927, %v2942
        %v2945 = vunpack.c.l.s4 1966171168
        %v2946 = vunpack.c.0.s8 %v2945
        %v2947 = vlaneseq
        %v2948 = vshrl.u32 %v2947, 7
        %v2949 = vsub.s32 %v2946, %v2948
        %v2950 = vrot.slane %v2928, %v2949
        %v2952 = vunpack.c.l.s4 1966171168
        %v2953 = vunpack.c.0.s8 %v2952
        %v2954 = vlaneseq
        %v2955 = vshrl.u32 %v2954, 7
        %v2956 = vsub.s32 %v2953, %v2955
        %v2957 = vrot.slane %v2929, %v2956
        %v2958 = vcombine.low %v2936, %v2950
        %v2959 = vcombine.high %v2936, %v2950
        %v2960 = vcombine.low %v2943, %v2957
        %v2961 = vcombine.high %v2943, %v2957
        %v2963 = vunpack.c.l.s4 1966171168
        %v2964 = vunpack.c.0.s8 %v2963
        %v2965 = vlaneseq
        %v2966 = vshrl.u32 %v2965, 7
        %v2967 = vsub.s32 %v2964, %v2966
        %v2968 = vrot.slane %v2958, %v2967
        %v2970 = vunpack.c.l.s4 1966171168
        %v2971 = vunpack.c.0.s8 %v2970
        %v2972 = vlaneseq
        %v2973 = vshrl.u32 %v2972, 7
        %v2974 = vsub.s32 %v2971, %v2973
        %v2975 = vrot.slane %v2960, %v2974
        %v2977 = vunpack.c.l.s4 1966171168
        %v2978 = vunpack.c.0.s8 %v2977
        %v2979 = vlaneseq
        %v2980 = vshrl.u32 %v2979, 7
        %v2981 = vsub.s32 %v2978, %v2980
        %v2982 = vrot.slane %v2959, %v2981
        %v2984 = vunpack.c.l.s4 1966171168
        %v2985 = vunpack.c.0.s8 %v2984
        %v2986 = vlaneseq
        %v2987 = vshrl.u32 %v2986, 7
        %v2988 = vsub.s32 %v2985, %v2987
        %v2989 = vrot.slane %v2961, %v2988
        %v2990 = vcombine.high %v2968, %v2968
        %v2991 = vcombine.high %v2975, %v2975
        %v2992 = vcombine.high %v2982, %v2982
        %v2993 = vcombine.high %v2989, %v2989
        %v2994 = vlaneseq
        %v2995 = vshrl.u32 %v2994, 7
        %v2996 = vsub.s32 0, %v2995
        %v2997 = vrot.slane %v2968, %v2996
        %v2998 = vlaneseq
        %v2999 = vshrl.u32 %v2998, 7
        %v3000 = vsub.s32 1, %v2999
        %v3001 = vrot.slane %v2968, %v3000
        %v3002 = vlaneseq
        %v3003 = vshrl.u32 %v3002, 7
        %v3004 = vsub.s32 2, %v3003
        %v3005 = vrot.slane %v2968, %v3004
        %v3006 = vlaneseq
        %v3007 = vshrl.u32 %v3006, 7
        %v3008 = vsub.s32 3, %v3007
        %v3009 = vrot.slane %v2968, %v3008
        %v3010 = vlaneseq
        %v3011 = vshrl.u32 %v3010, 7
        %v3012 = vsub.s32 0, %v3011
        %v3013 = vrot.slane %v2982, %v3012
        %v3014 = vlaneseq
        %v3015 = vshrl.u32 %v3014, 7
        %v3016 = vsub.s32 1, %v3015
        %v3017 = vrot.slane %v2982, %v3016
        %v3018 = vlaneseq
        %v3019 = vshrl.u32 %v3018, 7
        %v3020 = vsub.s32 2, %v3019
        %v3021 = vrot.slane %v2982, %v3020
        %v3022 = vlaneseq
        %v3023 = vshrl.u32 %v3022, 7
        %v3024 = vsub.s32 3, %v3023
        %v3025 = vrot.slane %v2982, %v3024
        %v3026 = vlaneseq
        %v3027 = vshrl.u32 %v3026, 7
        %v3028 = vsub.s32 0, %v3027
        %v3029 = vrot.slane %v2990, %v3028
        %v3030 = vlaneseq
        %v3031 = vshrl.u32 %v3030, 7
        %v3032 = vsub.s32 1, %v3031
        %v3033 = vrot.slane %v2990, %v3032
        %v3034 = vlaneseq
        %v3035 = vshrl.u32 %v3034, 7
        %v3036 = vsub.s32 2, %v3035
        %v3037 = vrot.slane %v2990, %v3036
        %v3038 = vlaneseq
        %v3039 = vshrl.u32 %v3038, 7
        %v3040 = vsub.s32 3, %v3039
        %v3041 = vrot.slane %v2990, %v3040
        %v3042 = vlaneseq
        %v3043 = vshrl.u32 %v3042, 7
        %v3044 = vsub.s32 0, %v3043
        %v3045 = vrot.slane %v2992, %v3044
        %v3046 = vlaneseq
        %v3047 = vshrl.u32 %v3046, 7
        %v3048 = vsub.s32 1, %v3047
        %v3049 = vrot.slane %v2992, %v3048
        %v3050 = vlaneseq
        %v3051 = vshrl.u32 %v3050, 7
        %v3052 = vsub.s32 2, %v3051
        %v3053 = vrot.slane %v2992, %v3052
        %v3054 = vlaneseq
        %v3055 = vshrl.u32 %v3054, 7
        %v3056 = vsub.s32 3, %v3055
        %v3057 = vrot.slane %v2992, %v3056
        %v3058 = vlaneseq
        %v3059 = vshrl.u32 %v3058, 7
        %v3060 = vsub.s32 0, %v3059
        %v3061 = vrot.slane %v2975, %v3060
        %v3062 = vlaneseq
        %v3063 = vshrl.u32 %v3062, 7
        %v3064 = vsub.s32 1, %v3063
        %v3065 = vrot.slane %v2975, %v3064
        %v3066 = vlaneseq
        %v3067 = vshrl.u32 %v3066, 7
        %v3068 = vsub.s32 2, %v3067
        %v3069 = vrot.slane %v2975, %v3068
        %v3070 = vlaneseq
        %v3071 = vshrl.u32 %v3070, 7
        %v3072 = vsub.s32 3, %v3071
        %v3073 = vrot.slane %v2975, %v3072
        %v3074 = vlaneseq
        %v3075 = vshrl.u32 %v3074, 7
        %v3076 = vsub.s32 0, %v3075
        %v3077 = vrot.slane %v2989, %v3076
        %v3078 = vlaneseq
        %v3079 = vshrl.u32 %v3078, 7
        %v3080 = vsub.s32 1, %v3079
        %v3081 = vrot.slane %v2989, %v3080
        %v3082 = vlaneseq
        %v3083 = vshrl.u32 %v3082, 7
        %v3084 = vsub.s32 2, %v3083
        %v3085 = vrot.slane %v2989, %v3084
        %v3086 = vlaneseq
        %v3087 = vshrl.u32 %v3086, 7
        %v3088 = vsub.s32 3, %v3087
        %v3089 = vrot.slane %v2989, %v3088
        %v3090 = vlaneseq
        %v3091 = vshrl.u32 %v3090, 7
        %v3092 = vsub.s32 0, %v3091
        %v3093 = vrot.slane %v2991, %v3092
        %v3094 = vlaneseq
        %v3095 = vshrl.u32 %v3094, 7
        %v3096 = vsub.s32 1, %v3095
        %v3097 = vrot.slane %v2991, %v3096
        %v3098 = vlaneseq
        %v3099 = vshrl.u32 %v3098, 7
        %v3100 = vsub.s32 2, %v3099
        %v3101 = vrot.slane %v2991, %v3100
        %v3102 = vlaneseq
        %v3103 = vshrl.u32 %v3102, 7
        %v3104 = vsub.s32 3, %v3103
        %v3105 = vrot.slane %v2991, %v3104
        %v3106 = vlaneseq
        %v3107 = vshrl.u32 %v3106, 7
        %v3108 = vsub.s32 0, %v3107
        %v3109 = vrot.slane %v2993, %v3108
        %v3110 = vlaneseq
        %v3111 = vshrl.u32 %v3110, 7
        %v3112 = vsub.s32 1, %v3111
        %v3113 = vrot.slane %v2993, %v3112
        %v3114 = vlaneseq
        %v3115 = vshrl.u32 %v3114, 7
        %v3116 = vsub.s32 2, %v3115
        %v3117 = vrot.slane %v2993, %v3116
        %v3118 = vlaneseq
        %v3119 = vshrl.u32 %v3118, 7
        %v3120 = vsub.s32 3, %v3119
        %v3121 = vrot.slane %v2993, %v3120
        %v3154 = vmul.f32 %v2836, %v2997
        %v3155 = vmul.f32 %v2836, %v3001
        %v3156 = vmul.f32 %v2836, %v3005
        %v3157 = vmul.f32 %v2836, %v3009
        %v3158 = vmul.f32 %v2840, %v2997
        %v3159 = vmul.f32 %v2840, %v3001
        %v3160 = vmul.f32 %v2840, %v3005
        %v3161 = vmul.f32 %v2840, %v3009
        %v3162 = vmul.f32 %v2847, %v3013
        %v3163 = vmul.f32 %v2847, %v3017
        %v3164 = vmul.f32 %v2847, %v3021
        %v3165 = vmul.f32 %v2847, %v3025
        %v3166 = vmul.f32 %v2851, %v3013
        %v3167 = vmul.f32 %v2851, %v3017
        %v3168 = vmul.f32 %v2851, %v3021
        %v3169 = vmul.f32 %v2851, %v3025
        %v3170 = vmul.f32 %v2858, %v3029
        %v3171 = vmul.f32 %v2858, %v3033
        %v3172 = vmul.f32 %v2858, %v3037
        %v3173 = vmul.f32 %v2858, %v3041
        %v3174 = vmul.f32 %v2862, %v3029
        %v3175 = vmul.f32 %v2862, %v3033
        %v3176 = vmul.f32 %v2862, %v3037
        %v3177 = vmul.f32 %v2862, %v3041
        %v3178 = vmul.f32 %v2869, %v3045
        %v3179 = vmul.f32 %v2869, %v3049
        %v3180 = vmul.f32 %v2869, %v3053
        %v3181 = vmul.f32 %v2869, %v3057
        %v3182 = vmul.f32 %v2873, %v3045
        %v3183 = vmul.f32 %v2873, %v3049
        %v3184 = vmul.f32 %v2873, %v3053
        %v3185 = vmul.f32 %v2873, %v3057
        %v3186 = vmul.f32 %v2880, %v3061
        %v3187 = vmul.f32 %v2880, %v3065
        %v3188 = vmul.f32 %v2880, %v3069
        %v3189 = vmul.f32 %v2880, %v3073
        %v3190 = vmul.f32 %v2884, %v3061
        %v3191 = vmul.f32 %v2884, %v3065
        %v3192 = vmul.f32 %v2884, %v3069
        %v3193 = vmul.f32 %v2884, %v3073
        %v3194 = vmul.f32 %v2891, %v3077
        %v3195 = vmul.f32 %v2891, %v3081
        %v3196 = vmul.f32 %v2891, %v3085
        %v3197 = vmul.f32 %v2891, %v3089
        %v3198 = vmul.f32 %v2895, %v3077
        %v3199 = vmul.f32 %v2895, %v3081
        %v3200 = vmul.f32 %v2895, %v3085
        %v3201 = vmul.f32 %v2895, %v3089
        %v3202 = vmul.f32 %v2902, %v3093
        %v3203 = vmul.f32 %v2902, %v3097
        %v3204 = vmul.f32 %v2902, %v3101
        %v3205 = vmul.f32 %v2902, %v3105
        %v3206 = vmul.f32 %v2906, %v3093
        %v3207 = vmul.f32 %v2906, %v3097
        %v3208 = vmul.f32 %v2906, %v3101
        %v3209 = vmul.f32 %v2906, %v3105
        %v3210 = vmul.f32 %v2913, %v3109
        %v3211 = vmul.f32 %v2913, %v3113
        %v3212 = vmul.f32 %v2913, %v3117
        %v3213 = vmul.f32 %v2913, %v3121
        %v3214 = vmul.f32 %v2917, %v3109
        %v3215 = vmul.f32 %v2917, %v3113
        %v3216 = vmul.f32 %v2917, %v3117
        %v3217 = vmul.f32 %v2917, %v3121
        %v3218 = vmul.f32 %v2703, 0.0
        %v3219 = vmul.f32 %v2705, 0.0
        %v3220 = vmul.f32 %v2707, 0.0
        %v3221 = vmul.f32 %v2709, 0.0
        %v3222 = vmul.f32 %v2711, 0.0
        %v3223 = vmul.f32 %v2713, 0.0
        %v3224 = vmul.f32 %v2715, 0.0
        %v3225 = vmul.f32 %v2717, 0.0
        %v3226 = vadd.f32 %v3218, %v3154
        %v3227 = vadd.f32 %v3219, %v3155
        %v3228 = vadd.f32 %v3220, %v3156
        %v3229 = vadd.f32 %v3221, %v3157
        %v3230 = vadd.f32 %v3222, %v3158
        %v3231 = vadd.f32 %v3223, %v3159
        %v3232 = vadd.f32 %v3224, %v3160
        %v3233 = vadd.f32 %v3225, %v3161
        %v3234 = vmul.f32 %v2719, %v3226
        %v3235 = vmul.f32 %v2721, %v3227
        %v3236 = vmul.f32 %v2723, %v3228
        %v3237 = vmul.f32 %v2725, %v3229
        %v3238 = vmul.f32 %v2727, %v3230
        %v3239 = vmul.f32 %v2729, %v3231
        %v3240 = vmul.f32 %v2731, %v3232
        %v3241 = vmul.f32 %v2733, %v3233
        %v3242 = vadd.f32 %v3234, %v3162
        %v3243 = vadd.f32 %v3235, %v3163
        %v3244 = vadd.f32 %v3236, %v3164
        %v3245 = vadd.f32 %v3237, %v3165
        %v3246 = vadd.f32 %v3238, %v3166
        %v3247 = vadd.f32 %v3239, %v3167
        %v3248 = vadd.f32 %v3240, %v3168
        %v3249 = vadd.f32 %v3241, %v3169
        %v3250 = vmul.f32 %v2735, %v3242
        %v3251 = vmul.f32 %v2737, %v3243
        %v3252 = vmul.f32 %v2739, %v3244
        %v3253 = vmul.f32 %v2741, %v3245
        %v3254 = vmul.f32 %v2743, %v3246
        %v3255 = vmul.f32 %v2745, %v3247
        %v3256 = vmul.f32 %v2747, %v3248
        %v3257 = vmul.f32 %v2749, %v3249
        %v3258 = vadd.f32 %v3250, %v3170
        %v3259 = vadd.f32 %v3251, %v3171
        %v3260 = vadd.f32 %v3252, %v3172
        %v3261 = vadd.f32 %v3253, %v3173
        %v3262 = vadd.f32 %v3254, %v3174
        %v3263 = vadd.f32 %v3255, %v3175
        %v3264 = vadd.f32 %v3256, %v3176
        %v3265 = vadd.f32 %v3257, %v3177
        %v3266 = vmul.f32 %v2751, %v3258
        %v3267 = vmul.f32 %v2753, %v3259
        %v3268 = vmul.f32 %v2755, %v3260
        %v3269 = vmul.f32 %v2757, %v3261
        %v3270 = vmul.f32 %v2759, %v3262
        %v3271 = vmul.f32 %v2761, %v3263
        %v3272 = vmul.f32 %v2763, %v3264
        %v3273 = vmul.f32 %v2765, %v3265
        %v3274 = vadd.f32 %v3266, %v3178
        %v3275 = vadd.f32 %v3267, %v3179
        %v3276 = vadd.f32 %v3268, %v3180
        %v3277 = vadd.f32 %v3269, %v3181
        %v3278 = vadd.f32 %v3270, %v3182
        %v3279 = vadd.f32 %v3271, %v3183
        %v3280 = vadd.f32 %v3272, %v3184
        %v3281 = vadd.f32 %v3273, %v3185
        %v3282 = vmul.f32 %v2767, %v3274
        %v3283 = vmul.f32 %v2769, %v3275
        %v3284 = vmul.f32 %v2771, %v3276
        %v3285 = vmul.f32 %v2773, %v3277
        %v3286 = vmul.f32 %v2775, %v3278
        %v3287 = vmul.f32 %v2777, %v3279
        %v3288 = vmul.f32 %v2779, %v3280
        %v3289 = vmul.f32 %v2781, %v3281
        %v3290 = vadd.f32 %v3282, %v3186
        %v3291 = vadd.f32 %v3283, %v3187
        %v3292 = vadd.f32 %v3284, %v3188
        %v3293 = vadd.f32 %v3285, %v3189
        %v3294 = vadd.f32 %v3286, %v3190
        %v3295 = vadd.f32 %v3287, %v3191
        %v3296 = vadd.f32 %v3288, %v3192
        %v3297 = vadd.f32 %v3289, %v3193
        %v3298 = vmul.f32 %v2783, %v3290
        %v3299 = vmul.f32 %v2785, %v3291
        %v3300 = vmul.f32 %v2787, %v3292
        %v3301 = vmul.f32 %v2789, %v3293
        %v3302 = vmul.f32 %v2791, %v3294
        %v3303 = vmul.f32 %v2793, %v3295
        %v3304 = vmul.f32 %v2795, %v3296
        %v3305 = vmul.f32 %v2797, %v3297
        %v3306 = vadd.f32 %v3298, %v3194
        %v3307 = vadd.f32 %v3299, %v3195
        %v3308 = vadd.f32 %v3300, %v3196
        %v3309 = vadd.f32 %v3301, %v3197
        %v3310 = vadd.f32 %v3302, %v3198
        %v3311 = vadd.f32 %v3303, %v3199
        %v3312 = vadd.f32 %v3304, %v3200
        %v3313 = vadd.f32 %v3305, %v3201
        %v3314 = vmul.f32 %v2799, %v3306
        %v3315 = vmul.f32 %v2801, %v3307
        %v3316 = vmul.f32 %v2803, %v3308
        %v3317 = vmul.f32 %v2805, %v3309
        %v3318 = vmul.f32 %v2807, %v3310
        %v3319 = vmul.f32 %v2809, %v3311
        %v3320 = vmul.f32 %v2811, %v3312
        %v3321 = vmul.f32 %v2813, %v3313
        %v3322 = vadd.f32 %v3314, %v3202
        %v3323 = vadd.f32 %v3315, %v3203
        %v3324 = vadd.f32 %v3316, %v3204
        %v3325 = vadd.f32 %v3317, %v3205
        %v3326 = vadd.f32 %v3318, %v3206
        %v3327 = vadd.f32 %v3319, %v3207
        %v3328 = vadd.f32 %v3320, %v3208
        %v3329 = vadd.f32 %v3321, %v3209
        %v3330 = vmul.f32 %v2815, %v3322
        %v3331 = vmul.f32 %v2817, %v3323
        %v3332 = vmul.f32 %v2819, %v3324
        %v3333 = vmul.f32 %v2821, %v3325
        %v3334 = vmul.f32 %v2823, %v3326
        %v3335 = vmul.f32 %v2825, %v3327
        %v3336 = vmul.f32 %v2827, %v3328
        %v3337 = vmul.f32 %v2829, %v3329
        %v3338 = vadd.f32 %v3330, %v3210
        %v3339 = vadd.f32 %v3331, %v3211
        %v3340 = vadd.f32 %v3332, %v3212
        %v3341 = vadd.f32 %v3333, %v3213
        %v3342 = vadd.f32 %v3334, %v3214
        %v3343 = vadd.f32 %v3335, %v3215
        %v3344 = vadd.f32 %v3336, %v3216
        %v3345 = vadd.f32 %v3337, %v3217
        %v3346 = vlaneseq
        %v3347 = vshrl.u32 %v3346, 7
        %v3348 = vsub.s32 0, %v3347
        %v3349 = vrot.slane %v2147, %v3348
        %3351 = vbcast.lane.b32.xlu0 %v3349, 256
        %v3352 = vpop.permute.xlu0 %3351
        %s3354 = sor.u32 256, 8
        %3355 = vbcast.lane.b32.xlu0 %v3349, %s3354
        %v3356 = vpop.permute.xlu0 %3355
        %v3357 = vlaneseq
        %v3358 = vshrl.u32 %v3357, 7
        %v3359 = vsub.s32 1, %v3358
        %v3360 = vrot.slane %v2147, %v3359
        %3362 = vbcast.lane.b32.xlu0 %v3360, 256
        %v3363 = vpop.permute.xlu0 %3362
        %s3365 = sor.u32 256, 8
        %3366 = vbcast.lane.b32.xlu0 %v3360, %s3365
        %v3367 = vpop.permute.xlu0 %3366
        %v3368 = vlaneseq
        %v3369 = vshrl.u32 %v3368, 7
        %v3370 = vsub.s32 2, %v3369
        %v3371 = vrot.slane %v2147, %v3370
        %3373 = vbcast.lane.b32.xlu0 %v3371, 256
        %v3374 = vpop.permute.xlu0 %3373
        %s3376 = sor.u32 256, 8
        %3377 = vbcast.lane.b32.xlu0 %v3371, %s3376
        %v3378 = vpop.permute.xlu0 %3377
        %v3379 = vlaneseq
        %v3380 = vshrl.u32 %v3379, 7
        %v3381 = vsub.s32 3, %v3380
        %v3382 = vrot.slane %v2147, %v3381
        %3384 = vbcast.lane.b32.xlu0 %v3382, 256
        %v3385 = vpop.permute.xlu0 %3384
        %s3387 = sor.u32 256, 8
        %3388 = vbcast.lane.b32.xlu0 %v3382, %s3387
        %v3389 = vpop.permute.xlu0 %3388
        %v3390 = vlaneseq
        %v3391 = vshrl.u32 %v3390, 7
        %v3392 = vsub.s32 4, %v3391
        %v3393 = vrot.slane %v2147, %v3392
        %3395 = vbcast.lane.b32.xlu0 %v3393, 256
        %v3396 = vpop.permute.xlu0 %3395
        %s3398 = sor.u32 256, 8
        %3399 = vbcast.lane.b32.xlu0 %v3393, %s3398
        %v3400 = vpop.permute.xlu0 %3399
        %v3401 = vlaneseq
        %v3402 = vshrl.u32 %v3401, 7
        %v3403 = vsub.s32 5, %v3402
        %v3404 = vrot.slane %v2147, %v3403
        %3406 = vbcast.lane.b32.xlu0 %v3404, 256
        %v3407 = vpop.permute.xlu0 %3406
        %s3409 = sor.u32 256, 8
        %3410 = vbcast.lane.b32.xlu0 %v3404, %s3409
        %v3411 = vpop.permute.xlu0 %3410
        %v3412 = vlaneseq
        %v3413 = vshrl.u32 %v3412, 7
        %v3414 = vsub.s32 6, %v3413
        %v3415 = vrot.slane %v2147, %v3414
        %3417 = vbcast.lane.b32.xlu0 %v3415, 256
        %v3418 = vpop.permute.xlu0 %3417
        %s3420 = sor.u32 256, 8
        %3421 = vbcast.lane.b32.xlu0 %v3415, %s3420
        %v3422 = vpop.permute.xlu0 %3421
        %v3423 = vlaneseq
        %v3424 = vshrl.u32 %v3423, 7
        %v3425 = vsub.s32 7, %v3424
        %v3426 = vrot.slane %v2147, %v3425
        %3428 = vbcast.lane.b32.xlu0 %v3426, 256
        %v3429 = vpop.permute.xlu0 %3428
        %s3431 = sor.u32 256, 8
        %3432 = vbcast.lane.b32.xlu0 %v3426, %s3431
        %v3433 = vpop.permute.xlu0 %3432
        %v3434 = vmul.f32 %v3226, %v3352
        %v3435 = vmul.f32 %v3227, %v3352
        %v3436 = vmul.f32 %v3228, %v3352
        %v3437 = vmul.f32 %v3229, %v3352
        %v3438 = vmul.f32 %v3230, %v3356
        %v3439 = vmul.f32 %v3231, %v3356
        %v3440 = vmul.f32 %v3232, %v3356
        %v3441 = vmul.f32 %v3233, %v3356
        %v3442 = vmul.f32 %v3242, %v3363
        %v3443 = vmul.f32 %v3243, %v3363
        %v3444 = vmul.f32 %v3244, %v3363
        %v3445 = vmul.f32 %v3245, %v3363
        %v3446 = vmul.f32 %v3246, %v3367
        %v3447 = vmul.f32 %v3247, %v3367
        %v3448 = vmul.f32 %v3248, %v3367
        %v3449 = vmul.f32 %v3249, %v3367
        %v3450 = vmul.f32 %v3258, %v3374
        %v3451 = vmul.f32 %v3259, %v3374
        %v3452 = vmul.f32 %v3260, %v3374
        %v3453 = vmul.f32 %v3261, %v3374
        %v3454 = vmul.f32 %v3262, %v3378
        %v3455 = vmul.f32 %v3263, %v3378
        %v3456 = vmul.f32 %v3264, %v3378
        %v3457 = vmul.f32 %v3265, %v3378
        %v3458 = vmul.f32 %v3274, %v3385
        %v3459 = vmul.f32 %v3275, %v3385
        %v3460 = vmul.f32 %v3276, %v3385
        %v3461 = vmul.f32 %v3277, %v3385
        %v3462 = vmul.f32 %v3278, %v3389
        %v3463 = vmul.f32 %v3279, %v3389
        %v3464 = vmul.f32 %v3280, %v3389
        %v3465 = vmul.f32 %v3281, %v3389
        %v3466 = vmul.f32 %v3290, %v3396
        %v3467 = vmul.f32 %v3291, %v3396
        %v3468 = vmul.f32 %v3292, %v3396
        %v3469 = vmul.f32 %v3293, %v3396
        %v3470 = vmul.f32 %v3294, %v3400
        %v3471 = vmul.f32 %v3295, %v3400
        %v3472 = vmul.f32 %v3296, %v3400
        %v3473 = vmul.f32 %v3297, %v3400
        %v3474 = vmul.f32 %v3306, %v3407
        %v3475 = vmul.f32 %v3307, %v3407
        %v3476 = vmul.f32 %v3308, %v3407
        %v3477 = vmul.f32 %v3309, %v3407
        %v3478 = vmul.f32 %v3310, %v3411
        %v3479 = vmul.f32 %v3311, %v3411
        %v3480 = vmul.f32 %v3312, %v3411
        %v3481 = vmul.f32 %v3313, %v3411
        %v3482 = vmul.f32 %v3322, %v3418
        %v3483 = vmul.f32 %v3323, %v3418
        %v3484 = vmul.f32 %v3324, %v3418
        %v3485 = vmul.f32 %v3325, %v3418
        %v3486 = vmul.f32 %v3326, %v3422
        %v3487 = vmul.f32 %v3327, %v3422
        %v3488 = vmul.f32 %v3328, %v3422
        %v3489 = vmul.f32 %v3329, %v3422
        %v3490 = vmul.f32 %v3338, %v3429
        %v3491 = vmul.f32 %v3339, %v3429
        %v3492 = vmul.f32 %v3340, %v3429
        %v3493 = vmul.f32 %v3341, %v3429
        %v3494 = vmul.f32 %v3342, %v3433
        %v3495 = vmul.f32 %v3343, %v3433
        %v3496 = vmul.f32 %v3344, %v3433
        %v3497 = vmul.f32 %v3345, %v3433
        %v3498 = vadd.f32 %v3434, %v3438
        %v3499 = vrot.slane %v3498, 4
        %v3500 = vadd.f32 %v3498, %v3499
        %v3501 = vrot.slane %v3500, 2
        %v3502 = vadd.f32 %v3500, %v3501
        %v3503 = vrot.slane %v3502, 1
        %v3504 = vadd.f32 %v3502, %v3503
        %v3505 = vadd.f32 %v3435, %v3439
        %v3506 = vrot.slane %v3505, 4
        %v3507 = vadd.f32 %v3505, %v3506
        %v3508 = vrot.slane %v3507, 2
        %v3509 = vadd.f32 %v3507, %v3508
        %v3510 = vrot.slane %v3509, 1
        %v3511 = vadd.f32 %v3509, %v3510
        %v3512 = vadd.f32 %v3436, %v3440
        %v3513 = vrot.slane %v3512, 4
        %v3514 = vadd.f32 %v3512, %v3513
        %v3515 = vrot.slane %v3514, 2
        %v3516 = vadd.f32 %v3514, %v3515
        %v3517 = vrot.slane %v3516, 1
        %v3518 = vadd.f32 %v3516, %v3517
        %v3519 = vadd.f32 %v3437, %v3441
        %v3520 = vrot.slane %v3519, 4
        %v3521 = vadd.f32 %v3519, %v3520
        %v3522 = vrot.slane %v3521, 2
        %v3523 = vadd.f32 %v3521, %v3522
        %v3524 = vrot.slane %v3523, 1
        %v3525 = vadd.f32 %v3523, %v3524
        %v3526 = vadd.f32 %v3442, %v3446
        %v3527 = vrot.slane %v3526, 4
        %v3528 = vadd.f32 %v3526, %v3527
        %v3529 = vrot.slane %v3528, 2
        %v3530 = vadd.f32 %v3528, %v3529
        %v3531 = vrot.slane %v3530, 1
        %v3532 = vadd.f32 %v3530, %v3531
        %v3533 = vadd.f32 %v3443, %v3447
        %v3534 = vrot.slane %v3533, 4
        %v3535 = vadd.f32 %v3533, %v3534
        %v3536 = vrot.slane %v3535, 2
        %v3537 = vadd.f32 %v3535, %v3536
        %v3538 = vrot.slane %v3537, 1
        %v3539 = vadd.f32 %v3537, %v3538
        %v3540 = vadd.f32 %v3444, %v3448
        %v3541 = vrot.slane %v3540, 4
        %v3542 = vadd.f32 %v3540, %v3541
        %v3543 = vrot.slane %v3542, 2
        %v3544 = vadd.f32 %v3542, %v3543
        %v3545 = vrot.slane %v3544, 1
        %v3546 = vadd.f32 %v3544, %v3545
        %v3547 = vadd.f32 %v3445, %v3449
        %v3548 = vrot.slane %v3547, 4
        %v3549 = vadd.f32 %v3547, %v3548
        %v3550 = vrot.slane %v3549, 2
        %v3551 = vadd.f32 %v3549, %v3550
        %v3552 = vrot.slane %v3551, 1
        %v3553 = vadd.f32 %v3551, %v3552
        %v3554 = vadd.f32 %v3450, %v3454
        %v3555 = vrot.slane %v3554, 4
        %v3556 = vadd.f32 %v3554, %v3555
        %v3557 = vrot.slane %v3556, 2
        %v3558 = vadd.f32 %v3556, %v3557
        %v3559 = vrot.slane %v3558, 1
        %v3560 = vadd.f32 %v3558, %v3559
        %v3561 = vadd.f32 %v3451, %v3455
        %v3562 = vrot.slane %v3561, 4
        %v3563 = vadd.f32 %v3561, %v3562
        %v3564 = vrot.slane %v3563, 2
        %v3565 = vadd.f32 %v3563, %v3564
        %v3566 = vrot.slane %v3565, 1
        %v3567 = vadd.f32 %v3565, %v3566
        %v3568 = vadd.f32 %v3452, %v3456
        %v3569 = vrot.slane %v3568, 4
        %v3570 = vadd.f32 %v3568, %v3569
        %v3571 = vrot.slane %v3570, 2
        %v3572 = vadd.f32 %v3570, %v3571
        %v3573 = vrot.slane %v3572, 1
        %v3574 = vadd.f32 %v3572, %v3573
        %v3575 = vadd.f32 %v3453, %v3457
        %v3576 = vrot.slane %v3575, 4
        %v3577 = vadd.f32 %v3575, %v3576
        %v3578 = vrot.slane %v3577, 2
        %v3579 = vadd.f32 %v3577, %v3578
        %v3580 = vrot.slane %v3579, 1
        %v3581 = vadd.f32 %v3579, %v3580
        %v3582 = vadd.f32 %v3458, %v3462
        %v3583 = vrot.slane %v3582, 4
        %v3584 = vadd.f32 %v3582, %v3583
        %v3585 = vrot.slane %v3584, 2
        %v3586 = vadd.f32 %v3584, %v3585
        %v3587 = vrot.slane %v3586, 1
        %v3588 = vadd.f32 %v3586, %v3587
        %v3589 = vadd.f32 %v3459, %v3463
        %v3590 = vrot.slane %v3589, 4
        %v3591 = vadd.f32 %v3589, %v3590
        %v3592 = vrot.slane %v3591, 2
        %v3593 = vadd.f32 %v3591, %v3592
        %v3594 = vrot.slane %v3593, 1
        %v3595 = vadd.f32 %v3593, %v3594
        %v3596 = vadd.f32 %v3460, %v3464
        %v3597 = vrot.slane %v3596, 4
        %v3598 = vadd.f32 %v3596, %v3597
        %v3599 = vrot.slane %v3598, 2
        %v3600 = vadd.f32 %v3598, %v3599
        %v3601 = vrot.slane %v3600, 1
        %v3602 = vadd.f32 %v3600, %v3601
        %v3603 = vadd.f32 %v3461, %v3465
        %v3604 = vrot.slane %v3603, 4
        %v3605 = vadd.f32 %v3603, %v3604
        %v3606 = vrot.slane %v3605, 2
        %v3607 = vadd.f32 %v3605, %v3606
        %v3608 = vrot.slane %v3607, 1
        %v3609 = vadd.f32 %v3607, %v3608
        %v3610 = vadd.f32 %v3466, %v3470
        %v3611 = vrot.slane %v3610, 4
        %v3612 = vadd.f32 %v3610, %v3611
        %v3613 = vrot.slane %v3612, 2
        %v3614 = vadd.f32 %v3612, %v3613
        %v3615 = vrot.slane %v3614, 1
        %v3616 = vadd.f32 %v3614, %v3615
        %v3617 = vadd.f32 %v3467, %v3471
        %v3618 = vrot.slane %v3617, 4
        %v3619 = vadd.f32 %v3617, %v3618
        %v3620 = vrot.slane %v3619, 2
        %v3621 = vadd.f32 %v3619, %v3620
        %v3622 = vrot.slane %v3621, 1
        %v3623 = vadd.f32 %v3621, %v3622
        %v3624 = vadd.f32 %v3468, %v3472
        %v3625 = vrot.slane %v3624, 4
        %v3626 = vadd.f32 %v3624, %v3625
        %v3627 = vrot.slane %v3626, 2
        %v3628 = vadd.f32 %v3626, %v3627
        %v3629 = vrot.slane %v3628, 1
        %v3630 = vadd.f32 %v3628, %v3629
        %v3631 = vadd.f32 %v3469, %v3473
        %v3632 = vrot.slane %v3631, 4
        %v3633 = vadd.f32 %v3631, %v3632
        %v3634 = vrot.slane %v3633, 2
        %v3635 = vadd.f32 %v3633, %v3634
        %v3636 = vrot.slane %v3635, 1
        %v3637 = vadd.f32 %v3635, %v3636
        %v3638 = vadd.f32 %v3474, %v3478
        %v3639 = vrot.slane %v3638, 4
        %v3640 = vadd.f32 %v3638, %v3639
        %v3641 = vrot.slane %v3640, 2
        %v3642 = vadd.f32 %v3640, %v3641
        %v3643 = vrot.slane %v3642, 1
        %v3644 = vadd.f32 %v3642, %v3643
        %v3645 = vadd.f32 %v3475, %v3479
        %v3646 = vrot.slane %v3645, 4
        %v3647 = vadd.f32 %v3645, %v3646
        %v3648 = vrot.slane %v3647, 2
        %v3649 = vadd.f32 %v3647, %v3648
        %v3650 = vrot.slane %v3649, 1
        %v3651 = vadd.f32 %v3649, %v3650
        %v3652 = vadd.f32 %v3476, %v3480
        %v3653 = vrot.slane %v3652, 4
        %v3654 = vadd.f32 %v3652, %v3653
        %v3655 = vrot.slane %v3654, 2
        %v3656 = vadd.f32 %v3654, %v3655
        %v3657 = vrot.slane %v3656, 1
        %v3658 = vadd.f32 %v3656, %v3657
        %v3659 = vadd.f32 %v3477, %v3481
        %v3660 = vrot.slane %v3659, 4
        %v3661 = vadd.f32 %v3659, %v3660
        %v3662 = vrot.slane %v3661, 2
        %v3663 = vadd.f32 %v3661, %v3662
        %v3664 = vrot.slane %v3663, 1
        %v3665 = vadd.f32 %v3663, %v3664
        %v3666 = vadd.f32 %v3482, %v3486
        %v3667 = vrot.slane %v3666, 4
        %v3668 = vadd.f32 %v3666, %v3667
        %v3669 = vrot.slane %v3668, 2
        %v3670 = vadd.f32 %v3668, %v3669
        %v3671 = vrot.slane %v3670, 1
        %v3672 = vadd.f32 %v3670, %v3671
        %v3673 = vadd.f32 %v3483, %v3487
        %v3674 = vrot.slane %v3673, 4
        %v3675 = vadd.f32 %v3673, %v3674
        %v3676 = vrot.slane %v3675, 2
        %v3677 = vadd.f32 %v3675, %v3676
        %v3678 = vrot.slane %v3677, 1
        %v3679 = vadd.f32 %v3677, %v3678
        %v3680 = vadd.f32 %v3484, %v3488
        %v3681 = vrot.slane %v3680, 4
        %v3682 = vadd.f32 %v3680, %v3681
        %v3683 = vrot.slane %v3682, 2
        %v3684 = vadd.f32 %v3682, %v3683
        %v3685 = vrot.slane %v3684, 1
        %v3686 = vadd.f32 %v3684, %v3685
        %v3687 = vadd.f32 %v3485, %v3489
        %v3688 = vrot.slane %v3687, 4
        %v3689 = vadd.f32 %v3687, %v3688
        %v3690 = vrot.slane %v3689, 2
        %v3691 = vadd.f32 %v3689, %v3690
        %v3692 = vrot.slane %v3691, 1
        %v3693 = vadd.f32 %v3691, %v3692
        %v3694 = vadd.f32 %v3490, %v3494
        %v3695 = vrot.slane %v3694, 4
        %v3696 = vadd.f32 %v3694, %v3695
        %v3697 = vrot.slane %v3696, 2
        %v3698 = vadd.f32 %v3696, %v3697
        %v3699 = vrot.slane %v3698, 1
        %v3700 = vadd.f32 %v3698, %v3699
        %v3701 = vadd.f32 %v3491, %v3495
        %v3702 = vrot.slane %v3701, 4
        %v3703 = vadd.f32 %v3701, %v3702
        %v3704 = vrot.slane %v3703, 2
        %v3705 = vadd.f32 %v3703, %v3704
        %v3706 = vrot.slane %v3705, 1
        %v3707 = vadd.f32 %v3705, %v3706
        %v3708 = vadd.f32 %v3492, %v3496
        %v3709 = vrot.slane %v3708, 4
        %v3710 = vadd.f32 %v3708, %v3709
        %v3711 = vrot.slane %v3710, 2
        %v3712 = vadd.f32 %v3710, %v3711
        %v3713 = vrot.slane %v3712, 1
        %v3714 = vadd.f32 %v3712, %v3713
        %v3715 = vadd.f32 %v3493, %v3497
        %v3716 = vrot.slane %v3715, 4
        %v3717 = vadd.f32 %v3715, %v3716
        %v3718 = vrot.slane %v3717, 2
        %v3719 = vadd.f32 %v3717, %v3718
        %v3720 = vrot.slane %v3719, 1
        %v3721 = vadd.f32 %v3719, %v3720
        %v3722 = vld [vmem:[%s12] sm:$0xf]
        %v3724 = vlaneseq
        %v3725 = vshrl.u32 %v3724, 7
        %v3726 = vsub.s32 0, %v3725
        %v3727 = vrot.slane %v3722, %v3726
        %v3728 = vlaneseq
        %v3729 = vshrl.u32 %v3728, 7
        %v3730 = vsub.s32 1, %v3729
        %v3731 = vrot.slane %v3722, %v3730
        %v3732 = vlaneseq
        %v3733 = vshrl.u32 %v3732, 7
        %v3734 = vsub.s32 2, %v3733
        %v3735 = vrot.slane %v3722, %v3734
        %v3736 = vlaneseq
        %v3737 = vshrl.u32 %v3736, 7
        %v3738 = vsub.s32 3, %v3737
        %v3739 = vrot.slane %v3722, %v3738
        %v3744 = vmul.f32 %v3727, %v1506
        %v3745 = vmul.f32 %v3731, %v1507
        %v3746 = vmul.f32 %v3735, %v1508
        %v3747 = vmul.f32 %v3739, %v1509
        %v3748 = vmul.f32 %v3727, %v1510
        %v3749 = vmul.f32 %v3731, %v1511
        %v3750 = vmul.f32 %v3735, %v1512
        %v3751 = vmul.f32 %v3739, %v1513
        %v3760 = vrot.slane %v3744, 5
        %v3761 = vrot.slane %v3745, 5
        %v3762 = vrot.slane %v3746, 5
        %v3763 = vrot.slane %v3747, 5
        %v3764 = vrot.slane %v3744, 6
        %v3765 = vrot.slane %v3745, 6
        %v3766 = vrot.slane %v3746, 6
        %v3767 = vrot.slane %v3747, 6
        %v3768 = vrot.slane %v3744, 7
        %v3769 = vrot.slane %v3745, 7
        %v3770 = vrot.slane %v3746, 7
        %v3771 = vrot.slane %v3747, 7
        %v3772 = vrot.slane %v3748, 1
        %v3773 = vrot.slane %v3749, 1
        %v3774 = vrot.slane %v3750, 1
        %v3775 = vrot.slane %v3751, 1
        %v3776 = vrot.slane %v3748, 2
        %v3777 = vrot.slane %v3749, 2
        %v3778 = vrot.slane %v3750, 2
        %v3779 = vrot.slane %v3751, 2
        %v3780 = vrot.slane %v3748, 3
        %v3781 = vrot.slane %v3749, 3
        %v3782 = vrot.slane %v3750, 3
        %v3783 = vrot.slane %v3751, 3
        %v3784 = vrot.slane %v3748, 4
        %v3785 = vrot.slane %v3749, 4
        %v3786 = vrot.slane %v3750, 4
        %v3787 = vrot.slane %v3751, 4
        %v3820 = vadd.f32 %v3504, %v3760
        %v3821 = vadd.f32 %v3511, %v3761
        %v3822 = vadd.f32 %v3518, %v3762
        %v3823 = vadd.f32 %v3525, %v3763
        %v3824 = vadd.f32 %v3532, %v3764
        %v3825 = vadd.f32 %v3539, %v3765
        %v3826 = vadd.f32 %v3546, %v3766
        %v3827 = vadd.f32 %v3553, %v3767
        %v3828 = vadd.f32 %v3560, %v3768
        %v3829 = vadd.f32 %v3567, %v3769
        %v3830 = vadd.f32 %v3574, %v3770
        %v3831 = vadd.f32 %v3581, %v3771
        %v3832 = vadd.f32 %v3588, %v3748
        %v3833 = vadd.f32 %v3595, %v3749
        %v3834 = vadd.f32 %v3602, %v3750
        %v3835 = vadd.f32 %v3609, %v3751
        %v3836 = vadd.f32 %v3616, %v3772
        %v3837 = vadd.f32 %v3623, %v3773
        %v3838 = vadd.f32 %v3630, %v3774
        %v3839 = vadd.f32 %v3637, %v3775
        %v3840 = vadd.f32 %v3644, %v3776
        %v3841 = vadd.f32 %v3651, %v3777
        %v3842 = vadd.f32 %v3658, %v3778
        %v3843 = vadd.f32 %v3665, %v3779
        %v3844 = vadd.f32 %v3672, %v3780
        %v3845 = vadd.f32 %v3679, %v3781
        %v3846 = vadd.f32 %v3686, %v3782
        %v3847 = vadd.f32 %v3693, %v3783
        %v3848 = vadd.f32 %v3700, %v3784
        %v3849 = vadd.f32 %v3707, %v3785
        %v3850 = vadd.f32 %v3714, %v3786
        %v3851 = vadd.f32 %v3721, %v3787
        %v3852 = vxor.u32 %v1039, 2147483648
        %v3853 = vxor.u32 %v1041, 2147483648
        %v3854 = vxor.u32 %v1110, 2147483648
        %v3855 = vxor.u32 %v1112, 2147483648
        %v3856 = vmul.f32 %v3852, 1.442695
        %v3857 = vpow.pop %v3856
        %v3858 = vmul.f32 %v3853, 1.442695
        %v3859 = vpow.pop %v3858
        %v3860 = vmul.f32 %v3854, 1.442695
        %v3861 = vpow.pop %v3860
        %v3862 = vmul.f32 %v3855, 1.442695
        %v3863 = vpow.pop %v3862
        %v3864 = vadd.f32 %v3857, 1.0
        %v3865 = vadd.f32 %v3859, 1.0
        %v3866 = vadd.f32 %v3861, 1.0
        %v3867 = vadd.f32 %v3863, 1.0
        %v3868 = vrcp.pop %v3864
        %v3869 = vmul.f32 1.0, %v3868
        %v3870 = vrcp.pop %v3865
        %v3871 = vmul.f32 1.0, %v3870
        %v3872 = vrcp.pop %v3866
        %v3873 = vmul.f32 1.0, %v3872
        %v3874 = vrcp.pop %v3867
        %v3875 = vmul.f32 1.0, %v3874
        %v3876 = vmul.f32 %v1039, %v3869
        %v3877 = vmul.f32 %v1041, %v3871
        %v3878 = vmul.f32 %v1110, %v3873
        %v3879 = vmul.f32 %v1112, %v3875
        %v3884 = vrot.slane %v3876, 1
        %v3885 = vrot.slane %v3877, 1
        %v3886 = vrot.slane %v3878, 1
        %v3887 = vrot.slane %v3879, 1
        %v3888 = vrot.slane %v3876, 2
        %v3889 = vrot.slane %v3877, 2
        %v3890 = vrot.slane %v3878, 2
        %v3891 = vrot.slane %v3879, 2
        %v3892 = vrot.slane %v3876, 3
        %v3893 = vrot.slane %v3877, 3
        %v3894 = vrot.slane %v3878, 3
        %v3895 = vrot.slane %v3879, 3
        %v3896 = vrot.slane %v3876, 4
        %v3897 = vrot.slane %v3877, 4
        %v3898 = vrot.slane %v3878, 4
        %v3899 = vrot.slane %v3879, 4
        %v3900 = vrot.slane %v3876, 5
        %v3901 = vrot.slane %v3877, 5
        %v3902 = vrot.slane %v3878, 5
        %v3903 = vrot.slane %v3879, 5
        %v3904 = vrot.slane %v3876, 6
        %v3905 = vrot.slane %v3877, 6
        %v3906 = vrot.slane %v3878, 6
        %v3907 = vrot.slane %v3879, 6
        %v3908 = vrot.slane %v3876, 7
        %v3909 = vrot.slane %v3877, 7
        %v3910 = vrot.slane %v3878, 7
        %v3911 = vrot.slane %v3879, 7
        %v3944 = vmul.f32 %v3820, %v3876
        %v3945 = vmul.f32 %v3821, %v3877
        %v3946 = vmul.f32 %v3822, %v3878
        %v3947 = vmul.f32 %v3823, %v3879
        %v3948 = vmul.f32 %v3824, %v3884
        %v3949 = vmul.f32 %v3825, %v3885
        %v3950 = vmul.f32 %v3826, %v3886
        %v3951 = vmul.f32 %v3827, %v3887
        %v3952 = vmul.f32 %v3828, %v3888
        %v3953 = vmul.f32 %v3829, %v3889
        %v3954 = vmul.f32 %v3830, %v3890
        %v3955 = vmul.f32 %v3831, %v3891
        %v3956 = vmul.f32 %v3832, %v3892
        %v3957 = vmul.f32 %v3833, %v3893
        %v3958 = vmul.f32 %v3834, %v3894
        %v3959 = vmul.f32 %v3835, %v3895
        %v3960 = vmul.f32 %v3836, %v3896
        %v3961 = vmul.f32 %v3837, %v3897
        %v3962 = vmul.f32 %v3838, %v3898
        %v3963 = vmul.f32 %v3839, %v3899
        %v3964 = vmul.f32 %v3840, %v3900
        %v3965 = vmul.f32 %v3841, %v3901
        %v3966 = vmul.f32 %v3842, %v3902
        %v3967 = vmul.f32 %v3843, %v3903
        %v3968 = vmul.f32 %v3844, %v3904
        %v3969 = vmul.f32 %v3845, %v3905
        %v3970 = vmul.f32 %v3846, %v3906
        %v3971 = vmul.f32 %v3847, %v3907
        %v3972 = vmul.f32 %v3848, %v3908
        %v3973 = vmul.f32 %v3849, %v3909
        %v3974 = vmul.f32 %v3850, %v3910
        %v3975 = vmul.f32 %v3851, %v3911
        %v3976 = vld [vmem:[%s13] sm:$0xff]
        %v3977 = vld [vmem:[%s13 + $0x8] sm:$0xff]
        %v3978 = vld [vmem:[%s13 + $0x10] sm:$0xff]
        %v3979 = vld [vmem:[%s13 + $0x18] sm:$0xff]
        %v3980 = vld [vmem:[%s13 + $0x20] sm:$0xff]
        %v3981 = vld [vmem:[%s13 + $0x28] sm:$0xff]
        %v3982 = vld [vmem:[%s13 + $0x30] sm:$0xff]
        %v3983 = vld [vmem:[%s13 + $0x38] sm:$0xff]
        %v3984 = vld [vmem:[%s13 + $0x40] sm:$0xff]
        %v3985 = vld [vmem:[%s13 + $0x48] sm:$0xff]
        %v3986 = vld [vmem:[%s13 + $0x50] sm:$0xff]
        %v3987 = vld [vmem:[%s13 + $0x58] sm:$0xff]
        %v3988 = vld [vmem:[%s13 + $0x60] sm:$0xff]
        %v3989 = vld [vmem:[%s13 + $0x68] sm:$0xff]
        %v3990 = vld [vmem:[%s13 + $0x70] sm:$0xff]
        %v3991 = vld [vmem:[%s13 + $0x78] sm:$0xff]
        %v3992 = vld [vmem:[%s13 + $0x80] sm:$0xff]
        %v3993 = vld [vmem:[%s13 + $0x88] sm:$0xff]
        %v3994 = vld [vmem:[%s13 + $0x90] sm:$0xff]
        %v3995 = vld [vmem:[%s13 + $0x98] sm:$0xff]
        %v3996 = vld [vmem:[%s13 + $0xa0] sm:$0xff]
        %v3997 = vld [vmem:[%s13 + $0xa8] sm:$0xff]
        %v3998 = vld [vmem:[%s13 + $0xb0] sm:$0xff]
        %v3999 = vld [vmem:[%s13 + $0xb8] sm:$0xff]
        %v4000 = vld [vmem:[%s13 + $0xc0] sm:$0xff]
        %v4001 = vld [vmem:[%s13 + $0xc8] sm:$0xff]
        %v4002 = vld [vmem:[%s13 + $0xd0] sm:$0xff]
        %v4003 = vld [vmem:[%s13 + $0xd8] sm:$0xff]
        %v4004 = vld [vmem:[%s13 + $0xe0] sm:$0xff]
        %v4005 = vld [vmem:[%s13 + $0xe8] sm:$0xff]
        %v4006 = vld [vmem:[%s13 + $0xf0] sm:$0xff]
        %v4007 = vld [vmem:[%s13 + $0xf8] sm:$0xff]
        %v4008 = vld [vmem:[%s13 + $0x100] sm:$0xff]
        %v4009 = vld [vmem:[%s13 + $0x108] sm:$0xff]
        %v4010 = vld [vmem:[%s13 + $0x110] sm:$0xff]
        %v4011 = vld [vmem:[%s13 + $0x118] sm:$0xff]
        %v4012 = vld [vmem:[%s13 + $0x120] sm:$0xff]
        %v4013 = vld [vmem:[%s13 + $0x128] sm:$0xff]
        %v4014 = vld [vmem:[%s13 + $0x130] sm:$0xff]
        %v4015 = vld [vmem:[%s13 + $0x138] sm:$0xff]
        %v4016 = vld [vmem:[%s13 + $0x140] sm:$0xff]
        %v4017 = vld [vmem:[%s13 + $0x148] sm:$0xff]
        %v4018 = vld [vmem:[%s13 + $0x150] sm:$0xff]
        %v4019 = vld [vmem:[%s13 + $0x158] sm:$0xff]
        %v4020 = vld [vmem:[%s13 + $0x160] sm:$0xff]
        %v4021 = vld [vmem:[%s13 + $0x168] sm:$0xff]
        %v4022 = vld [vmem:[%s13 + $0x170] sm:$0xff]
        %v4023 = vld [vmem:[%s13 + $0x178] sm:$0xff]
        %v4024 = vld [vmem:[%s13 + $0x180] sm:$0xff]
        %v4025 = vld [vmem:[%s13 + $0x188] sm:$0xff]
        %v4026 = vld [vmem:[%s13 + $0x190] sm:$0xff]
        %v4027 = vld [vmem:[%s13 + $0x198] sm:$0xff]
        %v4028 = vld [vmem:[%s13 + $0x1a0] sm:$0xff]
        %v4029 = vld [vmem:[%s13 + $0x1a8] sm:$0xff]
        %v4030 = vld [vmem:[%s13 + $0x1b0] sm:$0xff]
        %v4031 = vld [vmem:[%s13 + $0x1b8] sm:$0xff]
        %v4032 = vld [vmem:[%s13 + $0x1c0] sm:$0xff]
        %v4033 = vld [vmem:[%s13 + $0x1c8] sm:$0xff]
        %v4034 = vld [vmem:[%s13 + $0x1d0] sm:$0xff]
        %v4035 = vld [vmem:[%s13 + $0x1d8] sm:$0xff]
        %v4036 = vld [vmem:[%s13 + $0x1e0] sm:$0xff]
        %v4037 = vld [vmem:[%s13 + $0x1e8] sm:$0xff]
        %v4038 = vld [vmem:[%s13 + $0x1f0] sm:$0xff]
        %v4039 = vld [vmem:[%s13 + $0x1f8] sm:$0xff]
        %v4040 = vld [vmem:[%s13 + $0x200] sm:$0xff]
        %v4041 = vld [vmem:[%s13 + $0x208] sm:$0xff]
        %v4042 = vld [vmem:[%s13 + $0x210] sm:$0xff]
        %v4043 = vld [vmem:[%s13 + $0x218] sm:$0xff]
        %v4044 = vld [vmem:[%s13 + $0x220] sm:$0xff]
        %v4045 = vld [vmem:[%s13 + $0x228] sm:$0xff]
        %v4046 = vld [vmem:[%s13 + $0x230] sm:$0xff]
        %v4047 = vld [vmem:[%s13 + $0x238] sm:$0xff]
        %v4048 = vld [vmem:[%s13 + $0x240] sm:$0xff]
        %v4049 = vld [vmem:[%s13 + $0x248] sm:$0xff]
        %v4050 = vld [vmem:[%s13 + $0x250] sm:$0xff]
        %v4051 = vld [vmem:[%s13 + $0x258] sm:$0xff]
        %v4052 = vld [vmem:[%s13 + $0x260] sm:$0xff]
        %v4053 = vld [vmem:[%s13 + $0x268] sm:$0xff]
        %v4054 = vld [vmem:[%s13 + $0x270] sm:$0xff]
        %v4055 = vld [vmem:[%s13 + $0x278] sm:$0xff]
        %v4056 = vld [vmem:[%s13 + $0x280] sm:$0xff]
        %v4057 = vld [vmem:[%s13 + $0x288] sm:$0xff]
        %v4058 = vld [vmem:[%s13 + $0x290] sm:$0xff]
        %v4059 = vld [vmem:[%s13 + $0x298] sm:$0xff]
        %v4060 = vld [vmem:[%s13 + $0x2a0] sm:$0xff]
        %v4061 = vld [vmem:[%s13 + $0x2a8] sm:$0xff]
        %v4062 = vld [vmem:[%s13 + $0x2b0] sm:$0xff]
        %v4063 = vld [vmem:[%s13 + $0x2b8] sm:$0xff]
        %v4064 = vld [vmem:[%s13 + $0x2c0] sm:$0xff]
        %v4065 = vld [vmem:[%s13 + $0x2c8] sm:$0xff]
        %v4066 = vld [vmem:[%s13 + $0x2d0] sm:$0xff]
        %v4067 = vld [vmem:[%s13 + $0x2d8] sm:$0xff]
        %v4068 = vld [vmem:[%s13 + $0x2e0] sm:$0xff]
        %v4069 = vld [vmem:[%s13 + $0x2e8] sm:$0xff]
        %v4070 = vld [vmem:[%s13 + $0x2f0] sm:$0xff]
        %v4071 = vld [vmem:[%s13 + $0x2f8] sm:$0xff]
        %v4072 = vld [vmem:[%s13 + $0x300] sm:$0xff]
        %v4073 = vld [vmem:[%s13 + $0x308] sm:$0xff]
        %v4074 = vld [vmem:[%s13 + $0x310] sm:$0xff]
        %v4075 = vld [vmem:[%s13 + $0x318] sm:$0xff]
        %v4076 = vld [vmem:[%s13 + $0x320] sm:$0xff]
        %v4077 = vld [vmem:[%s13 + $0x328] sm:$0xff]
        %v4078 = vld [vmem:[%s13 + $0x330] sm:$0xff]
        %v4079 = vld [vmem:[%s13 + $0x338] sm:$0xff]
        %v4080 = vld [vmem:[%s13 + $0x340] sm:$0xff]
        %v4081 = vld [vmem:[%s13 + $0x348] sm:$0xff]
        %v4082 = vld [vmem:[%s13 + $0x350] sm:$0xff]
        %v4083 = vld [vmem:[%s13 + $0x358] sm:$0xff]
        %v4084 = vld [vmem:[%s13 + $0x360] sm:$0xff]
        %v4085 = vld [vmem:[%s13 + $0x368] sm:$0xff]
        %v4086 = vld [vmem:[%s13 + $0x370] sm:$0xff]
        %v4087 = vld [vmem:[%s13 + $0x378] sm:$0xff]
        %v4088 = vld [vmem:[%s13 + $0x380] sm:$0xff]
        %v4089 = vld [vmem:[%s13 + $0x388] sm:$0xff]
        %v4090 = vld [vmem:[%s13 + $0x390] sm:$0xff]
        %v4091 = vld [vmem:[%s13 + $0x398] sm:$0xff]
        %v4092 = vld [vmem:[%s13 + $0x3a0] sm:$0xff]
        %v4093 = vld [vmem:[%s13 + $0x3a8] sm:$0xff]
        %v4094 = vld [vmem:[%s13 + $0x3b0] sm:$0xff]
        %v4095 = vld [vmem:[%s13 + $0x3b8] sm:$0xff]
        %v4096 = vld [vmem:[%s13 + $0x3c0] sm:$0xff]
        %v4097 = vld [vmem:[%s13 + $0x3c8] sm:$0xff]
        %v4098 = vld [vmem:[%s13 + $0x3d0] sm:$0xff]
        %v4099 = vld [vmem:[%s13 + $0x3d8] sm:$0xff]
        %v4100 = vld [vmem:[%s13 + $0x3e0] sm:$0xff]
        %v4101 = vld [vmem:[%s13 + $0x3e8] sm:$0xff]
        %v4102 = vld [vmem:[%s13 + $0x3f0] sm:$0xff]
        %v4103 = vld [vmem:[%s13 + $0x3f8] sm:$0xff]
        %v4136 = vrot.slane %v3948, 7
        %vm4137 = vcmask 1041409
        %v4138 = vsel %vm4137, %v4136, %v3944
        %v4139 = vrot.slane %v3952, 6
        %vm4140 = vcmask 1042434
        %v4141 = vsel %vm4140, %v4139, %v4138
        %v4142 = vrot.slane %v3956, 5
        %vm4143 = vcmask 1043459
        %v4144 = vsel %vm4143, %v4142, %v4141
        %v4145 = vrot.slane %v3960, 4
        %vm4146 = vcmask 1044484
        %v4147 = vsel %vm4146, %v4145, %v4144
        %v4148 = vrot.slane %v3964, 3
        %vm4149 = vcmask 1045509
        %v4150 = vsel %vm4149, %v4148, %v4147
        %v4151 = vrot.slane %v3968, 2
        %vm4152 = vcmask 1046534
        %v4153 = vsel %vm4152, %v4151, %v4150
        %v4154 = vrot.slane %v3972, 1
        %vm4155 = vcmask 1047559
        %v4156 = vsel %vm4155, %v4154, %v4153
        %v4157 = vrot.slane %v3949, 7
        %v4158 = vsel %vm4137, %v4157, %v3945
        %v4159 = vrot.slane %v3953, 6
        %v4160 = vsel %vm4140, %v4159, %v4158
        %v4161 = vrot.slane %v3957, 5
        %v4162 = vsel %vm4143, %v4161, %v4160
        %v4163 = vrot.slane %v3961, 4
        %v4164 = vsel %vm4146, %v4163, %v4162
        %v4165 = vrot.slane %v3965, 3
        %v4166 = vsel %vm4149, %v4165, %v4164
        %v4167 = vrot.slane %v3969, 2
        %v4168 = vsel %vm4152, %v4167, %v4166
        %v4169 = vrot.slane %v3973, 1
        %v4170 = vsel %vm4155, %v4169, %v4168
        %v4171 = vrot.slane %v3950, 7
        %v4172 = vsel %vm4137, %v4171, %v3946
        %v4173 = vrot.slane %v3954, 6
        %v4174 = vsel %vm4140, %v4173, %v4172
        %v4175 = vrot.slane %v3958, 5
        %v4176 = vsel %vm4143, %v4175, %v4174
        %v4177 = vrot.slane %v3962, 4
        %v4178 = vsel %vm4146, %v4177, %v4176
        %v4179 = vrot.slane %v3966, 3
        %v4180 = vsel %vm4149, %v4179, %v4178
        %v4181 = vrot.slane %v3970, 2
        %v4182 = vsel %vm4152, %v4181, %v4180
        %v4183 = vrot.slane %v3974, 1
        %v4184 = vsel %vm4155, %v4183, %v4182
        %v4185 = vrot.slane %v3951, 7
        %v4186 = vsel %vm4137, %v4185, %v3947
        %v4187 = vrot.slane %v3955, 6
        %v4188 = vsel %vm4140, %v4187, %v4186
        %v4189 = vrot.slane %v3959, 5
        %v4190 = vsel %vm4143, %v4189, %v4188
        %v4191 = vrot.slane %v3963, 4
        %v4192 = vsel %vm4146, %v4191, %v4190
        %v4193 = vrot.slane %v3967, 3
        %v4194 = vsel %vm4149, %v4193, %v4192
        %v4195 = vrot.slane %v3971, 2
        %v4196 = vsel %vm4152, %v4195, %v4194
        %v4197 = vrot.slane %v3975, 1
        %v4198 = vsel %vm4155, %v4197, %v4196
        %4203 = vmatprep.subr.mxu0 %v4007
        %4204 = vmatpush1.msra.mxu0 %v4006
        %4205 = vmatprep.subr.mxu0 %v4005
        %4206 = vmatpush1.msra.mxu0 %v4004
        %4207 = vmatprep.subr.mxu0 %v4003
        %4208 = vmatpush1.msra.mxu0 %v4002
        %4209 = vmatprep.subr.mxu0 %v4001
        %4210 = vmatpush1.msra.mxu0 %v4000
        %4211 = vmatprep.subr.mxu0 %v3999
        %4212 = vmatpush1.msra.mxu0 %v3998
        %4213 = vmatprep.subr.mxu0 %v3997
        %4214 = vmatpush1.msra.mxu0 %v3996
        %4215 = vmatprep.subr.mxu0 %v3995
        %4216 = vmatpush1.msra.mxu0 %v3994
        %4217 = vmatprep.subr.mxu0 %v3993
        %4218 = vmatpush1.msra.mxu0 %v3992
        %4219 = vmatprep.subr.mxu0 %v3991
        %4220 = vmatpush1.msra.mxu0 %v3990
        %4221 = vmatprep.subr.mxu0 %v3989
        %4222 = vmatpush1.msra.mxu0 %v3988
        %4223 = vmatprep.subr.mxu0 %v3987
        %4224 = vmatpush1.msra.mxu0 %v3986
        %4225 = vmatprep.subr.mxu0 %v3985
        %4226 = vmatpush1.msra.mxu0 %v3984
        %4227 = vmatprep.subr.mxu0 %v3983
        %4228 = vmatpush1.msra.mxu0 %v3982
        %4229 = vmatprep.subr.mxu0 %v3981
        %4230 = vmatpush1.msra.mxu0 %v3980
        %4231 = vmatprep.subr.mxu0 %v3979
        %4232 = vmatpush1.msra.mxu0 %v3978
        %4233 = vmatprep.subr.mxu0 %v3977
        %4234 = vmatpush1.msra.mxu0 %v3976
        %4235 = vmatprep.subr.mxu0 %v4039
        %4236 = vmatpush2.msra.mxu0 %v4038
        %4237 = vmatprep.subr.mxu0 %v4037
        %4238 = vmatpush2.msra.mxu0 %v4036
        %4239 = vmatprep.subr.mxu0 %v4035
        %4240 = vmatpush2.msra.mxu0 %v4034
        %4241 = vmatprep.subr.mxu0 %v4033
        %4242 = vmatpush2.msra.mxu0 %v4032
        %4243 = vmatprep.subr.mxu0 %v4031
        %4244 = vmatpush2.msra.mxu0 %v4030
        %4245 = vmatprep.subr.mxu0 %v4029
        %4246 = vmatpush2.msra.mxu0 %v4028
        %4247 = vmatprep.subr.mxu0 %v4027
        %4248 = vmatpush2.msra.mxu0 %v4026
        %4249 = vmatprep.subr.mxu0 %v4025
        %4250 = vmatpush2.msra.mxu0 %v4024
        %4251 = vmatprep.subr.mxu0 %v4023
        %4252 = vmatpush2.msra.mxu0 %v4022
        %4253 = vmatprep.subr.mxu0 %v4021
        %4254 = vmatpush2.msra.mxu0 %v4020
        %4255 = vmatprep.subr.mxu0 %v4019
        %4256 = vmatpush2.msra.mxu0 %v4018
        %4257 = vmatprep.subr.mxu0 %v4017
        %4258 = vmatpush2.msra.mxu0 %v4016
        %4259 = vmatprep.subr.mxu0 %v4015
        %4260 = vmatpush2.msra.mxu0 %v4014
        %4261 = vmatprep.subr.mxu0 %v4013
        %4262 = vmatpush2.msra.mxu0 %v4012
        %4263 = vmatprep.subr.mxu0 %v4011
        %4264 = vmatpush2.msra.mxu0 %v4010
        %4265 = vmatprep.subr.mxu0 %v4009
        %4266 = vmatpush2.msra.mxu0 %v4008
        %4267 = vmatprep.mubr.f32.mxu0 %v4170
        %4268 = vmatmul.mubr.f32.gmra.mxu0 %v4156
        %v4269 = vpop.f32.mrf.mxu0
        %v4270 = vadd.f32 0.0, %v4269
        %v4271 = vpop.f32.mrf.mxu0
        %v4272 = vadd.f32 0.0, %v4271
        %4273 = vdwg.mxu0
        %4274 = vmatprep.subr.mxu0 %v4071
        %4275 = vmatpush1.msra.mxu0 %v4070
        %4276 = vmatprep.subr.mxu0 %v4069
        %4277 = vmatpush1.msra.mxu0 %v4068
        %4278 = vmatprep.subr.mxu0 %v4067
        %4279 = vmatpush1.msra.mxu0 %v4066
        %4280 = vmatprep.subr.mxu0 %v4065
        %4281 = vmatpush1.msra.mxu0 %v4064
        %4282 = vmatprep.subr.mxu0 %v4063
        %4283 = vmatpush1.msra.mxu0 %v4062
        %4284 = vmatprep.subr.mxu0 %v4061
        %4285 = vmatpush1.msra.mxu0 %v4060
        %4286 = vmatprep.subr.mxu0 %v4059
        %4287 = vmatpush1.msra.mxu0 %v4058
        %4288 = vmatprep.subr.mxu0 %v4057
        %4289 = vmatpush1.msra.mxu0 %v4056
        %4290 = vmatprep.subr.mxu0 %v4055
        %4291 = vmatpush1.msra.mxu0 %v4054
        %4292 = vmatprep.subr.mxu0 %v4053
        %4293 = vmatpush1.msra.mxu0 %v4052
        %4294 = vmatprep.subr.mxu0 %v4051
        %4295 = vmatpush1.msra.mxu0 %v4050
        %4296 = vmatprep.subr.mxu0 %v4049
        %4297 = vmatpush1.msra.mxu0 %v4048
        %4298 = vmatprep.subr.mxu0 %v4047
        %4299 = vmatpush1.msra.mxu0 %v4046
        %4300 = vmatprep.subr.mxu0 %v4045
        %4301 = vmatpush1.msra.mxu0 %v4044
        %4302 = vmatprep.subr.mxu0 %v4043
        %4303 = vmatpush1.msra.mxu0 %v4042
        %4304 = vmatprep.subr.mxu0 %v4041
        %4305 = vmatpush1.msra.mxu0 %v4040
        %4306 = vmatprep.subr.mxu0 %v4103
        %4307 = vmatpush2.msra.mxu0 %v4102
        %4308 = vmatprep.subr.mxu0 %v4101
        %4309 = vmatpush2.msra.mxu0 %v4100
        %4310 = vmatprep.subr.mxu0 %v4099
        %4311 = vmatpush2.msra.mxu0 %v4098
        %4312 = vmatprep.subr.mxu0 %v4097
        %4313 = vmatpush2.msra.mxu0 %v4096
        %4314 = vmatprep.subr.mxu0 %v4095
        %4315 = vmatpush2.msra.mxu0 %v4094
        %4316 = vmatprep.subr.mxu0 %v4093
        %4317 = vmatpush2.msra.mxu0 %v4092
        %4318 = vmatprep.subr.mxu0 %v4091
        %4319 = vmatpush2.msra.mxu0 %v4090
        %4320 = vmatprep.subr.mxu0 %v4089
        %4321 = vmatpush2.msra.mxu0 %v4088
        %4322 = vmatprep.subr.mxu0 %v4087
        %4323 = vmatpush2.msra.mxu0 %v4086
        %4324 = vmatprep.subr.mxu0 %v4085
        %4325 = vmatpush2.msra.mxu0 %v4084
        %4326 = vmatprep.subr.mxu0 %v4083
        %4327 = vmatpush2.msra.mxu0 %v4082
        %4328 = vmatprep.subr.mxu0 %v4081
        %4329 = vmatpush2.msra.mxu0 %v4080
        %4330 = vmatprep.subr.mxu0 %v4079
        %4331 = vmatpush2.msra.mxu0 %v4078
        %4332 = vmatprep.subr.mxu0 %v4077
        %4333 = vmatpush2.msra.mxu0 %v4076
        %4334 = vmatprep.subr.mxu0 %v4075
        %4335 = vmatpush2.msra.mxu0 %v4074
        %4336 = vmatprep.subr.mxu0 %v4073
        %4337 = vmatpush2.msra.mxu0 %v4072
        %4338 = vmatprep.mubr.f32.mxu0 %v4198
        %4339 = vmatmul.mubr.f32.gmra.mxu0 %v4184
        %v4340 = vpop.f32.mrf.mxu0
        %v4341 = vadd.f32 %v4270, %v4340
        %v4342 = vpop.f32.mrf.mxu0
        %v4343 = vadd.f32 %v4272, %v4342
        %4344 = vdwg.mxu0
        %4345 = vst [vmem:[%s473] sm:$0xff] %v4341
        %4346 = vst [vmem:[%s473 + $0x8] sm:$0xff] %v4343
        %s4347 = sand.u32 %s336, 1
        %s4348 = scalar_lea.sflag [#allocation5], %s4347
        %s4349 = sand.u32 %s336, 1
        %s4350 = smul.addr %s4349, 16
        %s4351 = scalar_lea.vmem [#allocation6], %s4350
        // Predicated region
        $region81: #{tpu_custom_call.1} parent=75 // pred_check
          %p4352 = pneg %p346
        $region82: #{tpu_custom_call.1} parent=75 // pred_check_branch
          %4354 = sbr.rel (%p4352) target = $region84
        $region83: #{tpu_custom_call.1} parent=75 // pred_region
          %s4356 = ssub.s32 256, 256
          %4357 = vsyncadd %s4348, %s4356
          %s4358 = smul.addr %s29, 2
          %s4359 = smul.addr %s4358, 128
          %s4360 = scalar_lea.hbm %s14, %s4359
          %s4362 = sshll.u32 %s4351, 4
          %s4363 = int_to_ptr.vmem [resolvable:$true] %s4362
          %4365 = dma.vmem_to_hbm [thread:$0]  %s4363, 256, %s4360, %s4348
        $region84: #{tpu_custom_call.1} parent=75 // pred_fallthru
          _
      $region76: #{tpu_custom_call.1} parent=5 // pred_fallthru
        _
      %p4366 = scmp.le.s32.totalorder 2, %s24
      // Predicated region
      $region85: #{tpu_custom_call.1} parent=5 // pred_check
        %p4367 = pneg %p4366
      $region86: #{tpu_custom_call.1} parent=5 // pred_check_branch
        %4369 = sbr.rel (%p4367) target = $region88
      $region87: #{tpu_custom_call.1} parent=5 // pred_region
        %s4370 = ssub.s32 %s24, 2
        // Predicated region
        $region89: #{tpu_custom_call.1} parent=87 // pred_check
          %p4371 = pneg %p352
        $region90: #{tpu_custom_call.1} parent=87 // pred_check_branch
          %4373 = sbr.rel (%p4371) target = $region92
        $region91: #{tpu_custom_call.1} parent=87 // pred_region
          %s4374 = sand.u32 %s337, 1
          %s4375 = scalar_lea.sflag [#allocation5], %s4374
          %s4376 = sand.u32 %s337, 1
          %s4377 = smul.addr %s4376, 16
          %s4378 = scalar_lea.vmem [#allocation6], %s4377
          %4379 = dma.done %s4375, 256
        $region92: #{tpu_custom_call.1} parent=87 // pred_fallthru
          _
      $region88: #{tpu_custom_call.1} parent=5 // pred_fallthru
        _
    $region6: #{tpu_custom_call.1} parent=1 // loop_footer
      %s28 = sadd.s32 1, %s24
    $region7: #{tpu_custom_call.1} parent=1 // loop_footer_branch
      %23 = sbr.rel target = $region3
    $region8: #{tpu_custom_call.1} parent=1 // loop_exit
      _
    %4380 = vsyncpa [#allocation4], 1
    %s4381 = scalar_lea.sflag [#allocation4], 1
    %4382 = vsyncpa %s4381, 1
    %4383 = vsyncpa [#allocation5], 1
    %s4384 = scalar_lea.sflag [#allocation5], 1
    %4385 = vsyncpa %s4384, 1

</llo_original>
